<compile_context>
chip_gen: v7x
topology: tpu7x:2x2x1
jax: 0.10.0
libtpu: 0.0.40
codegen_flags: <defaults>
</compile_context>

<pallas_src>
import functools
import math

import jax
import jax.numpy as jnp
import numpy as np
from jax import lax
from jax.experimental import pallas as pl
from jax.experimental.pallas import tpu as pltpu

NUM_EXPERTS = 5
TOTAL_TIMESTEPS = 1000
LORA_RANK = 4
LORA_SCALE = 1.0  # LoraInjectedLinear default scale


# ----------------------------------------------------------------------------
# Fused Pallas kernel: proj_in + LoRA-MoDE q/k/v/out + attention + proj_out
# + bias + residual, one grid step per (batch, token tile).
# ----------------------------------------------------------------------------
def _fused_unet_block_kernel(
    # scalar prefetch
    eidx_ref,
    # inputs
    lat_tok_ref, lat_chw_ref, enc_ref,
    w_in_ref, b_in_ref,
    w_q_ref, a_q_ref, b_q_ref,
    w_k_ref, a_k_ref, b_k_ref,
    w_v_ref, a_v_ref, b_v_ref,
    w_o_ref, a_o_ref, b_o_ref,
    w_out_ref, b_out_ref,
    # output
    o_ref,
    *, sm_scale, lora_scale):
    del eidx_ref  # expert selection happens in the BlockSpec index_maps

    def merged(w_ref, a_ref, b_ref):
        # W_eff = W + scale * A_e @ B_e : one (Din, r) x (r, Dout) merge per
        # grid step replaces two rank-r matmuls over every token tile.
        return w_ref[...] + lora_scale * jnp.dot(
            a_ref[...], b_ref[...], preferred_element_type=jnp.float32)

    x_tok = lat_tok_ref[...]                     # (tq, C)   token-major latent
    ctx = enc_ref[...]                           # (S, d_enc)

    # proj_in (glue linear of the synthetic unet block)
    h = jnp.dot(x_tok, w_in_ref[...],
                preferred_element_type=jnp.float32) + b_in_ref[...]   # (tq, D)

    q = jnp.dot(h, merged(w_q_ref, a_q_ref, b_q_ref),
                preferred_element_type=jnp.float32)                   # (tq, D)
    k = jnp.dot(ctx, merged(w_k_ref, a_k_ref, b_k_ref),
                preferred_element_type=jnp.float32)                   # (S, D)
    v = jnp.dot(ctx, merged(w_v_ref, a_v_ref, b_v_ref),
                preferred_element_type=jnp.float32)                   # (S, D)

    # attention: contract on the feature axis directly (no explicit .T)
    logits = lax.dot_general(q, k, (((1,), (1,)), ((), ())),
                             preferred_element_type=jnp.float32) * sm_scale
    logits = logits - jnp.max(logits, axis=-1, keepdims=True)
    p = jnp.exp(logits)
    p = p * pl.reciprocal(jnp.sum(p, axis=-1, keepdims=True), approx=True)
    attn = jnp.dot(p, v, preferred_element_type=jnp.float32)          # (tq, D)

    o = jnp.dot(attn, merged(w_o_ref, a_o_ref, b_o_ref),
                preferred_element_type=jnp.float32)                   # (tq, D)

    # proj_out straight into channel-major layout so the HBM store is
    # lane-dense:  out[c, t] = sum_d w_out[c, d] * o[t, d]
    out_chw = lax.dot_general(w_out_ref[...], o, (((1,), (1,)), ((), ())),
                              preferred_element_type=jnp.float32)     # (C, tq)
    out_chw = out_chw + b_out_ref[...] + lat_chw_ref[...]  # bias + residual
    o_ref[...] = out_chw.astype(o_ref.dtype)


# ----------------------------------------------------------------------------
# Forward (UNetLORAMoDE.forward equivalent)
# ----------------------------------------------------------------------------
def get_expert_index(t, num_experts=NUM_EXPERTS, total_timesteps=TOTAL_TIMESTEPS):
    t0 = jnp.ravel(jnp.asarray(t))[0]
    expert_size = total_timesteps // num_experts
    return (t0 // expert_size).astype(jnp.int32)


def unet_lora_mode_forward(params, latent_model_input, t, encoder_hidden_states):
    B, C, H, W = latent_model_input.shape
    _, S, d_enc = encoder_hidden_states.shape
    HW = H * W
    d_model = params["w_q"].shape[1]
    r = LORA_RANK

    # clamp so t == 1000 (or negative t) cannot index outside the expert axis
    expert_idx = jnp.clip(get_expert_index(t), 0, NUM_EXPERTS - 1).reshape((1,))

    # Token-major view for the matmul path (tiny XLA transpose) and a free
    # channel-major reshape for the fused residual / lane-dense output.
    lat_tok = jnp.transpose(latent_model_input, (0, 2, 3, 1)).reshape(B, HW, C)
    lat_chw = latent_model_input.reshape(B, C, HW)

    tq = HW if HW <= 512 else 512          # token tile (single step at HW=256)
    n_tq = pl.cdiv(HW, tq)
    grid = (B, n_tq)

    kernel = functools.partial(_fused_unet_block_kernel,
                               sm_scale=1.0 / math.sqrt(d_model),
                               lora_scale=LORA_SCALE)

    const2 = lambda b, i, e: (0, 0)            # grid-constant weights
    expert3 = lambda b, i, e: (e[0], 0, 0)     # expert-selected LoRA weights

    out = pl.pallas_call(
        kernel,
        out_shape=jax.ShapeDtypeStruct((B, C, HW), latent_model_input.dtype),
        grid_spec=pltpu.PrefetchScalarGridSpec(
            num_scalar_prefetch=1,
            grid=grid,
            in_specs=[
                pl.BlockSpec((None, tq, C), lambda b, i, e: (b, i, 0)),     # lat_tok
                pl.BlockSpec((None, C, tq), lambda b, i, e: (b, 0, i)),     # lat_chw
                pl.BlockSpec((None, S, d_enc), lambda b, i, e: (b, 0, 0)),  # enc
                pl.BlockSpec((C, d_model), const2),                         # proj_in_w
                pl.BlockSpec((1, d_model), const2),                         # proj_in_b
                pl.BlockSpec((d_model, d_model), const2),                   # w_q
                pl.BlockSpec((None, d_model, r), expert3),                  # a_q
                pl.BlockSpec((None, r, d_model), expert3),                  # b_q
                pl.BlockSpec((d_enc, d_model), const2),                     # w_k
                pl.BlockSpec((None, d_enc, r), expert3),                    # a_k
                pl.BlockSpec((None, r, d_model), expert3),                  # b_k
                pl.BlockSpec((d_enc, d_model), const2),                     # w_v
                pl.BlockSpec((None, d_enc, r), expert3),                    # a_v
                pl.BlockSpec((None, r, d_model), expert3),                  # b_v
                pl.BlockSpec((d_model, d_model), const2),                   # w_o
                pl.BlockSpec((None, d_model, r), expert3),                  # a_o
                pl.BlockSpec((None, r, d_model), expert3),                  # b_o
                pl.BlockSpec((C, d_model), const2),                         # proj_out_w
                pl.BlockSpec((C, 1), const2),                               # proj_out_b
            ],
            out_specs=pl.BlockSpec((None, C, tq), lambda b, i, e: (b, 0, i)),
        ),
        compiler_params=pltpu.CompilerParams(
            dimension_semantics=("parallel", "parallel"),
            vmem_limit_bytes=32 * 1024 * 1024),
    )(expert_idx, lat_tok, lat_chw, encoder_hidden_states,
      params["proj_in_w"], params["proj_in_b"],
      params["w_q"], params["a_q"], params["b_q"],
      params["w_k"], params["a_k"], params["b_k"],
      params["w_v"], params["a_v"], params["b_v"],
      params["w_o"], params["a_o"], params["b_o"],
      params["proj_out_w"], params["proj_out_b"])

    # free-ish reshape back to NCHW (no transpose needed: output is already
    # channel-major with the residual added in-kernel)
    return out.reshape(B, C, H, W)  # == UNet2DConditionOutput.sample


# ----------------------------------------------------------------------------
# Parameter construction (deterministic, synthetic)
# ----------------------------------------------------------------------------
def init_params(key, *, c_in, d_model, d_enc, num_experts, rank):
    keys = iter(jax.random.split(key, 32))

    def dense(din, dout, scale=0.05):
        return jax.random.normal(next(keys), (din, dout), jnp.float32) * scale

    def lora_pair(din, dout):
        # lora_down ~ N(0, 1/r) per inject_trainable_lora; lora_up small
        # deterministic values so each expert is distinguishable.
        a = jax.random.normal(next(keys), (num_experts, din, rank),
                              jnp.float32) * (1.0 / rank)
        b = jax.random.normal(next(keys), (num_experts, rank, dout),
                              jnp.float32) * 0.02
        return a, b

    p = {}
    p["proj_in_w"] = dense(c_in, d_model)                  # (C, D): x @ W
    p["proj_in_b"] = jnp.zeros((1, d_model), jnp.float32)
    # stored in PyTorch nn.Linear layout (out_features, in_features) so the
    # kernel can produce a channel-major, lane-dense output directly.
    p["proj_out_w"] = dense(c_in, d_model)                 # (C, D): o @ W.T
    p["proj_out_b"] = jnp.zeros((c_in, 1), jnp.float32)
    for name, din, dout in (("q", d_model, d_model),
                            ("k", d_enc, d_model),
                            ("v", d_enc, d_model),
                            ("o", d_model, d_model)):
        p[f"w_{name}"] = dense(din, dout)
        p[f"a_{name}"], p[f"b_{name}"] = lora_pair(din, dout)
    return p


# ----------------------------------------------------------------------------
# Pure-JAX reference (same math, no Pallas) for a sanity check
# ----------------------------------------------------------------------------
def _reference_forward(params, latent, t, enc):
    B, C, H, W = latent.shape
    _, S, d_enc = enc.shape
    e = int(np.ravel(np.asarray(t))[0] // (TOTAL_TIMESTEPS // NUM_EXPERTS))
    e = min(max(e, 0), NUM_EXPERTS - 1)

    def lora(x, w, a, b):
        return x @ w + LORA_SCALE * ((x @ a[e]) @ b[e])

    h = jnp.transpose(latent, (0, 2, 3, 1)).reshape(B * H * W, C)
    h = h @ params["proj_in_w"] + params["proj_in_b"]
    d = h.shape[-1]
    ctx = enc.reshape(B * S, d_enc)
    q = lora(h, params["w_q"], params["a_q"], params["b_q"]).reshape(B, H * W, d)
    k = lora(ctx, params["w_k"], params["a_k"], params["b_k"]).reshape(B, S, d)
    v = lora(ctx, params["w_v"], params["a_v"], params["b_v"]).reshape(B, S, d)
    p = jax.nn.softmax(jnp.einsum("bqd,bkd->bqk", q, k) / math.sqrt(d), axis=-1)
    attn = jnp.einsum("bqk,bkd->bqd", p, v).reshape(B * H * W, d)
    o = lora(attn, params["w_o"], params["a_o"], params["b_o"])
    out = o @ params["proj_out_w"].T + params["proj_out_b"].reshape(1, C)
    return jnp.transpose(out.reshape(B, H, W, C), (0, 3, 1, 2)) + latent


# ----------------------------------------------------------------------------
if __name__ == "__main__":
    key = jax.random.PRNGKey(0)
    k_param, k_lat, k_enc = jax.random.split(key, 3)

    B, C, H, W = 2, 4, 16, 16
    S, D_ENC, D_MODEL = 8, 32, 32

    params = init_params(k_param, c_in=C, d_model=D_MODEL, d_enc=D_ENC,
                         num_experts=NUM_EXPERTS, rank=LORA_RANK)

    latent = jax.random.normal(k_lat, (B, C, H, W), jnp.float32)
    encoder_hidden_states = jax.random.normal(k_enc, (B, S, D_ENC), jnp.float32)
    t = jnp.array([437], dtype=jnp.int32)   # -> expert_idx = 2

    fwd = jax.jit(unet_lora_mode_forward)
    sample = fwd(params, latent, t, encoder_hidden_states)
    sample = jax.block_until_ready(sample)

    ref = _reference_forward(params, latent, t, encoder_hidden_states)
    np.testing.assert_allclose(np.asarray(sample), np.asarray(ref),
                               rtol=2e-2, atol=2e-2)
    assert sample.shape == latent.shape and sample.dtype == latent.dtype

    print("KERNEL_OK")
</pallas_src>

<mosaic_0001>
module attributes {stable_mosaic.version = 11 : i64} {
  func.func @_fused_unet_block_kernel(%arg0: i32, %arg1: i32, %arg2: memref<1xi32, #tpu.memory_space<smem>>, %arg3: memref<1x256x4xf32, #tpu.memory_space<vmem>>, %arg4: memref<1x4x256xf32, #tpu.memory_space<vmem>>, %arg5: memref<1x8x32xf32, #tpu.memory_space<vmem>>, %arg6: memref<4x32xf32, #tpu.memory_space<vmem>>, %arg7: memref<1x32xf32, #tpu.memory_space<vmem>>, %arg8: memref<32x32xf32, #tpu.memory_space<vmem>>, %arg9: memref<1x32x4xf32, #tpu.memory_space<vmem>>, %arg10: memref<1x4x32xf32, #tpu.memory_space<vmem>>, %arg11: memref<32x32xf32, #tpu.memory_space<vmem>>, %arg12: memref<1x32x4xf32, #tpu.memory_space<vmem>>, %arg13: memref<1x4x32xf32, #tpu.memory_space<vmem>>, %arg14: memref<32x32xf32, #tpu.memory_space<vmem>>, %arg15: memref<1x32x4xf32, #tpu.memory_space<vmem>>, %arg16: memref<1x4x32xf32, #tpu.memory_space<vmem>>, %arg17: memref<32x32xf32, #tpu.memory_space<vmem>>, %arg18: memref<1x32x4xf32, #tpu.memory_space<vmem>>, %arg19: memref<1x4x32xf32, #tpu.memory_space<vmem>>, %arg20: memref<4x32xf32, #tpu.memory_space<vmem>>, %arg21: memref<4x1xf32, #tpu.memory_space<vmem>>, %arg22: memref<1x4x256xf32, #tpu.memory_space<vmem>>) attributes {dimension_semantics = [#tpu.dimension_semantics<parallel>, #tpu.dimension_semantics<parallel>], iteration_bounds = array<i64: 2, 1>, scalar_prefetch = 1 : i64, scratch_operands = 0 : i64, tpu.core_type = #tpu.core_type<tc>, window_params = [{transform_indices = @transform_0, window_bounds = array<i64: 1, 256, 4>}, {transform_indices = @transform_1, window_bounds = array<i64: 1, 4, 256>}, {transform_indices = @transform_2, window_bounds = array<i64: 1, 8, 32>}, {pipeline_mode = #tpu.pipeline_mode<synchronous>, transform_indices = @transform_3, window_bounds = array<i64: 4, 32>}, {pipeline_mode = #tpu.pipeline_mode<synchronous>, transform_indices = @transform_4, window_bounds = array<i64: 1, 32>}, {pipeline_mode = #tpu.pipeline_mode<synchronous>, transform_indices = @transform_5, window_bounds = array<i64: 32, 32>}, {transform_indices = @transform_6, window_bounds = array<i64: 1, 32, 4>}, {transform_indices = @transform_7, window_bounds = array<i64: 1, 4, 32>}, {pipeline_mode = #tpu.pipeline_mode<synchronous>, transform_indices = @transform_8, window_bounds = array<i64: 32, 32>}, {transform_indices = @transform_9, window_bounds = array<i64: 1, 32, 4>}, {transform_indices = @transform_10, window_bounds = array<i64: 1, 4, 32>}, {pipeline_mode = #tpu.pipeline_mode<synchronous>, transform_indices = @transform_11, window_bounds = array<i64: 32, 32>}, {transform_indices = @transform_12, window_bounds = array<i64: 1, 32, 4>}, {transform_indices = @transform_13, window_bounds = array<i64: 1, 4, 32>}, {pipeline_mode = #tpu.pipeline_mode<synchronous>, transform_indices = @transform_14, window_bounds = array<i64: 32, 32>}, {transform_indices = @transform_15, window_bounds = array<i64: 1, 32, 4>}, {transform_indices = @transform_16, window_bounds = array<i64: 1, 4, 32>}, {pipeline_mode = #tpu.pipeline_mode<synchronous>, transform_indices = @transform_17, window_bounds = array<i64: 4, 32>}, {pipeline_mode = #tpu.pipeline_mode<synchronous>, transform_indices = @transform_18, window_bounds = array<i64: 4, 1>}, {transform_indices = @transform_19, window_bounds = array<i64: 1, 4, 256>}]} {
    %c0 = arith.constant 0 : index
    %c0_0 = arith.constant 0 : index
    %c0_1 = arith.constant 0 : index
    %0 = vector.load %arg3[%c0, %c0_0, %c0_1] : memref<1x256x4xf32, #tpu.memory_space<vmem>>, vector<1x256x4xf32>
    %1 = vector.shape_cast %0 : vector<1x256x4xf32> to vector<256x4xf32>
    %c0_2 = arith.constant 0 : index
    %c0_3 = arith.constant 0 : index
    %c0_4 = arith.constant 0 : index
    %2 = vector.load %arg5[%c0_2, %c0_3, %c0_4] : memref<1x8x32xf32, #tpu.memory_space<vmem>>, vector<1x8x32xf32>
    %3 = vector.shape_cast %2 : vector<1x8x32xf32> to vector<8x32xf32>
    %c0_5 = arith.constant 0 : index
    %c0_6 = arith.constant 0 : index
    %4 = vector.load %arg6[%c0_5, %c0_6] : memref<4x32xf32, #tpu.memory_space<vmem>>, vector<4x32xf32>
    %cst = arith.constant dense<0.000000e+00> : vector<256x32xf32>
    %5 = tpu.matmul %1, %4, %cst {dimension_numbers = #tpu.dot_dimension_numbers<[1], [0], [0], [1], [0, 0, 1, 1], [], []>} : vector<256x4xf32>, vector<4x32xf32>, vector<256x32xf32> -> vector<256x32xf32>
    %c0_7 = arith.constant 0 : index
    %c0_8 = arith.constant 0 : index
    %6 = vector.load %arg7[%c0_7, %c0_8] : memref<1x32xf32, #tpu.memory_space<vmem>>, vector<1x32xf32>
    %7 = vector.broadcast %6 : vector<1x32xf32> to vector<256x32xf32>
    %8 = arith.addf %5, %7 : vector<256x32xf32>
    %c0_9 = arith.constant 0 : index
    %c0_10 = arith.constant 0 : index
    %9 = vector.load %arg8[%c0_9, %c0_10] : memref<32x32xf32, #tpu.memory_space<vmem>>, vector<32x32xf32>
    %c0_11 = arith.constant 0 : index
    %c0_12 = arith.constant 0 : index
    %c0_13 = arith.constant 0 : index
    %10 = vector.load %arg9[%c0_11, %c0_12, %c0_13] : memref<1x32x4xf32, #tpu.memory_space<vmem>>, vector<1x32x4xf32>
    %11 = vector.shape_cast %10 : vector<1x32x4xf32> to vector<32x4xf32>
    %c0_14 = arith.constant 0 : index
    %c0_15 = arith.constant 0 : index
    %c0_16 = arith.constant 0 : index
    %12 = vector.load %arg10[%c0_14, %c0_15, %c0_16] : memref<1x4x32xf32, #tpu.memory_space<vmem>>, vector<1x4x32xf32>
    %13 = vector.shape_cast %12 : vector<1x4x32xf32> to vector<4x32xf32>
    %cst_17 = arith.constant dense<0.000000e+00> : vector<32x32xf32>
    %14 = tpu.matmul %11, %13, %cst_17 {dimension_numbers = #tpu.dot_dimension_numbers<[1], [0], [0], [1], [0, 0, 1, 1], [], []>} : vector<32x4xf32>, vector<4x32xf32>, vector<32x32xf32> -> vector<32x32xf32>
    %cst_18 = arith.constant 1.000000e+00 : f32
    %15 = vector.broadcast %cst_18 : f32 to vector<32x32xf32>
    %16 = arith.mulf %15, %14 : vector<32x32xf32>
    %17 = arith.addf %9, %16 : vector<32x32xf32>
    %cst_19 = arith.constant dense<0.000000e+00> : vector<256x32xf32>
    %18 = tpu.matmul %8, %17, %cst_19 {dimension_numbers = #tpu.dot_dimension_numbers<[1], [0], [0], [1], [0, 0, 1, 1], [], []>} : vector<256x32xf32>, vector<32x32xf32>, vector<256x32xf32> -> vector<256x32xf32>
    %c0_20 = arith.constant 0 : index
    %c0_21 = arith.constant 0 : index
    %19 = vector.load %arg11[%c0_20, %c0_21] : memref<32x32xf32, #tpu.memory_space<vmem>>, vector<32x32xf32>
    %c0_22 = arith.constant 0 : index
    %c0_23 = arith.constant 0 : index
    %c0_24 = arith.constant 0 : index
    %20 = vector.load %arg12[%c0_22, %c0_23, %c0_24] : memref<1x32x4xf32, #tpu.memory_space<vmem>>, vector<1x32x4xf32>
    %21 = vector.shape_cast %20 : vector<1x32x4xf32> to vector<32x4xf32>
    %c0_25 = arith.constant 0 : index
    %c0_26 = arith.constant 0 : index
    %c0_27 = arith.constant 0 : index
    %22 = vector.load %arg13[%c0_25, %c0_26, %c0_27] : memref<1x4x32xf32, #tpu.memory_space<vmem>>, vector<1x4x32xf32>
    %23 = vector.shape_cast %22 : vector<1x4x32xf32> to vector<4x32xf32>
    %cst_28 = arith.constant dense<0.000000e+00> : vector<32x32xf32>
    %24 = tpu.matmul %21, %23, %cst_28 {dimension_numbers = #tpu.dot_dimension_numbers<[1], [0], [0], [1], [0, 0, 1, 1], [], []>} : vector<32x4xf32>, vector<4x32xf32>, vector<32x32xf32> -> vector<32x32xf32>
    %cst_29 = arith.constant 1.000000e+00 : f32
    %25 = vector.broadcast %cst_29 : f32 to vector<32x32xf32>
    %26 = arith.mulf %25, %24 : vector<32x32xf32>
    %27 = arith.addf %19, %26 : vector<32x32xf32>
    %cst_30 = arith.constant dense<0.000000e+00> : vector<8x32xf32>
    %28 = tpu.matmul %3, %27, %cst_30 {dimension_numbers = #tpu.dot_dimension_numbers<[1], [0], [0], [1], [0, 0, 1, 1], [], []>} : vector<8x32xf32>, vector<32x32xf32>, vector<8x32xf32> -> vector<8x32xf32>
    %c0_31 = arith.constant 0 : index
    %c0_32 = arith.constant 0 : index
    %29 = vector.load %arg14[%c0_31, %c0_32] : memref<32x32xf32, #tpu.memory_space<vmem>>, vector<32x32xf32>
    %c0_33 = arith.constant 0 : index
    %c0_34 = arith.constant 0 : index
    %c0_35 = arith.constant 0 : index
    %30 = vector.load %arg15[%c0_33, %c0_34, %c0_35] : memref<1x32x4xf32, #tpu.memory_space<vmem>>, vector<1x32x4xf32>
    %31 = vector.shape_cast %30 : vector<1x32x4xf32> to vector<32x4xf32>
    %c0_36 = arith.constant 0 : index
    %c0_37 = arith.constant 0 : index
    %c0_38 = arith.constant 0 : index
    %32 = vector.load %arg16[%c0_36, %c0_37, %c0_38] : memref<1x4x32xf32, #tpu.memory_space<vmem>>, vector<1x4x32xf32>
    %33 = vector.shape_cast %32 : vector<1x4x32xf32> to vector<4x32xf32>
    %cst_39 = arith.constant dense<0.000000e+00> : vector<32x32xf32>
    %34 = tpu.matmul %31, %33, %cst_39 {dimension_numbers = #tpu.dot_dimension_numbers<[1], [0], [0], [1], [0, 0, 1, 1], [], []>} : vector<32x4xf32>, vector<4x32xf32>, vector<32x32xf32> -> vector<32x32xf32>
    %cst_40 = arith.constant 1.000000e+00 : f32
    %35 = vector.broadcast %cst_40 : f32 to vector<32x32xf32>
    %36 = arith.mulf %35, %34 : vector<32x32xf32>
    %37 = arith.addf %29, %36 : vector<32x32xf32>
    %cst_41 = arith.constant dense<0.000000e+00> : vector<8x32xf32>
    %38 = tpu.matmul %3, %37, %cst_41 {dimension_numbers = #tpu.dot_dimension_numbers<[1], [0], [0], [1], [0, 0, 1, 1], [], []>} : vector<8x32xf32>, vector<32x32xf32>, vector<8x32xf32> -> vector<8x32xf32>
    %cst_42 = arith.constant dense<0.000000e+00> : vector<256x8xf32>
    %39 = tpu.matmul %18, %28, %cst_42 {dimension_numbers = #tpu.dot_dimension_numbers<[1], [1], [0], [0], [0, 0, 1, 0], [], []>} : vector<256x32xf32>, vector<8x32xf32>, vector<256x8xf32> -> vector<256x8xf32>
    %cst_43 = arith.constant 0.176776692 : f32
    %40 = vector.broadcast %cst_43 : f32 to vector<256x8xf32>
    %41 = arith.mulf %39, %40 : vector<256x8xf32>
    %cst_44 = arith.constant dense<0xFF800000> : vector<256xf32>
    %42 = vector.multi_reduction <maximumf>, %41, %cst_44 [1] : vector<256x8xf32> to vector<256xf32>
    %43 = vector.shape_cast %42 : vector<256xf32> to vector<256x1xf32>
    %44 = vector.broadcast %43 : vector<256x1xf32> to vector<256x8xf32>
    %45 = arith.subf %41, %44 : vector<256x8xf32>
    %46 = math.exp %45 : vector<256x8xf32>
    %cst_45 = arith.constant dense<0.000000e+00> : vector<256xf32>
    %47 = vector.multi_reduction <add>, %46, %cst_45 [1] : vector<256x8xf32> to vector<256xf32>
    %48 = vector.shape_cast %47 : vector<256xf32> to vector<256x1xf32>
    %49 = tpu.reciprocal %48 {approx = true} : vector<256x1xf32> -> vector<256x1xf32>
    %50 = vector.broadcast %49 : vector<256x1xf32> to vector<256x8xf32>
    %51 = arith.mulf %46, %50 : vector<256x8xf32>
    %cst_46 = arith.constant dense<0.000000e+00> : vector<256x32xf32>
    %52 = tpu.matmul %51, %38, %cst_46 {dimension_numbers = #tpu.dot_dimension_numbers<[1], [0], [0], [1], [0, 0, 1, 1], [], []>} : vector<256x8xf32>, vector<8x32xf32>, vector<256x32xf32> -> vector<256x32xf32>
    %c0_47 = arith.constant 0 : index
    %c0_48 = arith.constant 0 : index
    %53 = vector.load %arg17[%c0_47, %c0_48] : memref<32x32xf32, #tpu.memory_space<vmem>>, vector<32x32xf32>
    %c0_49 = arith.constant 0 : index
    %c0_50 = arith.constant 0 : index
    %c0_51 = arith.constant 0 : index
    %54 = vector.load %arg18[%c0_49, %c0_50, %c0_51] : memref<1x32x4xf32, #tpu.memory_space<vmem>>, vector<1x32x4xf32>
    %55 = vector.shape_cast %54 : vector<1x32x4xf32> to vector<32x4xf32>
    %c0_52 = arith.constant 0 : index
    %c0_53 = arith.constant 0 : index
    %c0_54 = arith.constant 0 : index
    %56 = vector.load %arg19[%c0_52, %c0_53, %c0_54] : memref<1x4x32xf32, #tpu.memory_space<vmem>>, vector<1x4x32xf32>
    %57 = vector.shape_cast %56 : vector<1x4x32xf32> to vector<4x32xf32>
    %cst_55 = arith.constant dense<0.000000e+00> : vector<32x32xf32>
    %58 = tpu.matmul %55, %57, %cst_55 {dimension_numbers = #tpu.dot_dimension_numbers<[1], [0], [0], [1], [0, 0, 1, 1], [], []>} : vector<32x4xf32>, vector<4x32xf32>, vector<32x32xf32> -> vector<32x32xf32>
    %cst_56 = arith.constant 1.000000e+00 : f32
    %59 = vector.broadcast %cst_56 : f32 to vector<32x32xf32>
    %60 = arith.mulf %59, %58 : vector<32x32xf32>
    %61 = arith.addf %53, %60 : vector<32x32xf32>
    %cst_57 = arith.constant dense<0.000000e+00> : vector<256x32xf32>
    %62 = tpu.matmul %52, %61, %cst_57 {dimension_numbers = #tpu.dot_dimension_numbers<[1], [0], [0], [1], [0, 0, 1, 1], [], []>} : vector<256x32xf32>, vector<32x32xf32>, vector<256x32xf32> -> vector<256x32xf32>
    %c0_58 = arith.constant 0 : index
    %c0_59 = arith.constant 0 : index
    %63 = vector.load %arg20[%c0_58, %c0_59] : memref<4x32xf32, #tpu.memory_space<vmem>>, vector<4x32xf32>
    %cst_60 = arith.constant dense<0.000000e+00> : vector<4x256xf32>
    %64 = tpu.matmul %63, %62, %cst_60 {dimension_numbers = #tpu.dot_dimension_numbers<[1], [1], [0], [0], [0, 0, 1, 0], [], []>} : vector<4x32xf32>, vector<256x32xf32>, vector<4x256xf32> -> vector<4x256xf32>
    %c0_61 = arith.constant 0 : index
    %c0_62 = arith.constant 0 : index
    %65 = vector.load %arg21[%c0_61, %c0_62] : memref<4x1xf32, #tpu.memory_space<vmem>>, vector<4x1xf32>
    %66 = vector.broadcast %65 : vector<4x1xf32> to vector<4x256xf32>
    %67 = arith.addf %64, %66 : vector<4x256xf32>
    %c0_63 = arith.constant 0 : index
    %c0_64 = arith.constant 0 : index
    %c0_65 = arith.constant 0 : index
    %68 = vector.load %arg4[%c0_63, %c0_64, %c0_65] : memref<1x4x256xf32, #tpu.memory_space<vmem>>, vector<1x4x256xf32>
    %69 = vector.shape_cast %68 : vector<1x4x256xf32> to vector<4x256xf32>
    %70 = arith.addf %67, %69 : vector<4x256xf32>
    %c0_66 = arith.constant 0 : index
    %c0_67 = arith.constant 0 : index
    %c0_68 = arith.constant 0 : index
    %71 = vector.load %arg22[%c0_66, %c0_67, %c0_68] : memref<1x4x256xf32, #tpu.memory_space<vmem>>, vector<1x4x256xf32>
    %72 = vector.shape_cast %71 : vector<1x4x256xf32> to vector<4x256xf32>
    %73 = vector.shape_cast %70 : vector<4x256xf32> to vector<1x4x256xf32>
    tpu.vector_store %arg22[%c0_66, %c0_67, %c0_68], %73 {strides = array<i32>} : memref<1x4x256xf32, #tpu.memory_space<vmem>>, vector<1x4x256xf32>,
    return
  }
  func.func @transform_0(%arg0: i32, %arg1: i32, %arg2: memref<1xi32, #tpu.memory_space<smem>>) -> (i32, i32, i32) {
    %c0_i32 = arith.constant 0 : i32
    %c0_i32_0 = arith.constant 0 : i32
    return %arg0, %arg1, %c0_i32 : i32, i32, i32
  }
  func.func @transform_1(%arg0: i32, %arg1: i32, %arg2: memref<1xi32, #tpu.memory_space<smem>>) -> (i32, i32, i32) {
    %c0_i32 = arith.constant 0 : i32
    %c0_i32_0 = arith.constant 0 : i32
    return %arg0, %c0_i32, %arg1 : i32, i32, i32
  }
  func.func @transform_2(%arg0: i32, %arg1: i32, %arg2: memref<1xi32, #tpu.memory_space<smem>>) -> (i32, i32, i32) {
    %c0_i32 = arith.constant 0 : i32
    %c0_i32_0 = arith.constant 0 : i32
    %c0_i32_1 = arith.constant 0 : i32
    return %arg0, %c0_i32, %c0_i32_0 : i32, i32, i32
  }
  func.func @transform_3(%arg0: i32, %arg1: i32, %arg2: memref<1xi32, #tpu.memory_space<smem>>) -> (i32, i32) {
    %c0_i32 = arith.constant 0 : i32
    %c0_i32_0 = arith.constant 0 : i32
    %c0_i32_1 = arith.constant 0 : i32
    return %c0_i32, %c0_i32_0 : i32, i32
  }
  func.func @transform_4(%arg0: i32, %arg1: i32, %arg2: memref<1xi32, #tpu.memory_space<smem>>) -> (i32, i32) {
    %c0_i32 = arith.constant 0 : i32
    %c0_i32_0 = arith.constant 0 : i32
    %c0_i32_1 = arith.constant 0 : i32
    return %c0_i32, %c0_i32_0 : i32, i32
  }
  func.func @transform_5(%arg0: i32, %arg1: i32, %arg2: memref<1xi32, #tpu.memory_space<smem>>) -> (i32, i32) {
    %c0_i32 = arith.constant 0 : i32
    %c0_i32_0 = arith.constant 0 : i32
    %c0_i32_1 = arith.constant 0 : i32
    return %c0_i32, %c0_i32_0 : i32, i32
  }
  func.func @transform_6(%arg0: i32, %arg1: i32, %arg2: memref<1xi32, #tpu.memory_space<smem>>) -> (i32, i32, i32) {
    %c0 = arith.constant 0 : index
    %0 = memref.load %arg2[%c0] : memref<1xi32, #tpu.memory_space<smem>>
    %c0_i32 = arith.constant 0 : i32
    %c0_i32_0 = arith.constant 0 : i32
    %c0_i32_1 = arith.constant 0 : i32
    return %0, %c0_i32, %c0_i32_0 : i32, i32, i32
  }
  func.func @transform_7(%arg0: i32, %arg1: i32, %arg2: memref<1xi32, #tpu.memory_space<smem>>) -> (i32, i32, i32) {
    %c0 = arith.constant 0 : index
    %0 = memref.load %arg2[%c0] : memref<1xi32, #tpu.memory_space<smem>>
    %c0_i32 = arith.constant 0 : i32
    %c0_i32_0 = arith.constant 0 : i32
    %c0_i32_1 = arith.constant 0 : i32
    return %0, %c0_i32, %c0_i32_0 : i32, i32, i32
  }
  func.func @transform_8(%arg0: i32, %arg1: i32, %arg2: memref<1xi32, #tpu.memory_space<smem>>) -> (i32, i32) {
    %c0_i32 = arith.constant 0 : i32
    %c0_i32_0 = arith.constant 0 : i32
    %c0_i32_1 = arith.constant 0 : i32
    return %c0_i32, %c0_i32_0 : i32, i32
  }
  func.func @transform_9(%arg0: i32, %arg1: i32, %arg2: memref<1xi32, #tpu.memory_space<smem>>) -> (i32, i32, i32) {
    %c0 = arith.constant 0 : index
    %0 = memref.load %arg2[%c0] : memref<1xi32, #tpu.memory_space<smem>>
    %c0_i32 = arith.constant 0 : i32
    %c0_i32_0 = arith.constant 0 : i32
    %c0_i32_1 = arith.constant 0 : i32
    return %0, %c0_i32, %c0_i32_0 : i32, i32, i32
  }
  func.func @transform_10(%arg0: i32, %arg1: i32, %arg2: memref<1xi32, #tpu.memory_space<smem>>) -> (i32, i32, i32) {
    %c0 = arith.constant 0 : index
    %0 = memref.load %arg2[%c0] : memref<1xi32, #tpu.memory_space<smem>>
    %c0_i32 = arith.constant 0 : i32
    %c0_i32_0 = arith.constant 0 : i32
    %c0_i32_1 = arith.constant 0 : i32
    return %0, %c0_i32, %c0_i32_0 : i32, i32, i32
  }
  func.func @transform_11(%arg0: i32, %arg1: i32, %arg2: memref<1xi32, #tpu.memory_space<smem>>) -> (i32, i32) {
    %c0_i32 = arith.constant 0 : i32
    %c0_i32_0 = arith.constant 0 : i32
    %c0_i32_1 = arith.constant 0 : i32
    return %c0_i32, %c0_i32_0 : i32, i32
  }
  func.func @transform_12(%arg0: i32, %arg1: i32, %arg2: memref<1xi32, #tpu.memory_space<smem>>) -> (i32, i32, i32) {
    %c0 = arith.constant 0 : index
    %0 = memref.load %arg2[%c0] : memref<1xi32, #tpu.memory_space<smem>>
    %c0_i32 = arith.constant 0 : i32
    %c0_i32_0 = arith.constant 0 : i32
    %c0_i32_1 = arith.constant 0 : i32
    return %0, %c0_i32, %c0_i32_0 : i32, i32, i32
  }
  func.func @transform_13(%arg0: i32, %arg1: i32, %arg2: memref<1xi32, #tpu.memory_space<smem>>) -> (i32, i32, i32) {
    %c0 = arith.constant 0 : index
    %0 = memref.load %arg2[%c0] : memref<1xi32, #tpu.memory_space<smem>>
    %c0_i32 = arith.constant 0 : i32
    %c0_i32_0 = arith.constant 0 : i32
    %c0_i32_1 = arith.constant 0 : i32
    return %0, %c0_i32, %c0_i32_0 : i32, i32, i32
  }
  func.func @transform_14(%arg0: i32, %arg1: i32, %arg2: memref<1xi32, #tpu.memory_space<smem>>) -> (i32, i32) {
    %c0_i32 = arith.constant 0 : i32
    %c0_i32_0 = arith.constant 0 : i32
    %c0_i32_1 = arith.constant 0 : i32
    return %c0_i32, %c0_i32_0 : i32, i32
  }
  func.func @transform_15(%arg0: i32, %arg1: i32, %arg2: memref<1xi32, #tpu.memory_space<smem>>) -> (i32, i32, i32) {
    %c0 = arith.constant 0 : index
    %0 = memref.load %arg2[%c0] : memref<1xi32, #tpu.memory_space<smem>>
    %c0_i32 = arith.constant 0 : i32
    %c0_i32_0 = arith.constant 0 : i32
    %c0_i32_1 = arith.constant 0 : i32
    return %0, %c0_i32, %c0_i32_0 : i32, i32, i32
  }
  func.func @transform_16(%arg0: i32, %arg1: i32, %arg2: memref<1xi32, #tpu.memory_space<smem>>) -> (i32, i32, i32) {
    %c0 = arith.constant 0 : index
    %0 = memref.load %arg2[%c0] : memref<1xi32, #tpu.memory_space<smem>>
    %c0_i32 = arith.constant 0 : i32
    %c0_i32_0 = arith.constant 0 : i32
    %c0_i32_1 = arith.constant 0 : i32
    return %0, %c0_i32, %c0_i32_0 : i32, i32, i32
  }
  func.func @transform_17(%arg0: i32, %arg1: i32, %arg2: memref<1xi32, #tpu.memory_space<smem>>) -> (i32, i32) {
    %c0_i32 = arith.constant 0 : i32
    %c0_i32_0 = arith.constant 0 : i32
    %c0_i32_1 = arith.constant 0 : i32
    return %c0_i32, %c0_i32_0 : i32, i32
  }
  func.func @transform_18(%arg0: i32, %arg1: i32, %arg2: memref<1xi32, #tpu.memory_space<smem>>) -> (i32, i32) {
    %c0_i32 = arith.constant 0 : i32
    %c0_i32_0 = arith.constant 0 : i32
    %c0_i32_1 = arith.constant 0 : i32
    return %c0_i32, %c0_i32_0 : i32, i32
  }
  func.func @transform_19(%arg0: i32, %arg1: i32, %arg2: memref<1xi32, #tpu.memory_space<smem>>) -> (i32, i32, i32) {
    %c0_i32 = arith.constant 0 : i32
    %c0_i32_0 = arith.constant 0 : i32
    return %arg0, %c0_i32, %arg1 : i32, i32, i32
  }
}

</mosaic_0001>

<llo_original>
// kernel: unet_lora_mode_forward.1
$region0: #{unet_lora_mode_forward.1}
  #allocation0 [shape = 'u32[]', space=smem, size = 0x4, offset = 0x4, fixed_abs, tag = 'smem constant byte address 0x4 - core index']
  #allocation1 [shape = 'u32[144,128]{1,0:T(1,128)}', space=vmem, size = 0x12000, scoped, tag = 'internal scratch']
  #allocation2 [shape = 's32[1]{0}', space=sflag, size = 0x4, scoped, tag = 'scoped memory for unet_lora_mode_forward.1']
  #allocation3 [shape = 's32[1]{0:T(128)S(6)}', space=smem, size = 0x200, scoped, tag = 'prefetched SMEM operand 0']
  %s0 = inlined_call_operand.<no memory space> [shape: s32[1], index: 0, kind: input, shape index: {}]
  %s1 = inlined_call_operand.vmem [shape: f32[2,256,4], index: 1, kind: input, shape index: {}]
  %s2 = inlined_call_operand.vmem [shape: f32[2,4,256], index: 2, kind: input, shape index: {}]
  %s3 = inlined_call_operand.vmem [shape: f32[2,8,32], index: 3, kind: input, shape index: {}]
  %s4 = inlined_call_operand.vmem [shape: f32[4,32], index: 4, kind: input, shape index: {}]
  %s5 = inlined_call_operand.vmem [shape: f32[1,32], index: 5, kind: input, shape index: {}]
  %s6 = inlined_call_operand.vmem [shape: f32[32,32], index: 6, kind: input, shape index: {}]
  %s7 = inlined_call_operand.vmem [shape: f32[5,32,4], index: 7, kind: input, shape index: {}]
  %s8 = inlined_call_operand.vmem [shape: f32[5,4,32], index: 8, kind: input, shape index: {}]
  %s9 = inlined_call_operand.vmem [shape: f32[32,32], index: 9, kind: input, shape index: {}]
  %s10 = inlined_call_operand.vmem [shape: f32[5,32,4], index: 10, kind: input, shape index: {}]
  %s11 = inlined_call_operand.vmem [shape: f32[5,4,32], index: 11, kind: input, shape index: {}]
  %s12 = inlined_call_operand.vmem [shape: f32[32,32], index: 12, kind: input, shape index: {}]
  %s13 = inlined_call_operand.vmem [shape: f32[5,32,4], index: 13, kind: input, shape index: {}]
  %s14 = inlined_call_operand.vmem [shape: f32[5,4,32], index: 14, kind: input, shape index: {}]
  %s15 = inlined_call_operand.vmem [shape: f32[32,32], index: 15, kind: input, shape index: {}]
  %s16 = inlined_call_operand.vmem [shape: f32[5,32,4], index: 16, kind: input, shape index: {}]
  %s17 = inlined_call_operand.vmem [shape: f32[5,4,32], index: 17, kind: input, shape index: {}]
  %s18 = inlined_call_operand.vmem [shape: f32[4,32], index: 18, kind: input, shape index: {}]
  %s19 = inlined_call_operand.vmem [shape: f32[4,1], index: 19, kind: input, shape index: {}]
  %s20 = inlined_call_operand.vmem [shape: f32[2,4,256], index: 20, kind: output, shape index: {}]
  %s21 = sld [smem:[#allocation0]]
  $region109: #{unet_lora_mode_forward.1} parent=0
    _
  %s23 = ssub.s32 1, %s21
  %s24 = scalar_select 0, %s23, %s21
  %25 = sst [smem:[#allocation3]] %s0
  loop: start=0, step=1, limit=4
  $region2: #{unet_lora_mode_forward.1} parent=0 // loop_pre_header
    _
  $region3: #{unet_lora_mode_forward.1} parent=0 // loop_header
    %s27 = sphi 0, %s31
    %p28 = scmp.ge.s32.totalorder %s27, 4
    %s34 = sphi 0, %s46
    %s35 = sphi 0, %s42
    %s36 = sphi 0, %s34
    %s37 = sphi 0, %s35
    %s38 = sphi 0, %s36
    %s39 = sphi 0, %s37
    %s51 = sphi 0, %s53
    %s54 = sphi 0, %s51
    %s55 = sphi 0, %s54
    %s71 = sphi 0, %s55
    %s79 = sphi 0, %s81
    %s82 = sphi 0, %s79
    %s83 = sphi 0, %s82
    %s99 = sphi 0, %s83
    %s105 = sphi 0, %s107
    %s108 = sphi 0, %s105
    %s109 = sphi 0, %s108
    %s125 = sphi 0, %s109
    %s129 = sphi 0, %s129
    %s131 = sphi 0, %s129
    %s132 = sphi 0, %s131
    %s146 = sphi 0, %s132
    %s150 = sphi 0, %s150
    %s152 = sphi 0, %s150
    %s153 = sphi 0, %s152
    %s167 = sphi 0, %s153
    %s171 = sphi 0, %s171
    %s173 = sphi 0, %s171
    %s174 = sphi 0, %s173
    %s188 = sphi 0, %s174
    %s196 = sphi 0, %s198
    %s199 = sphi 0, %s196
    %s200 = sphi 0, %s199
    %s216 = sphi 0, %s200
    %s224 = sphi 0, %s226
    %s227 = sphi 0, %s224
    %s228 = sphi 0, %s227
    %s244 = sphi 0, %s228
    %s248 = sphi 0, %s248
    %s250 = sphi 0, %s248
    %s251 = sphi 0, %s250
    %s265 = sphi 0, %s251
    %s273 = sphi 0, %s275
    %s276 = sphi 0, %s273
    %s277 = sphi 0, %s276
    %s293 = sphi 0, %s277
    %s301 = sphi 0, %s303
    %s304 = sphi 0, %s301
    %s305 = sphi 0, %s304
    %s321 = sphi 0, %s305
    %s325 = sphi 0, %s325
    %s327 = sphi 0, %s325
    %s328 = sphi 0, %s327
    %s342 = sphi 0, %s328
    %s350 = sphi 0, %s352
    %s353 = sphi 0, %s350
    %s354 = sphi 0, %s353
    %s370 = sphi 0, %s354
    %s378 = sphi 0, %s380
    %s381 = sphi 0, %s378
    %s382 = sphi 0, %s381
    %s398 = sphi 0, %s382
    %s402 = sphi 0, %s402
    %s404 = sphi 0, %s402
    %s405 = sphi 0, %s404
    %s419 = sphi 0, %s405
    %s427 = sphi 0, %s429
    %s430 = sphi 0, %s427
    %s431 = sphi 0, %s430
    %s447 = sphi 0, %s431
    %s455 = sphi 0, %s457
    %s458 = sphi 0, %s455
    %s459 = sphi 0, %s458
    %s475 = sphi 0, %s459
    %s479 = sphi 0, %s479
    %s481 = sphi 0, %s479
    %s482 = sphi 0, %s481
    %s496 = sphi 0, %s482
    %s500 = sphi 0, %s500
    %s502 = sphi 0, %s500
    %s503 = sphi 0, %s502
    %s517 = sphi 0, %s503
    %s525 = sphi 0, %s527
    %s528 = sphi 0, %s525
    %s529 = sphi 0, %s528
    %s545 = sphi 0, %s529
  $region4: #{unet_lora_mode_forward.1} parent=0 // loop_header_branch
    %30 = sbr.rel (%p28) target = $region8
  $region5: #{unet_lora_mode_forward.1} parent=0 // loop_body
    %s32 = ssub.s32 %s27, 1
    %s33 = ssub.s32 %s27, 2
    %s40 = sadd.s32 1, %s35
    %p41 = scmp.ge.s32.totalorder %s40, 1
    %s42 = scalar_select %p41, 0, %s40
    %s43 = sadd.s32 1, %s34
    %s44 = scalar_select %p41, %s43, %s34
    %p45 = scmp.ge.s32.totalorder %s44, 2
    %s46 = scalar_select %p45, 0, %s44
    %s47 = ssub.s32 %s34, %s46
    %s48 = ssub.s32 %s35, %s42
    %s49 = sor.u32 %s47, %s48
    %p50 = scmp.eq.s32.totalorder %s49, 0
    %s52 = sadd.s32 %s51, 1
    %s53 = scalar_select %p50, %s51, %s52
    %p56 = pneg %p50
    %p57 = scmp.eq.s32.totalorder %s27, 1
    %p58 = por %p56, %p57
    %p59 = scmp.ne.s32.totalorder %s51, %s54
    %p60 = scmp.eq.s32.totalorder %s27, 0
    %p61 = por %p59, %p60
    %p62 = scmp.ne.s32.totalorder %s51, %s54
    %p63 = scmp.eq.s32.totalorder %s32, 1
    %p64 = por %p62, %p63
    %p65 = scmp.ne.s32.totalorder %s54, %s55
    %p66 = scmp.eq.s32.totalorder %s32, 0
    %p67 = por %p65, %p66
    %p68 = scmp.ne.s32.totalorder %s54, %s55
    %p69 = scmp.eq.s32.totalorder %s33, 1
    %p70 = por %p68, %p69
    %p72 = scmp.ne.s32.totalorder %s55, %s71
    %p73 = scmp.eq.s32.totalorder %s33, 0
    %p74 = por %p72, %p73
    %s75 = ssub.s32 %s34, %s46
    %s76 = ssub.s32 %s35, %s42
    %s77 = sor.u32 %s75, %s76
    %p78 = scmp.eq.s32.totalorder %s77, 0
    %s80 = sadd.s32 %s79, 1
    %s81 = scalar_select %p78, %s79, %s80
    %p84 = pneg %p78
    %p85 = scmp.eq.s32.totalorder %s27, 1
    %p86 = por %p84, %p85
    %p87 = scmp.ne.s32.totalorder %s79, %s82
    %p88 = scmp.eq.s32.totalorder %s27, 0
    %p89 = por %p87, %p88
    %p90 = scmp.ne.s32.totalorder %s79, %s82
    %p91 = scmp.eq.s32.totalorder %s32, 1
    %p92 = por %p90, %p91
    %p93 = scmp.ne.s32.totalorder %s82, %s83
    %p94 = scmp.eq.s32.totalorder %s32, 0
    %p95 = por %p93, %p94
    %p96 = scmp.ne.s32.totalorder %s82, %s83
    %p97 = scmp.eq.s32.totalorder %s33, 1
    %p98 = por %p96, %p97
    %p100 = scmp.ne.s32.totalorder %s83, %s99
    %p101 = scmp.eq.s32.totalorder %s33, 0
    %p102 = por %p100, %p101
    %s103 = ssub.s32 %s34, %s46
    %p104 = scmp.eq.s32.totalorder %s103, 0
    %s106 = sadd.s32 %s105, 1
    %s107 = scalar_select %p104, %s105, %s106
    %p110 = pneg %p104
    %p111 = scmp.eq.s32.totalorder %s27, 1
    %p112 = por %p110, %p111
    %p113 = scmp.ne.s32.totalorder %s105, %s108
    %p114 = scmp.eq.s32.totalorder %s27, 0
    %p115 = por %p113, %p114
    %p116 = scmp.ne.s32.totalorder %s105, %s108
    %p117 = scmp.eq.s32.totalorder %s32, 1
    %p118 = por %p116, %p117
    %p119 = scmp.ne.s32.totalorder %s108, %s109
    %p120 = scmp.eq.s32.totalorder %s32, 0
    %p121 = por %p119, %p120
    %p122 = scmp.ne.s32.totalorder %s108, %s109
    %p123 = scmp.eq.s32.totalorder %s33, 1
    %p124 = por %p122, %p123
    %p126 = scmp.ne.s32.totalorder %s109, %s125
    %p127 = scmp.eq.s32.totalorder %s33, 0
    %p128 = por %p126, %p127
    %s130 = sadd.s32 %s129, 1
    %p133 = scmp.eq.s32.totalorder %s27, 1
    %p134 = scmp.ne.s32.totalorder %s129, %s131
    %p135 = scmp.eq.s32.totalorder %s27, 0
    %p136 = por %p134, %p135
    %p137 = scmp.ne.s32.totalorder %s129, %s131
    %p138 = scmp.eq.s32.totalorder %s32, 1
    %p139 = por %p137, %p138
    %p140 = scmp.ne.s32.totalorder %s131, %s132
    %p141 = scmp.eq.s32.totalorder %s32, 0
    %p142 = por %p140, %p141
    %p143 = scmp.ne.s32.totalorder %s131, %s132
    %p144 = scmp.eq.s32.totalorder %s33, 1
    %p145 = por %p143, %p144
    %p147 = scmp.ne.s32.totalorder %s132, %s146
    %p148 = scmp.eq.s32.totalorder %s33, 0
    %p149 = por %p147, %p148
    %s151 = sadd.s32 %s150, 1
    %p154 = scmp.eq.s32.totalorder %s27, 1
    %p155 = scmp.ne.s32.totalorder %s150, %s152
    %p156 = scmp.eq.s32.totalorder %s27, 0
    %p157 = por %p155, %p156
    %p158 = scmp.ne.s32.totalorder %s150, %s152
    %p159 = scmp.eq.s32.totalorder %s32, 1
    %p160 = por %p158, %p159
    %p161 = scmp.ne.s32.totalorder %s152, %s153
    %p162 = scmp.eq.s32.totalorder %s32, 0
    %p163 = por %p161, %p162
    %p164 = scmp.ne.s32.totalorder %s152, %s153
    %p165 = scmp.eq.s32.totalorder %s33, 1
    %p166 = por %p164, %p165
    %p168 = scmp.ne.s32.totalorder %s153, %s167
    %p169 = scmp.eq.s32.totalorder %s33, 0
    %p170 = por %p168, %p169
    %s172 = sadd.s32 %s171, 1
    %p175 = scmp.eq.s32.totalorder %s27, 1
    %p176 = scmp.ne.s32.totalorder %s171, %s173
    %p177 = scmp.eq.s32.totalorder %s27, 0
    %p178 = por %p176, %p177
    %p179 = scmp.ne.s32.totalorder %s171, %s173
    %p180 = scmp.eq.s32.totalorder %s32, 1
    %p181 = por %p179, %p180
    %p182 = scmp.ne.s32.totalorder %s173, %s174
    %p183 = scmp.eq.s32.totalorder %s32, 0
    %p184 = por %p182, %p183
    %p185 = scmp.ne.s32.totalorder %s173, %s174
    %p186 = scmp.eq.s32.totalorder %s33, 1
    %p187 = por %p185, %p186
    %p189 = scmp.ne.s32.totalorder %s174, %s188
    %p190 = scmp.eq.s32.totalorder %s33, 0
    %p191 = por %p189, %p190
    %s192 = sld [smem:[#allocation3]]
    %s193 = sld [smem:[#allocation3]]
    %s194 = ssub.s32 %s192, %s193
    %p195 = scmp.eq.s32.totalorder %s194, 0
    %s197 = sadd.s32 %s196, 1
    %s198 = scalar_select %p195, %s196, %s197
    %p201 = pneg %p195
    %p202 = scmp.eq.s32.totalorder %s27, 1
    %p203 = por %p201, %p202
    %p204 = scmp.ne.s32.totalorder %s196, %s199
    %p205 = scmp.eq.s32.totalorder %s27, 0
    %p206 = por %p204, %p205
    %p207 = scmp.ne.s32.totalorder %s196, %s199
    %p208 = scmp.eq.s32.totalorder %s32, 1
    %p209 = por %p207, %p208
    %p210 = scmp.ne.s32.totalorder %s199, %s200
    %p211 = scmp.eq.s32.totalorder %s32, 0
    %p212 = por %p210, %p211
    %p213 = scmp.ne.s32.totalorder %s199, %s200
    %p214 = scmp.eq.s32.totalorder %s33, 1
    %p215 = por %p213, %p214
    %p217 = scmp.ne.s32.totalorder %s200, %s216
    %p218 = scmp.eq.s32.totalorder %s33, 0
    %p219 = por %p217, %p218
    %s220 = sld [smem:[#allocation3]]
    %s221 = sld [smem:[#allocation3]]
    %s222 = ssub.s32 %s220, %s221
    %p223 = scmp.eq.s32.totalorder %s222, 0
    %s225 = sadd.s32 %s224, 1
    %s226 = scalar_select %p223, %s224, %s225
    %p229 = pneg %p223
    %p230 = scmp.eq.s32.totalorder %s27, 1
    %p231 = por %p229, %p230
    %p232 = scmp.ne.s32.totalorder %s224, %s227
    %p233 = scmp.eq.s32.totalorder %s27, 0
    %p234 = por %p232, %p233
    %p235 = scmp.ne.s32.totalorder %s224, %s227
    %p236 = scmp.eq.s32.totalorder %s32, 1
    %p237 = por %p235, %p236
    %p238 = scmp.ne.s32.totalorder %s227, %s228
    %p239 = scmp.eq.s32.totalorder %s32, 0
    %p240 = por %p238, %p239
    %p241 = scmp.ne.s32.totalorder %s227, %s228
    %p242 = scmp.eq.s32.totalorder %s33, 1
    %p243 = por %p241, %p242
    %p245 = scmp.ne.s32.totalorder %s228, %s244
    %p246 = scmp.eq.s32.totalorder %s33, 0
    %p247 = por %p245, %p246
    %s249 = sadd.s32 %s248, 1
    %p252 = scmp.eq.s32.totalorder %s27, 1
    %p253 = scmp.ne.s32.totalorder %s248, %s250
    %p254 = scmp.eq.s32.totalorder %s27, 0
    %p255 = por %p253, %p254
    %p256 = scmp.ne.s32.totalorder %s248, %s250
    %p257 = scmp.eq.s32.totalorder %s32, 1
    %p258 = por %p256, %p257
    %p259 = scmp.ne.s32.totalorder %s250, %s251
    %p260 = scmp.eq.s32.totalorder %s32, 0
    %p261 = por %p259, %p260
    %p262 = scmp.ne.s32.totalorder %s250, %s251
    %p263 = scmp.eq.s32.totalorder %s33, 1
    %p264 = por %p262, %p263
    %p266 = scmp.ne.s32.totalorder %s251, %s265
    %p267 = scmp.eq.s32.totalorder %s33, 0
    %p268 = por %p266, %p267
    %s269 = sld [smem:[#allocation3]]
    %s270 = sld [smem:[#allocation3]]
    %s271 = ssub.s32 %s269, %s270
    %p272 = scmp.eq.s32.totalorder %s271, 0
    %s274 = sadd.s32 %s273, 1
    %s275 = scalar_select %p272, %s273, %s274
    %p278 = pneg %p272
    %p279 = scmp.eq.s32.totalorder %s27, 1
    %p280 = por %p278, %p279
    %p281 = scmp.ne.s32.totalorder %s273, %s276
    %p282 = scmp.eq.s32.totalorder %s27, 0
    %p283 = por %p281, %p282
    %p284 = scmp.ne.s32.totalorder %s273, %s276
    %p285 = scmp.eq.s32.totalorder %s32, 1
    %p286 = por %p284, %p285
    %p287 = scmp.ne.s32.totalorder %s276, %s277
    %p288 = scmp.eq.s32.totalorder %s32, 0
    %p289 = por %p287, %p288
    %p290 = scmp.ne.s32.totalorder %s276, %s277
    %p291 = scmp.eq.s32.totalorder %s33, 1
    %p292 = por %p290, %p291
    %p294 = scmp.ne.s32.totalorder %s277, %s293
    %p295 = scmp.eq.s32.totalorder %s33, 0
    %p296 = por %p294, %p295
    %s297 = sld [smem:[#allocation3]]
    %s298 = sld [smem:[#allocation3]]
    %s299 = ssub.s32 %s297, %s298
    %p300 = scmp.eq.s32.totalorder %s299, 0
    %s302 = sadd.s32 %s301, 1
    %s303 = scalar_select %p300, %s301, %s302
    %p306 = pneg %p300
    %p307 = scmp.eq.s32.totalorder %s27, 1
    %p308 = por %p306, %p307
    %p309 = scmp.ne.s32.totalorder %s301, %s304
    %p310 = scmp.eq.s32.totalorder %s27, 0
    %p311 = por %p309, %p310
    %p312 = scmp.ne.s32.totalorder %s301, %s304
    %p313 = scmp.eq.s32.totalorder %s32, 1
    %p314 = por %p312, %p313
    %p315 = scmp.ne.s32.totalorder %s304, %s305
    %p316 = scmp.eq.s32.totalorder %s32, 0
    %p317 = por %p315, %p316
    %p318 = scmp.ne.s32.totalorder %s304, %s305
    %p319 = scmp.eq.s32.totalorder %s33, 1
    %p320 = por %p318, %p319
    %p322 = scmp.ne.s32.totalorder %s305, %s321
    %p323 = scmp.eq.s32.totalorder %s33, 0
    %p324 = por %p322, %p323
    %s326 = sadd.s32 %s325, 1
    %p329 = scmp.eq.s32.totalorder %s27, 1
    %p330 = scmp.ne.s32.totalorder %s325, %s327
    %p331 = scmp.eq.s32.totalorder %s27, 0
    %p332 = por %p330, %p331
    %p333 = scmp.ne.s32.totalorder %s325, %s327
    %p334 = scmp.eq.s32.totalorder %s32, 1
    %p335 = por %p333, %p334
    %p336 = scmp.ne.s32.totalorder %s327, %s328
    %p337 = scmp.eq.s32.totalorder %s32, 0
    %p338 = por %p336, %p337
    %p339 = scmp.ne.s32.totalorder %s327, %s328
    %p340 = scmp.eq.s32.totalorder %s33, 1
    %p341 = por %p339, %p340
    %p343 = scmp.ne.s32.totalorder %s328, %s342
    %p344 = scmp.eq.s32.totalorder %s33, 0
    %p345 = por %p343, %p344
    %s346 = sld [smem:[#allocation3]]
    %s347 = sld [smem:[#allocation3]]
    %s348 = ssub.s32 %s346, %s347
    %p349 = scmp.eq.s32.totalorder %s348, 0
    %s351 = sadd.s32 %s350, 1
    %s352 = scalar_select %p349, %s350, %s351
    %p355 = pneg %p349
    %p356 = scmp.eq.s32.totalorder %s27, 1
    %p357 = por %p355, %p356
    %p358 = scmp.ne.s32.totalorder %s350, %s353
    %p359 = scmp.eq.s32.totalorder %s27, 0
    %p360 = por %p358, %p359
    %p361 = scmp.ne.s32.totalorder %s350, %s353
    %p362 = scmp.eq.s32.totalorder %s32, 1
    %p363 = por %p361, %p362
    %p364 = scmp.ne.s32.totalorder %s353, %s354
    %p365 = scmp.eq.s32.totalorder %s32, 0
    %p366 = por %p364, %p365
    %p367 = scmp.ne.s32.totalorder %s353, %s354
    %p368 = scmp.eq.s32.totalorder %s33, 1
    %p369 = por %p367, %p368
    %p371 = scmp.ne.s32.totalorder %s354, %s370
    %p372 = scmp.eq.s32.totalorder %s33, 0
    %p373 = por %p371, %p372
    %s374 = sld [smem:[#allocation3]]
    %s375 = sld [smem:[#allocation3]]
    %s376 = ssub.s32 %s374, %s375
    %p377 = scmp.eq.s32.totalorder %s376, 0
    %s379 = sadd.s32 %s378, 1
    %s380 = scalar_select %p377, %s378, %s379
    %p383 = pneg %p377
    %p384 = scmp.eq.s32.totalorder %s27, 1
    %p385 = por %p383, %p384
    %p386 = scmp.ne.s32.totalorder %s378, %s381
    %p387 = scmp.eq.s32.totalorder %s27, 0
    %p388 = por %p386, %p387
    %p389 = scmp.ne.s32.totalorder %s378, %s381
    %p390 = scmp.eq.s32.totalorder %s32, 1
    %p391 = por %p389, %p390
    %p392 = scmp.ne.s32.totalorder %s381, %s382
    %p393 = scmp.eq.s32.totalorder %s32, 0
    %p394 = por %p392, %p393
    %p395 = scmp.ne.s32.totalorder %s381, %s382
    %p396 = scmp.eq.s32.totalorder %s33, 1
    %p397 = por %p395, %p396
    %p399 = scmp.ne.s32.totalorder %s382, %s398
    %p400 = scmp.eq.s32.totalorder %s33, 0
    %p401 = por %p399, %p400
    %s403 = sadd.s32 %s402, 1
    %p406 = scmp.eq.s32.totalorder %s27, 1
    %p407 = scmp.ne.s32.totalorder %s402, %s404
    %p408 = scmp.eq.s32.totalorder %s27, 0
    %p409 = por %p407, %p408
    %p410 = scmp.ne.s32.totalorder %s402, %s404
    %p411 = scmp.eq.s32.totalorder %s32, 1
    %p412 = por %p410, %p411
    %p413 = scmp.ne.s32.totalorder %s404, %s405
    %p414 = scmp.eq.s32.totalorder %s32, 0
    %p415 = por %p413, %p414
    %p416 = scmp.ne.s32.totalorder %s404, %s405
    %p417 = scmp.eq.s32.totalorder %s33, 1
    %p418 = por %p416, %p417
    %p420 = scmp.ne.s32.totalorder %s405, %s419
    %p421 = scmp.eq.s32.totalorder %s33, 0
    %p422 = por %p420, %p421
    %s423 = sld [smem:[#allocation3]]
    %s424 = sld [smem:[#allocation3]]
    %s425 = ssub.s32 %s423, %s424
    %p426 = scmp.eq.s32.totalorder %s425, 0
    %s428 = sadd.s32 %s427, 1
    %s429 = scalar_select %p426, %s427, %s428
    %p432 = pneg %p426
    %p433 = scmp.eq.s32.totalorder %s27, 1
    %p434 = por %p432, %p433
    %p435 = scmp.ne.s32.totalorder %s427, %s430
    %p436 = scmp.eq.s32.totalorder %s27, 0
    %p437 = por %p435, %p436
    %p438 = scmp.ne.s32.totalorder %s427, %s430
    %p439 = scmp.eq.s32.totalorder %s32, 1
    %p440 = por %p438, %p439
    %p441 = scmp.ne.s32.totalorder %s430, %s431
    %p442 = scmp.eq.s32.totalorder %s32, 0
    %p443 = por %p441, %p442
    %p444 = scmp.ne.s32.totalorder %s430, %s431
    %p445 = scmp.eq.s32.totalorder %s33, 1
    %p446 = por %p444, %p445
    %p448 = scmp.ne.s32.totalorder %s431, %s447
    %p449 = scmp.eq.s32.totalorder %s33, 0
    %p450 = por %p448, %p449
    %s451 = sld [smem:[#allocation3]]
    %s452 = sld [smem:[#allocation3]]
    %s453 = ssub.s32 %s451, %s452
    %p454 = scmp.eq.s32.totalorder %s453, 0
    %s456 = sadd.s32 %s455, 1
    %s457 = scalar_select %p454, %s455, %s456
    %p460 = pneg %p454
    %p461 = scmp.eq.s32.totalorder %s27, 1
    %p462 = por %p460, %p461
    %p463 = scmp.ne.s32.totalorder %s455, %s458
    %p464 = scmp.eq.s32.totalorder %s27, 0
    %p465 = por %p463, %p464
    %p466 = scmp.ne.s32.totalorder %s455, %s458
    %p467 = scmp.eq.s32.totalorder %s32, 1
    %p468 = por %p466, %p467
    %p469 = scmp.ne.s32.totalorder %s458, %s459
    %p470 = scmp.eq.s32.totalorder %s32, 0
    %p471 = por %p469, %p470
    %p472 = scmp.ne.s32.totalorder %s458, %s459
    %p473 = scmp.eq.s32.totalorder %s33, 1
    %p474 = por %p472, %p473
    %p476 = scmp.ne.s32.totalorder %s459, %s475
    %p477 = scmp.eq.s32.totalorder %s33, 0
    %p478 = por %p476, %p477
    %s480 = sadd.s32 %s479, 1
    %p483 = scmp.eq.s32.totalorder %s27, 1
    %p484 = scmp.ne.s32.totalorder %s479, %s481
    %p485 = scmp.eq.s32.totalorder %s27, 0
    %p486 = por %p484, %p485
    %p487 = scmp.ne.s32.totalorder %s479, %s481
    %p488 = scmp.eq.s32.totalorder %s32, 1
    %p489 = por %p487, %p488
    %p490 = scmp.ne.s32.totalorder %s481, %s482
    %p491 = scmp.eq.s32.totalorder %s32, 0
    %p492 = por %p490, %p491
    %p493 = scmp.ne.s32.totalorder %s481, %s482
    %p494 = scmp.eq.s32.totalorder %s33, 1
    %p495 = por %p493, %p494
    %p497 = scmp.ne.s32.totalorder %s482, %s496
    %p498 = scmp.eq.s32.totalorder %s33, 0
    %p499 = por %p497, %p498
    %s501 = sadd.s32 %s500, 1
    %p504 = scmp.eq.s32.totalorder %s27, 1
    %p505 = scmp.ne.s32.totalorder %s500, %s502
    %p506 = scmp.eq.s32.totalorder %s27, 0
    %p507 = por %p505, %p506
    %p508 = scmp.ne.s32.totalorder %s500, %s502
    %p509 = scmp.eq.s32.totalorder %s32, 1
    %p510 = por %p508, %p509
    %p511 = scmp.ne.s32.totalorder %s502, %s503
    %p512 = scmp.eq.s32.totalorder %s32, 0
    %p513 = por %p511, %p512
    %p514 = scmp.ne.s32.totalorder %s502, %s503
    %p515 = scmp.eq.s32.totalorder %s33, 1
    %p516 = por %p514, %p515
    %p518 = scmp.ne.s32.totalorder %s503, %s517
    %p519 = scmp.eq.s32.totalorder %s33, 0
    %p520 = por %p518, %p519
    %s521 = ssub.s32 %s34, %s46
    %s522 = ssub.s32 %s35, %s42
    %s523 = sor.u32 %s521, %s522
    %p524 = scmp.eq.s32.totalorder %s523, 0
    %s526 = sadd.s32 %s525, 1
    %s527 = scalar_select %p524, %s525, %s526
    %p530 = pneg %p524
    %p531 = scmp.eq.s32.totalorder %s27, 1
    %p532 = por %p530, %p531
    %p533 = scmp.ne.s32.totalorder %s525, %s528
    %p534 = scmp.eq.s32.totalorder %s27, 0
    %p535 = por %p533, %p534
    %p536 = scmp.ne.s32.totalorder %s525, %s528
    %p537 = scmp.eq.s32.totalorder %s32, 1
    %p538 = por %p536, %p537
    %p539 = scmp.ne.s32.totalorder %s528, %s529
    %p540 = scmp.eq.s32.totalorder %s32, 0
    %p541 = por %p539, %p540
    %p542 = scmp.ne.s32.totalorder %s528, %s529
    %p543 = scmp.eq.s32.totalorder %s33, 1
    %p544 = por %p542, %p543
    %p546 = scmp.ne.s32.totalorder %s529, %s545
    %p547 = scmp.eq.s32.totalorder %s33, 0
    %p548 = por %p546, %p547
    %p549 = scmp.le.s32.totalorder 1, %s27
    %p550 = scmp.lt.s32.totalorder %s27, 3
    %p551 = pnand %p549, %p550
    %p552 = pneg %p551
    // Predicated region
    $region9: #{unet_lora_mode_forward.1} parent=5 // pred_check
      _
    $region10: #{unet_lora_mode_forward.1} parent=5 // pred_check_branch
      %554 = sbr.rel (%p551) target = $region12
    $region11: #{unet_lora_mode_forward.1} parent=5 // pred_region
      %s555 = ssub.s32 %s27, 1
      // Predicated region
      $region13: #{unet_lora_mode_forward.1} parent=11 // pred_check
        %p556 = pneg %p142
      $region14: #{unet_lora_mode_forward.1} parent=11 // pred_check_branch
        %558 = sbr.rel (%p556) target = $region16
      $region15: #{unet_lora_mode_forward.1} parent=11 // pred_region
        _
      $region16: #{unet_lora_mode_forward.1} parent=11 // pred_fallthru
        _
      // Predicated region
      $region17: #{unet_lora_mode_forward.1} parent=11 // pred_check
        %p559 = pneg %p163
      $region18: #{unet_lora_mode_forward.1} parent=11 // pred_check_branch
        %561 = sbr.rel (%p559) target = $region20
      $region19: #{unet_lora_mode_forward.1} parent=11 // pred_region
        _
      $region20: #{unet_lora_mode_forward.1} parent=11 // pred_fallthru
        _
      // Predicated region
      $region21: #{unet_lora_mode_forward.1} parent=11 // pred_check
        %p562 = pneg %p184
      $region22: #{unet_lora_mode_forward.1} parent=11 // pred_check_branch
        %564 = sbr.rel (%p562) target = $region24
      $region23: #{unet_lora_mode_forward.1} parent=11 // pred_region
        _
      $region24: #{unet_lora_mode_forward.1} parent=11 // pred_fallthru
        _
      // Predicated region
      $region25: #{unet_lora_mode_forward.1} parent=11 // pred_check
        %p565 = pneg %p212
      $region26: #{unet_lora_mode_forward.1} parent=11 // pred_check_branch
        %567 = sbr.rel (%p565) target = $region28
      $region27: #{unet_lora_mode_forward.1} parent=11 // pred_region
        %s568 = sld [smem:[#allocation3]]
        %p569 = scmp.lt.s32.totalorder %s568, 4
        %s570 = scalar_select %p569, %s568, 4
        %s571 = smul.addr %s570, 4
        %s572 = smul.addr %s571, 8
        %s573 = scalar_lea.vmem %s7, %s572
        %s574 = sld [smem:[#allocation3]]
      $region28: #{unet_lora_mode_forward.1} parent=11 // pred_fallthru
        _
      // Predicated region
      $region29: #{unet_lora_mode_forward.1} parent=11 // pred_check
        %p575 = pneg %p240
      $region30: #{unet_lora_mode_forward.1} parent=11 // pred_check_branch
        %577 = sbr.rel (%p575) target = $region32
      $region31: #{unet_lora_mode_forward.1} parent=11 // pred_region
        %s578 = sld [smem:[#allocation3]]
        %p579 = scmp.lt.s32.totalorder %s578, 4
        %s580 = scalar_select %p579, %s578, 4
        %s581 = smul.addr %s580, 4
        %s582 = scalar_lea.vmem %s8, %s581
        %s583 = sld [smem:[#allocation3]]
      $region32: #{unet_lora_mode_forward.1} parent=11 // pred_fallthru
        _
      // Predicated region
      $region33: #{unet_lora_mode_forward.1} parent=11 // pred_check
        %p584 = pneg %p261
      $region34: #{unet_lora_mode_forward.1} parent=11 // pred_check_branch
        %586 = sbr.rel (%p584) target = $region36
      $region35: #{unet_lora_mode_forward.1} parent=11 // pred_region
        _
      $region36: #{unet_lora_mode_forward.1} parent=11 // pred_fallthru
        _
      // Predicated region
      $region37: #{unet_lora_mode_forward.1} parent=11 // pred_check
        %p587 = pneg %p289
      $region38: #{unet_lora_mode_forward.1} parent=11 // pred_check_branch
        %589 = sbr.rel (%p587) target = $region40
      $region39: #{unet_lora_mode_forward.1} parent=11 // pred_region
        %s590 = sld [smem:[#allocation3]]
        %p591 = scmp.lt.s32.totalorder %s590, 4
        %s592 = scalar_select %p591, %s590, 4
        %s593 = smul.addr %s592, 4
        %s594 = smul.addr %s593, 8
        %s595 = scalar_lea.vmem %s10, %s594
        %s596 = sld [smem:[#allocation3]]
      $region40: #{unet_lora_mode_forward.1} parent=11 // pred_fallthru
        _
      // Predicated region
      $region41: #{unet_lora_mode_forward.1} parent=11 // pred_check
        %p597 = pneg %p317
      $region42: #{unet_lora_mode_forward.1} parent=11 // pred_check_branch
        %599 = sbr.rel (%p597) target = $region44
      $region43: #{unet_lora_mode_forward.1} parent=11 // pred_region
        %s600 = sld [smem:[#allocation3]]
        %p601 = scmp.lt.s32.totalorder %s600, 4
        %s602 = scalar_select %p601, %s600, 4
        %s603 = smul.addr %s602, 4
        %s604 = scalar_lea.vmem %s11, %s603
        %s605 = sld [smem:[#allocation3]]
      $region44: #{unet_lora_mode_forward.1} parent=11 // pred_fallthru
        _
      // Predicated region
      $region45: #{unet_lora_mode_forward.1} parent=11 // pred_check
        %p606 = pneg %p338
      $region46: #{unet_lora_mode_forward.1} parent=11 // pred_check_branch
        %608 = sbr.rel (%p606) target = $region48
      $region47: #{unet_lora_mode_forward.1} parent=11 // pred_region
        _
      $region48: #{unet_lora_mode_forward.1} parent=11 // pred_fallthru
        _
      // Predicated region
      $region49: #{unet_lora_mode_forward.1} parent=11 // pred_check
        %p609 = pneg %p366
      $region50: #{unet_lora_mode_forward.1} parent=11 // pred_check_branch
        %611 = sbr.rel (%p609) target = $region52
      $region51: #{unet_lora_mode_forward.1} parent=11 // pred_region
        %s612 = sld [smem:[#allocation3]]
        %p613 = scmp.lt.s32.totalorder %s612, 4
        %s614 = scalar_select %p613, %s612, 4
        %s615 = smul.addr %s614, 4
        %s616 = smul.addr %s615, 8
        %s617 = scalar_lea.vmem %s13, %s616
        %s618 = sld [smem:[#allocation3]]
      $region52: #{unet_lora_mode_forward.1} parent=11 // pred_fallthru
        _
      // Predicated region
      $region53: #{unet_lora_mode_forward.1} parent=11 // pred_check
        %p619 = pneg %p394
      $region54: #{unet_lora_mode_forward.1} parent=11 // pred_check_branch
        %621 = sbr.rel (%p619) target = $region56
      $region55: #{unet_lora_mode_forward.1} parent=11 // pred_region
        %s622 = sld [smem:[#allocation3]]
        %p623 = scmp.lt.s32.totalorder %s622, 4
        %s624 = scalar_select %p623, %s622, 4
        %s625 = smul.addr %s624, 4
        %s626 = scalar_lea.vmem %s14, %s625
        %s627 = sld [smem:[#allocation3]]
      $region56: #{unet_lora_mode_forward.1} parent=11 // pred_fallthru
        _
      // Predicated region
      $region57: #{unet_lora_mode_forward.1} parent=11 // pred_check
        %p628 = pneg %p415
      $region58: #{unet_lora_mode_forward.1} parent=11 // pred_check_branch
        %630 = sbr.rel (%p628) target = $region60
      $region59: #{unet_lora_mode_forward.1} parent=11 // pred_region
        _
      $region60: #{unet_lora_mode_forward.1} parent=11 // pred_fallthru
        _
      // Predicated region
      $region61: #{unet_lora_mode_forward.1} parent=11 // pred_check
        %p631 = pneg %p443
      $region62: #{unet_lora_mode_forward.1} parent=11 // pred_check_branch
        %633 = sbr.rel (%p631) target = $region64
      $region63: #{unet_lora_mode_forward.1} parent=11 // pred_region
        %s634 = sld [smem:[#allocation3]]
        %p635 = scmp.lt.s32.totalorder %s634, 4
        %s636 = scalar_select %p635, %s634, 4
        %s637 = smul.addr %s636, 4
        %s638 = smul.addr %s637, 8
        %s639 = scalar_lea.vmem %s16, %s638
        %s640 = sld [smem:[#allocation3]]
      $region64: #{unet_lora_mode_forward.1} parent=11 // pred_fallthru
        _
      // Predicated region
      $region65: #{unet_lora_mode_forward.1} parent=11 // pred_check
        %p641 = pneg %p471
      $region66: #{unet_lora_mode_forward.1} parent=11 // pred_check_branch
        %643 = sbr.rel (%p641) target = $region68
      $region67: #{unet_lora_mode_forward.1} parent=11 // pred_region
        %s644 = sld [smem:[#allocation3]]
        %p645 = scmp.lt.s32.totalorder %s644, 4
        %s646 = scalar_select %p645, %s644, 4
        %s647 = smul.addr %s646, 4
        %s648 = scalar_lea.vmem %s17, %s647
        %s649 = sld [smem:[#allocation3]]
      $region68: #{unet_lora_mode_forward.1} parent=11 // pred_fallthru
        _
      // Predicated region
      $region69: #{unet_lora_mode_forward.1} parent=11 // pred_check
        %p650 = pneg %p492
      $region70: #{unet_lora_mode_forward.1} parent=11 // pred_check_branch
        %652 = sbr.rel (%p650) target = $region72
      $region71: #{unet_lora_mode_forward.1} parent=11 // pred_region
        _
      $region72: #{unet_lora_mode_forward.1} parent=11 // pred_fallthru
        _
      // Predicated region
      $region73: #{unet_lora_mode_forward.1} parent=11 // pred_check
        %p653 = pneg %p513
      $region74: #{unet_lora_mode_forward.1} parent=11 // pred_check_branch
        %655 = sbr.rel (%p653) target = $region76
      $region75: #{unet_lora_mode_forward.1} parent=11 // pred_region
        _
      $region76: #{unet_lora_mode_forward.1} parent=11 // pred_fallthru
        _
    $region12: #{unet_lora_mode_forward.1} parent=5 // pred_fallthru
      _
    %p656 = scmp.lt.s32.totalorder %s27, 2
    // Predicated region
    $region77: #{unet_lora_mode_forward.1} parent=5 // pred_check
      %p657 = pneg %p656
    $region78: #{unet_lora_mode_forward.1} parent=5 // pred_check_branch
      %659 = sbr.rel (%p657) target = $region80
    $region79: #{unet_lora_mode_forward.1} parent=5 // pred_region
      // Predicated region
      $region81: #{unet_lora_mode_forward.1} parent=79 // pred_check
        %p660 = pneg %p61
      $region82: #{unet_lora_mode_forward.1} parent=79 // pred_check_branch
        %662 = sbr.rel (%p660) target = $region84
      $region83: #{unet_lora_mode_forward.1} parent=79 // pred_region
        %s663 = smul.u32 32, %s35
        %p664 = scmp.lt.s32.totalorder %s34, 1
        %s665 = scalar_select %p664, %s34, 1
        %p666 = scmp.lt.s32.totalorder %s663, 31
        %s667 = scalar_select %p666, %s663, 31
        %s668 = smul.addr %s665, 32
        %s669 = sadd.s32 %s667, %s668
        %s670 = smul.addr %s669, 8
        %s671 = scalar_lea.vmem %s1, %s670
        %s672 = smul.u32 32, %s35
      $region84: #{unet_lora_mode_forward.1} parent=79 // pred_fallthru
        _
      // Predicated region
      $region85: #{unet_lora_mode_forward.1} parent=79 // pred_check
        %p673 = pneg %p89
      $region86: #{unet_lora_mode_forward.1} parent=79 // pred_check_branch
        %675 = sbr.rel (%p673) target = $region88
      $region87: #{unet_lora_mode_forward.1} parent=79 // pred_region
        %s676 = smul.u32 2, %s35
        %p677 = scmp.lt.s32.totalorder %s34, 1
        %s678 = scalar_select %p677, %s34, 1
        %p679 = scmp.lt.s32.totalorder %s676, 1
        %s680 = scalar_select %p679, %s676, 1
        %s681 = smul.addr %s678, 2
        %s682 = sadd.s32 %s680, %s681
        %s683 = smul.addr %s682, 4
        %s684 = scalar_lea.vmem %s2, %s683
        %s685 = smul.u32 2, %s35
      $region88: #{unet_lora_mode_forward.1} parent=79 // pred_fallthru
        _
      // Predicated region
      $region89: #{unet_lora_mode_forward.1} parent=79 // pred_check
        %p686 = pneg %p115
      $region90: #{unet_lora_mode_forward.1} parent=79 // pred_check_branch
        %688 = sbr.rel (%p686) target = $region92
      $region91: #{unet_lora_mode_forward.1} parent=79 // pred_region
        %p689 = scmp.lt.s32.totalorder %s34, 1
        %s690 = scalar_select %p689, %s34, 1
        %s691 = smul.addr %s690, 8
        %s692 = scalar_lea.vmem %s3, %s691
      $region92: #{unet_lora_mode_forward.1} parent=79 // pred_fallthru
        _
    $region80: #{unet_lora_mode_forward.1} parent=5 // pred_fallthru
      _
    %p693 = scmp.le.s32.totalorder 1, %s27
    %p694 = scmp.lt.s32.totalorder %s27, 3
    %p695 = pnand %p693, %p694
    %p696 = pneg %p695
    // Predicated region
    $region93: #{unet_lora_mode_forward.1} parent=5 // pred_check
      _
    $region94: #{unet_lora_mode_forward.1} parent=5 // pred_check_branch
      %698 = sbr.rel (%p695) target = $region96
    $region95: #{unet_lora_mode_forward.1} parent=5 // pred_region
      %s699 = ssub.s32 %s27, 1
      %s700 = smul.u32 32, %s37
      %p701 = scmp.lt.s32.totalorder %s36, 1
      %s702 = scalar_select %p701, %s36, 1
      %p703 = scmp.lt.s32.totalorder %s700, 31
      %s704 = scalar_select %p703, %s700, 31
      %s705 = smul.addr %s702, 32
      %s706 = sadd.s32 %s704, %s705
      %s707 = smul.addr %s706, 8
      %s708 = scalar_lea.vmem %s1, %s707
      %p709 = pneg %p67
      %p710 = pneg %p64
      %s711 = smul.u32 2, %s37
      %p712 = scmp.lt.s32.totalorder %s36, 1
      %s713 = scalar_select %p712, %s36, 1
      %p714 = scmp.lt.s32.totalorder %s711, 1
      %s715 = scalar_select %p714, %s711, 1
      %s716 = smul.addr %s713, 2
      %s717 = sadd.s32 %s715, %s716
      %s718 = smul.addr %s717, 4
      %s719 = scalar_lea.vmem %s2, %s718
      %p720 = pneg %p95
      %p721 = pneg %p92
      %p722 = scmp.lt.s32.totalorder %s36, 1
      %s723 = scalar_select %p722, %s36, 1
      %s724 = smul.addr %s723, 8
      %s725 = scalar_lea.vmem %s3, %s724
      %p726 = pneg %p121
      %p727 = pneg %p118
      %p728 = pneg %p142
      %p729 = pneg %p139
      %p730 = pneg %p163
      %p731 = pneg %p160
      %p732 = pneg %p184
      %p733 = pneg %p181
      %s734 = sld [smem:[#allocation3]]
      %p735 = scmp.lt.s32.totalorder %s734, 4
      %s736 = scalar_select %p735, %s734, 4
      %s737 = smul.addr %s736, 4
      %s738 = smul.addr %s737, 8
      %s739 = scalar_lea.vmem %s7, %s738
      %p740 = pneg %p212
      %p741 = pneg %p209
      %s742 = sld [smem:[#allocation3]]
      %p743 = scmp.lt.s32.totalorder %s742, 4
      %s744 = scalar_select %p743, %s742, 4
      %s745 = smul.addr %s744, 4
      %s746 = scalar_lea.vmem %s8, %s745
      %p747 = pneg %p240
      %p748 = pneg %p237
      %p749 = pneg %p261
      %p750 = pneg %p258
      %s751 = sld [smem:[#allocation3]]
      %p752 = scmp.lt.s32.totalorder %s751, 4
      %s753 = scalar_select %p752, %s751, 4
      %s754 = smul.addr %s753, 4
      %s755 = smul.addr %s754, 8
      %s756 = scalar_lea.vmem %s10, %s755
      %p757 = pneg %p289
      %p758 = pneg %p286
      %s759 = sld [smem:[#allocation3]]
      %p760 = scmp.lt.s32.totalorder %s759, 4
      %s761 = scalar_select %p760, %s759, 4
      %s762 = smul.addr %s761, 4
      %s763 = scalar_lea.vmem %s11, %s762
      %p764 = pneg %p317
      %p765 = pneg %p314
      %p766 = pneg %p338
      %p767 = pneg %p335
      %s768 = sld [smem:[#allocation3]]
      %p769 = scmp.lt.s32.totalorder %s768, 4
      %s770 = scalar_select %p769, %s768, 4
      %s771 = smul.addr %s770, 4
      %s772 = smul.addr %s771, 8
      %s773 = scalar_lea.vmem %s13, %s772
      %p774 = pneg %p366
      %p775 = pneg %p363
      %s776 = sld [smem:[#allocation3]]
      %p777 = scmp.lt.s32.totalorder %s776, 4
      %s778 = scalar_select %p777, %s776, 4
      %s779 = smul.addr %s778, 4
      %s780 = scalar_lea.vmem %s14, %s779
      %p781 = pneg %p394
      %p782 = pneg %p391
      %p783 = pneg %p415
      %p784 = pneg %p412
      %s785 = sld [smem:[#allocation3]]
      %p786 = scmp.lt.s32.totalorder %s785, 4
      %s787 = scalar_select %p786, %s785, 4
      %s788 = smul.addr %s787, 4
      %s789 = smul.addr %s788, 8
      %s790 = scalar_lea.vmem %s16, %s789
      %p791 = pneg %p443
      %p792 = pneg %p440
      %s793 = sld [smem:[#allocation3]]
      %p794 = scmp.lt.s32.totalorder %s793, 4
      %s795 = scalar_select %p794, %s793, 4
      %s796 = smul.addr %s795, 4
      %s797 = scalar_lea.vmem %s17, %s796
      %p798 = pneg %p471
      %p799 = pneg %p468
      %p800 = pneg %p492
      %p801 = pneg %p489
      %p802 = pneg %p513
      %p803 = pneg %p510
      %p804 = pneg %p541
      %p805 = pneg %p538
      %s806 = smul.u32 2, %s37
      %p807 = scmp.lt.s32.totalorder %s36, 1
      %s808 = scalar_select %p807, %s36, 1
      %p809 = scmp.lt.s32.totalorder %s806, 1
      %s810 = scalar_select %p809, %s806, 1
      %s811 = smul.addr %s808, 2
      %s812 = sadd.s32 %s810, %s811
      %s813 = smul.addr %s812, 4
      %s814 = scalar_lea.vmem %s20, %s813
      %s815 = smul.u32 32, %s37
      %p816 = scmp.lt.s32.totalorder %s36, 1
      %s817 = scalar_select %p816, %s36, 1
      %p818 = scmp.lt.s32.totalorder %s815, 31
      %s819 = scalar_select %p818, %s815, 31
      %s820 = smul.addr %s817, 32
      %s821 = sadd.s32 %s819, %s820
      %s822 = smul.addr %s821, 8
      %s823 = scalar_lea.vmem %s1, %s822
      %s824 = smul.u32 32, %s37
      %s825 = smul.u32 2, %s37
      %p826 = scmp.lt.s32.totalorder %s36, 1
      %s827 = scalar_select %p826, %s36, 1
      %p828 = scmp.lt.s32.totalorder %s825, 1
      %s829 = scalar_select %p828, %s825, 1
      %s830 = smul.addr %s827, 2
      %s831 = sadd.s32 %s829, %s830
      %s832 = smul.addr %s831, 4
      %s833 = scalar_lea.vmem %s2, %s832
      %s834 = smul.u32 2, %s37
      %p835 = scmp.lt.s32.totalorder %s36, 1
      %s836 = scalar_select %p835, %s36, 1
      %s837 = smul.addr %s836, 8
      %s838 = scalar_lea.vmem %s3, %s837
      %s839 = sld [smem:[#allocation3]]
      %p840 = scmp.lt.s32.totalorder %s839, 4
      %s841 = scalar_select %p840, %s839, 4
      %s842 = smul.addr %s841, 4
      %s843 = smul.addr %s842, 8
      %s844 = scalar_lea.vmem %s7, %s843
      %s845 = sld [smem:[#allocation3]]
      %s846 = sld [smem:[#allocation3]]
      %p847 = scmp.lt.s32.totalorder %s846, 4
      %s848 = scalar_select %p847, %s846, 4
      %s849 = smul.addr %s848, 4
      %s850 = scalar_lea.vmem %s8, %s849
      %s851 = sld [smem:[#allocation3]]
      %s852 = sld [smem:[#allocation3]]
      %p853 = scmp.lt.s32.totalorder %s852, 4
      %s854 = scalar_select %p853, %s852, 4
      %s855 = smul.addr %s854, 4
      %s856 = smul.addr %s855, 8
      %s857 = scalar_lea.vmem %s10, %s856
      %s858 = sld [smem:[#allocation3]]
      %s859 = sld [smem:[#allocation3]]
      %p860 = scmp.lt.s32.totalorder %s859, 4
      %s861 = scalar_select %p860, %s859, 4
      %s862 = smul.addr %s861, 4
      %s863 = scalar_lea.vmem %s11, %s862
      %s864 = sld [smem:[#allocation3]]
      %s865 = sld [smem:[#allocation3]]
      %p866 = scmp.lt.s32.totalorder %s865, 4
      %s867 = scalar_select %p866, %s865, 4
      %s868 = smul.addr %s867, 4
      %s869 = smul.addr %s868, 8
      %s870 = scalar_lea.vmem %s13, %s869
      %s871 = sld [smem:[#allocation3]]
      %s872 = sld [smem:[#allocation3]]
      %p873 = scmp.lt.s32.totalorder %s872, 4
      %s874 = scalar_select %p873, %s872, 4
      %s875 = smul.addr %s874, 4
      %s876 = scalar_lea.vmem %s14, %s875
      %s877 = sld [smem:[#allocation3]]
      %s878 = sld [smem:[#allocation3]]
      %p879 = scmp.lt.s32.totalorder %s878, 4
      %s880 = scalar_select %p879, %s878, 4
      %s881 = smul.addr %s880, 4
      %s882 = smul.addr %s881, 8
      %s883 = scalar_lea.vmem %s16, %s882
      %s884 = sld [smem:[#allocation3]]
      %s885 = sld [smem:[#allocation3]]
      %p886 = scmp.lt.s32.totalorder %s885, 4
      %s887 = scalar_select %p886, %s885, 4
      %s888 = smul.addr %s887, 4
      %s889 = scalar_lea.vmem %s17, %s888
      %s890 = sld [smem:[#allocation3]]
      %s891 = smul.u32 2, %s37
      %p892 = scmp.lt.s32.totalorder %s36, 1
      %s893 = scalar_select %p892, %s36, 1
      %p894 = scmp.lt.s32.totalorder %s891, 1
      %s895 = scalar_select %p894, %s891, 1
      %s896 = smul.addr %s893, 2
      %s897 = sadd.s32 %s895, %s896
      %s898 = smul.addr %s897, 4
      %s899 = scalar_lea.vmem %s20, %s898
      %s900 = smul.u32 2, %s37
      %v901 = vld [vmem:[%s823] sm:$0xff]
      %v902 = vld [vmem:[%s823 + $0x8] sm:$0xff]
      %v903 = vld [vmem:[%s823 + $0x10] sm:$0xff]
      %v904 = vld [vmem:[%s823 + $0x18] sm:$0xff]
      %v905 = vld [vmem:[%s823 + $0x20] sm:$0xff]
      %v906 = vld [vmem:[%s823 + $0x28] sm:$0xff]
      %v907 = vld [vmem:[%s823 + $0x30] sm:$0xff]
      %v908 = vld [vmem:[%s823 + $0x38] sm:$0xff]
      %v909 = vld [vmem:[%s823 + $0x40] sm:$0xff]
      %v910 = vld [vmem:[%s823 + $0x48] sm:$0xff]
      %v911 = vld [vmem:[%s823 + $0x50] sm:$0xff]
      %v912 = vld [vmem:[%s823 + $0x58] sm:$0xff]
      %v913 = vld [vmem:[%s823 + $0x60] sm:$0xff]
      %v914 = vld [vmem:[%s823 + $0x68] sm:$0xff]
      %v915 = vld [vmem:[%s823 + $0x70] sm:$0xff]
      %v916 = vld [vmem:[%s823 + $0x78] sm:$0xff]
      %v917 = vld [vmem:[%s823 + $0x80] sm:$0xff]
      %v918 = vld [vmem:[%s823 + $0x88] sm:$0xff]
      %v919 = vld [vmem:[%s823 + $0x90] sm:$0xff]
      %v920 = vld [vmem:[%s823 + $0x98] sm:$0xff]
      %v921 = vld [vmem:[%s823 + $0xa0] sm:$0xff]
      %v922 = vld [vmem:[%s823 + $0xa8] sm:$0xff]
      %v923 = vld [vmem:[%s823 + $0xb0] sm:$0xff]
      %v924 = vld [vmem:[%s823 + $0xb8] sm:$0xff]
      %v925 = vld [vmem:[%s823 + $0xc0] sm:$0xff]
      %v926 = vld [vmem:[%s823 + $0xc8] sm:$0xff]
      %v927 = vld [vmem:[%s823 + $0xd0] sm:$0xff]
      %v928 = vld [vmem:[%s823 + $0xd8] sm:$0xff]
      %v929 = vld [vmem:[%s823 + $0xe0] sm:$0xff]
      %v930 = vld [vmem:[%s823 + $0xe8] sm:$0xff]
      %v931 = vld [vmem:[%s823 + $0xf0] sm:$0xff]
      %v932 = vld [vmem:[%s823 + $0xf8] sm:$0xff]
      %v933 = vld [vmem:[%s838] sm:$0xff]
      %v934 = vld [vmem:[%s4] sm:$0xf]
      %v935 = vld [vmem:[%s5] sm:$0x1]
      %v937 = vlaneseq
      %v938 = vshrl.u32 %v937, 7
      %v939 = vsub.s32 0, %v938
      %v940 = vrot.slane %v935, %v939
      %vm942 = vcmask 31744
      %v944 = vsel %vm942, %v901, 0
      %v947 = vsel %vm942, %v902, 0
      %v950 = vsel %vm942, %v903, 0
      %v953 = vsel %vm942, %v904, 0
      %v956 = vsel %vm942, %v905, 0
      %v959 = vsel %vm942, %v906, 0
      %v962 = vsel %vm942, %v907, 0
      %v965 = vsel %vm942, %v908, 0
      %v968 = vsel %vm942, %v909, 0
      %v971 = vsel %vm942, %v910, 0
      %v974 = vsel %vm942, %v911, 0
      %v977 = vsel %vm942, %v912, 0
      %v980 = vsel %vm942, %v913, 0
      %v983 = vsel %vm942, %v914, 0
      %v986 = vsel %vm942, %v915, 0
      %v989 = vsel %vm942, %v916, 0
      %v992 = vsel %vm942, %v917, 0
      %v995 = vsel %vm942, %v918, 0
      %v998 = vsel %vm942, %v919, 0
      %v1001 = vsel %vm942, %v920, 0
      %v1004 = vsel %vm942, %v921, 0
      %v1007 = vsel %vm942, %v922, 0
      %v1010 = vsel %vm942, %v923, 0
      %v1013 = vsel %vm942, %v924, 0
      %v1016 = vsel %vm942, %v925, 0
      %v1019 = vsel %vm942, %v926, 0
      %v1022 = vsel %vm942, %v927, 0
      %v1025 = vsel %vm942, %v928, 0
      %v1028 = vsel %vm942, %v929, 0
      %v1031 = vsel %vm942, %v930, 0
      %v1034 = vsel %vm942, %v931, 0
      %v1037 = vsel %vm942, %v932, 0
      %vm1039 = vcmask 1043456
      %v1041 = vsel %vm1039, %v934, 0
      %1043 = vmatprep.subr.mxu0 0.0
      %1044 = vmatpush1.msra.mxu0 %v1041
      %1045 = vmatprep.subr.mxu0 0.0
      %1046 = vmatpush1.msra.mxu0 0.0
      %1047 = vmatprep.subr.mxu0 0.0
      %1048 = vmatpush1.msra.mxu0 0.0
      %1049 = vmatprep.subr.mxu0 0.0
      %1050 = vmatpush1.msra.mxu0 0.0
      %1051 = vmatprep.subr.mxu0 0.0
      %1052 = vmatpush1.msra.mxu0 0.0
      %1053 = vmatprep.subr.mxu0 0.0
      %1054 = vmatpush1.msra.mxu0 0.0
      %1055 = vmatprep.subr.mxu0 0.0
      %1056 = vmatpush1.msra.mxu0 0.0
      %1057 = vmatprep.subr.mxu0 0.0
      %1058 = vmatpush1.msra.mxu0 0.0
      %1059 = vmatprep.subr.mxu0 0.0
      %1060 = vmatpush1.msra.mxu0 0.0
      %1061 = vmatprep.subr.mxu0 0.0
      %1062 = vmatpush1.msra.mxu0 0.0
      %1063 = vmatprep.subr.mxu0 0.0
      %1064 = vmatpush1.msra.mxu0 0.0
      %1065 = vmatprep.subr.mxu0 0.0
      %1066 = vmatpush1.msra.mxu0 0.0
      %1067 = vmatprep.subr.mxu0 0.0
      %1068 = vmatpush1.msra.mxu0 0.0
      %1069 = vmatprep.subr.mxu0 0.0
      %1070 = vmatpush1.msra.mxu0 0.0
      %1071 = vmatprep.subr.mxu0 0.0
      %1072 = vmatpush1.msra.mxu0 0.0
      %1073 = vmatprep.subr.mxu0 0.0
      %1074 = vmatpush1.msra.mxu0 0.0
      %1075 = vmatprep.subr.mxu0 0.0
      %1076 = vmatpush1.msra.mxu0 0.0
      %1077 = vmatprep.subr.mxu0 0.0
      %1078 = vmatpush1.msra.mxu0 0.0
      %1079 = vmatprep.subr.mxu0 0.0
      %1080 = vmatpush1.msra.mxu0 0.0
      %1081 = vmatprep.subr.mxu0 0.0
      %1082 = vmatpush1.msra.mxu0 0.0
      %1083 = vmatprep.subr.mxu0 0.0
      %1084 = vmatpush1.msra.mxu0 0.0
      %1085 = vmatprep.subr.mxu0 0.0
      %1086 = vmatpush1.msra.mxu0 0.0
      %1087 = vmatprep.subr.mxu0 0.0
      %1088 = vmatpush1.msra.mxu0 0.0
      %1089 = vmatprep.subr.mxu0 0.0
      %1090 = vmatpush1.msra.mxu0 0.0
      %1091 = vmatprep.subr.mxu0 0.0
      %1092 = vmatpush1.msra.mxu0 0.0
      %1093 = vmatprep.subr.mxu0 0.0
      %1094 = vmatpush1.msra.mxu0 0.0
      %1095 = vmatprep.subr.mxu0 0.0
      %1096 = vmatpush1.msra.mxu0 0.0
      %1097 = vmatprep.subr.mxu0 0.0
      %1098 = vmatpush1.msra.mxu0 0.0
      %1099 = vmatprep.subr.mxu0 0.0
      %1100 = vmatpush1.msra.mxu0 0.0
      %1101 = vmatprep.subr.mxu0 0.0
      %1102 = vmatpush1.msra.mxu0 0.0
      %1103 = vmatprep.subr.mxu0 0.0
      %1104 = vmatpush1.msra.mxu0 0.0
      %1105 = vmatprep.subr.mxu0 0.0
      %1106 = vmatpush1.msra.mxu0 0.0
      %1107 = vmatprep.mubr.f32.mxu0 0.0
      %1108 = vmatmul.mubr.f32.gmra.mrb[0].mxu0 %v944
      %v1109 = vpop.f32.mrb[0].mxu0
      %v1110 = vadd.f32 %v940, %v1109
      %v1111 = vpop.f32.mrb[0].mxu0
      %1112 = vmatprep.mubr.f32.mxu0 0.0
      %1113 = vmatmul.mubr.f32.gmra.mrb[0].mxu0 %v947
      %v1114 = vpop.f32.mrb[0].mxu0
      %v1115 = vadd.f32 %v940, %v1114
      %v1116 = vpop.f32.mrb[0].mxu0
      %1117 = vmatprep.mubr.f32.mxu0 0.0
      %1118 = vmatmul.mubr.f32.gmra.mrb[0].mxu0 %v950
      %v1119 = vpop.f32.mrb[0].mxu0
      %v1120 = vadd.f32 %v940, %v1119
      %v1121 = vpop.f32.mrb[0].mxu0
      %1122 = vmatprep.mubr.f32.mxu0 0.0
      %1123 = vmatmul.mubr.f32.gmra.mrb[0].mxu0 %v953
      %v1124 = vpop.f32.mrb[0].mxu0
      %v1125 = vadd.f32 %v940, %v1124
      %v1126 = vpop.f32.mrb[0].mxu0
      %1127 = vmatprep.mubr.f32.mxu0 0.0
      %1128 = vmatmul.mubr.f32.gmra.mrb[0].mxu0 %v956
      %v1129 = vpop.f32.mrb[0].mxu0
      %v1130 = vadd.f32 %v940, %v1129
      %v1131 = vpop.f32.mrb[0].mxu0
      %1132 = vmatprep.mubr.f32.mxu0 0.0
      %1133 = vmatmul.mubr.f32.gmra.mrb[0].mxu0 %v959
      %v1134 = vpop.f32.mrb[0].mxu0
      %v1135 = vadd.f32 %v940, %v1134
      %v1136 = vpop.f32.mrb[0].mxu0
      %1137 = vmatprep.mubr.f32.mxu0 0.0
      %1138 = vmatmul.mubr.f32.gmra.mrb[0].mxu0 %v962
      %v1139 = vpop.f32.mrb[0].mxu0
      %v1140 = vadd.f32 %v940, %v1139
      %v1141 = vpop.f32.mrb[0].mxu0
      %1142 = vmatprep.mubr.f32.mxu0 0.0
      %1143 = vmatmul.mubr.f32.gmra.mrb[0].mxu0 %v965
      %v1144 = vpop.f32.mrb[0].mxu0
      %v1145 = vadd.f32 %v940, %v1144
      %v1146 = vpop.f32.mrb[0].mxu0
      %1147 = vmatprep.mubr.f32.mxu0 0.0
      %1148 = vmatmul.mubr.f32.gmra.mrb[0].mxu0 %v968
      %v1149 = vpop.f32.mrb[0].mxu0
      %v1150 = vadd.f32 %v940, %v1149
      %v1151 = vpop.f32.mrb[0].mxu0
      %1152 = vmatprep.mubr.f32.mxu0 0.0
      %1153 = vmatmul.mubr.f32.gmra.mrb[0].mxu0 %v971
      %v1154 = vpop.f32.mrb[0].mxu0
      %v1155 = vadd.f32 %v940, %v1154
      %v1156 = vpop.f32.mrb[0].mxu0
      %1157 = vmatprep.mubr.f32.mxu0 0.0
      %1158 = vmatmul.mubr.f32.gmra.mrb[0].mxu0 %v974
      %v1159 = vpop.f32.mrb[0].mxu0
      %v1160 = vadd.f32 %v940, %v1159
      %v1161 = vpop.f32.mrb[0].mxu0
      %1162 = vmatprep.mubr.f32.mxu0 0.0
      %1163 = vmatmul.mubr.f32.gmra.mrb[0].mxu0 %v977
      %v1164 = vpop.f32.mrb[0].mxu0
      %v1165 = vadd.f32 %v940, %v1164
      %v1166 = vpop.f32.mrb[0].mxu0
      %1167 = vmatprep.mubr.f32.mxu0 0.0
      %1168 = vmatmul.mubr.f32.gmra.mrb[0].mxu0 %v980
      %v1169 = vpop.f32.mrb[0].mxu0
      %v1170 = vadd.f32 %v940, %v1169
      %v1171 = vpop.f32.mrb[0].mxu0
      %1172 = vmatprep.mubr.f32.mxu0 0.0
      %1173 = vmatmul.mubr.f32.gmra.mrb[0].mxu0 %v983
      %v1174 = vpop.f32.mrb[0].mxu0
      %v1175 = vadd.f32 %v940, %v1174
      %v1176 = vpop.f32.mrb[0].mxu0
      %1177 = vmatprep.mubr.f32.mxu0 0.0
      %1178 = vmatmul.mubr.f32.gmra.mrb[0].mxu0 %v986
      %v1179 = vpop.f32.mrb[0].mxu0
      %v1180 = vadd.f32 %v940, %v1179
      %v1181 = vpop.f32.mrb[0].mxu0
      %1182 = vmatprep.mubr.f32.mxu0 0.0
      %1183 = vmatmul.mubr.f32.gmra.mrb[0].mxu0 %v989
      %v1184 = vpop.f32.mrb[0].mxu0
      %v1185 = vadd.f32 %v940, %v1184
      %v1186 = vpop.f32.mrb[0].mxu0
      %1187 = vmatprep.mubr.f32.mxu0 0.0
      %1188 = vmatmul.mubr.f32.gmra.mrb[0].mxu0 %v992
      %v1189 = vpop.f32.mrb[0].mxu0
      %v1190 = vadd.f32 %v940, %v1189
      %v1191 = vpop.f32.mrb[0].mxu0
      %1192 = vmatprep.mubr.f32.mxu0 0.0
      %1193 = vmatmul.mubr.f32.gmra.mrb[0].mxu0 %v995
      %v1194 = vpop.f32.mrb[0].mxu0
      %v1195 = vadd.f32 %v940, %v1194
      %v1196 = vpop.f32.mrb[0].mxu0
      %1197 = vmatprep.mubr.f32.mxu0 0.0
      %1198 = vmatmul.mubr.f32.gmra.mrb[0].mxu0 %v998
      %v1199 = vpop.f32.mrb[0].mxu0
      %v1200 = vadd.f32 %v940, %v1199
      %v1201 = vpop.f32.mrb[0].mxu0
      %1202 = vmatprep.mubr.f32.mxu0 0.0
      %1203 = vmatmul.mubr.f32.gmra.mrb[0].mxu0 %v1001
      %v1204 = vpop.f32.mrb[0].mxu0
      %v1205 = vadd.f32 %v940, %v1204
      %v1206 = vpop.f32.mrb[0].mxu0
      %1207 = vmatprep.mubr.f32.mxu0 0.0
      %1208 = vmatmul.mubr.f32.gmra.mrb[0].mxu0 %v1004
      %v1209 = vpop.f32.mrb[0].mxu0
      %v1210 = vadd.f32 %v940, %v1209
      %v1211 = vpop.f32.mrb[0].mxu0
      %1212 = vmatprep.mubr.f32.mxu0 0.0
      %1213 = vmatmul.mubr.f32.gmra.mrb[0].mxu0 %v1007
      %v1214 = vpop.f32.mrb[0].mxu0
      %v1215 = vadd.f32 %v940, %v1214
      %v1216 = vpop.f32.mrb[0].mxu0
      %1217 = vmatprep.mubr.f32.mxu0 0.0
      %1218 = vmatmul.mubr.f32.gmra.mrb[0].mxu0 %v1010
      %v1219 = vpop.f32.mrb[0].mxu0
      %v1220 = vadd.f32 %v940, %v1219
      %v1221 = vpop.f32.mrb[0].mxu0
      %1222 = vmatprep.mubr.f32.mxu0 0.0
      %1223 = vmatmul.mubr.f32.gmra.mrb[0].mxu0 %v1013
      %v1224 = vpop.f32.mrb[0].mxu0
      %v1225 = vadd.f32 %v940, %v1224
      %v1226 = vpop.f32.mrb[0].mxu0
      %1227 = vmatprep.mubr.f32.mxu0 0.0
      %1228 = vmatmul.mubr.f32.gmra.mrb[0].mxu0 %v1016
      %v1229 = vpop.f32.mrb[0].mxu0
      %v1230 = vadd.f32 %v940, %v1229
      %v1231 = vpop.f32.mrb[0].mxu0
      %1232 = vmatprep.mubr.f32.mxu0 0.0
      %1233 = vmatmul.mubr.f32.gmra.mrb[0].mxu0 %v1019
      %v1234 = vpop.f32.mrb[0].mxu0
      %v1235 = vadd.f32 %v940, %v1234
      %v1236 = vpop.f32.mrb[0].mxu0
      %1237 = vmatprep.mubr.f32.mxu0 0.0
      %1238 = vmatmul.mubr.f32.gmra.mrb[0].mxu0 %v1022
      %v1239 = vpop.f32.mrb[0].mxu0
      %v1240 = vadd.f32 %v940, %v1239
      %v1241 = vpop.f32.mrb[0].mxu0
      %1242 = vmatprep.mubr.f32.mxu0 0.0
      %1243 = vmatmul.mubr.f32.gmra.mrb[0].mxu0 %v1025
      %v1244 = vpop.f32.mrb[0].mxu0
      %v1245 = vadd.f32 %v940, %v1244
      %v1246 = vpop.f32.mrb[0].mxu0
      %1247 = vmatprep.mubr.f32.mxu0 0.0
      %1248 = vmatmul.mubr.f32.gmra.mrb[0].mxu0 %v1028
      %v1249 = vpop.f32.mrb[0].mxu0
      %v1250 = vadd.f32 %v940, %v1249
      %v1251 = vpop.f32.mrb[0].mxu0
      %1252 = vmatprep.mubr.f32.mxu0 0.0
      %1253 = vmatmul.mubr.f32.gmra.mrb[0].mxu0 %v1031
      %v1254 = vpop.f32.mrb[0].mxu0
      %v1255 = vadd.f32 %v940, %v1254
      %v1256 = vpop.f32.mrb[0].mxu0
      %1257 = vmatprep.mubr.f32.mxu0 0.0
      %1258 = vmatmul.mubr.f32.gmra.mrb[0].mxu0 %v1034
      %v1259 = vpop.f32.mrb[0].mxu0
      %v1260 = vadd.f32 %v940, %v1259
      %v1261 = vpop.f32.mrb[0].mxu0
      %1262 = vmatprep.mubr.f32.mxu0 0.0
      %1263 = vmatmul.mubr.f32.gmra.mrb[0].mxu0 %v1037
      %v1264 = vpop.f32.mrb[0].mxu0
      %v1265 = vadd.f32 %v940, %v1264
      %v1266 = vpop.f32.mrb[0].mxu0
      %1267 = vdwg.mxu0
      %v1268 = vld [vmem:[%s6] sm:$0xff]
      %v1269 = vld [vmem:[%s6 + $0x8] sm:$0xff]
      %v1270 = vld [vmem:[%s6 + $0x10] sm:$0xff]
      %v1271 = vld [vmem:[%s6 + $0x18] sm:$0xff]
      %v1272 = vld [vmem:[%s844] sm:$0xff]
      %v1273 = vld [vmem:[%s844 + $0x8] sm:$0xff]
      %v1274 = vld [vmem:[%s844 + $0x10] sm:$0xff]
      %v1275 = vld [vmem:[%s844 + $0x18] sm:$0xff]
      %v1276 = vld [vmem:[%s850] sm:$0xf]
      %v1278 = vsel %vm942, %v1272, 0
      %v1281 = vsel %vm942, %v1273, 0
      %v1284 = vsel %vm942, %v1274, 0
      %v1287 = vsel %vm942, %v1275, 0
      %v1290 = vsel %vm1039, %v1276, 0
      %1292 = vmatprep.subr.mxu0 0.0
      %1293 = vmatpush1.msra.mxu0 %v1290
      %1294 = vmatprep.subr.mxu0 0.0
      %1295 = vmatpush1.msra.mxu0 0.0
      %1296 = vmatprep.subr.mxu0 0.0
      %1297 = vmatpush1.msra.mxu0 0.0
      %1298 = vmatprep.subr.mxu0 0.0
      %1299 = vmatpush1.msra.mxu0 0.0
      %1300 = vmatprep.subr.mxu0 0.0
      %1301 = vmatpush1.msra.mxu0 0.0
      %1302 = vmatprep.subr.mxu0 0.0
      %1303 = vmatpush1.msra.mxu0 0.0
      %1304 = vmatprep.subr.mxu0 0.0
      %1305 = vmatpush1.msra.mxu0 0.0
      %1306 = vmatprep.subr.mxu0 0.0
      %1307 = vmatpush1.msra.mxu0 0.0
      %1308 = vmatprep.subr.mxu0 0.0
      %1309 = vmatpush1.msra.mxu0 0.0
      %1310 = vmatprep.subr.mxu0 0.0
      %1311 = vmatpush1.msra.mxu0 0.0
      %1312 = vmatprep.subr.mxu0 0.0
      %1313 = vmatpush1.msra.mxu0 0.0
      %1314 = vmatprep.subr.mxu0 0.0
      %1315 = vmatpush1.msra.mxu0 0.0
      %1316 = vmatprep.subr.mxu0 0.0
      %1317 = vmatpush1.msra.mxu0 0.0
      %1318 = vmatprep.subr.mxu0 0.0
      %1319 = vmatpush1.msra.mxu0 0.0
      %1320 = vmatprep.subr.mxu0 0.0
      %1321 = vmatpush1.msra.mxu0 0.0
      %1322 = vmatprep.subr.mxu0 0.0
      %1323 = vmatpush1.msra.mxu0 0.0
      %1324 = vmatprep.subr.mxu0 0.0
      %1325 = vmatpush1.msra.mxu0 0.0
      %1326 = vmatprep.subr.mxu0 0.0
      %1327 = vmatpush1.msra.mxu0 0.0
      %1328 = vmatprep.subr.mxu0 0.0
      %1329 = vmatpush1.msra.mxu0 0.0
      %1330 = vmatprep.subr.mxu0 0.0
      %1331 = vmatpush1.msra.mxu0 0.0
      %1332 = vmatprep.subr.mxu0 0.0
      %1333 = vmatpush1.msra.mxu0 0.0
      %1334 = vmatprep.subr.mxu0 0.0
      %1335 = vmatpush1.msra.mxu0 0.0
      %1336 = vmatprep.subr.mxu0 0.0
      %1337 = vmatpush1.msra.mxu0 0.0
      %1338 = vmatprep.subr.mxu0 0.0
      %1339 = vmatpush1.msra.mxu0 0.0
      %1340 = vmatprep.subr.mxu0 0.0
      %1341 = vmatpush1.msra.mxu0 0.0
      %1342 = vmatprep.subr.mxu0 0.0
      %1343 = vmatpush1.msra.mxu0 0.0
      %1344 = vmatprep.subr.mxu0 0.0
      %1345 = vmatpush1.msra.mxu0 0.0
      %1346 = vmatprep.subr.mxu0 0.0
      %1347 = vmatpush1.msra.mxu0 0.0
      %1348 = vmatprep.subr.mxu0 0.0
      %1349 = vmatpush1.msra.mxu0 0.0
      %1350 = vmatprep.subr.mxu0 0.0
      %1351 = vmatpush1.msra.mxu0 0.0
      %1352 = vmatprep.subr.mxu0 0.0
      %1353 = vmatpush1.msra.mxu0 0.0
      %1354 = vmatprep.subr.mxu0 0.0
      %1355 = vmatpush1.msra.mxu0 0.0
      %1356 = vmatprep.mubr.f32.mxu0 0.0
      %1357 = vmatmul.mubr.f32.gmra.mrb[0].mxu0 %v1278
      %v1358 = vpop.f32.mrb[0].mxu0
      %v1359 = vadd.f32 0.0, %v1358
      %v1360 = vpop.f32.mrb[0].mxu0
      %1361 = vmatprep.mubr.f32.mxu0 0.0
      %1362 = vmatmul.mubr.f32.gmra.mrb[0].mxu0 %v1281
      %v1363 = vpop.f32.mrb[0].mxu0
      %v1364 = vadd.f32 0.0, %v1363
      %v1365 = vpop.f32.mrb[0].mxu0
      %1366 = vmatprep.mubr.f32.mxu0 0.0
      %1367 = vmatmul.mubr.f32.gmra.mrb[0].mxu0 %v1284
      %v1368 = vpop.f32.mrb[0].mxu0
      %v1369 = vadd.f32 0.0, %v1368
      %v1370 = vpop.f32.mrb[0].mxu0
      %1371 = vmatprep.mubr.f32.mxu0 0.0
      %1372 = vmatmul.mubr.f32.gmra.mrb[0].mxu0 %v1287
      %v1373 = vpop.f32.mrb[0].mxu0
      %v1374 = vadd.f32 0.0, %v1373
      %v1375 = vpop.f32.mrb[0].mxu0
      %1376 = vdwg.mxu0
      %v1377 = vadd.f32 %v1268, %v1359
      %v1378 = vadd.f32 %v1269, %v1364
      %v1379 = vadd.f32 %v1270, %v1369
      %v1380 = vadd.f32 %v1271, %v1374
      %vm1381 = vcmask 261120
      %v1383 = vsel %vm1381, %v1110, 0
      %v1386 = vsel %vm1381, %v1115, 0
      %v1389 = vsel %vm1381, %v1120, 0
      %v1392 = vsel %vm1381, %v1125, 0
      %v1395 = vsel %vm1381, %v1130, 0
      %v1398 = vsel %vm1381, %v1135, 0
      %v1401 = vsel %vm1381, %v1140, 0
      %v1404 = vsel %vm1381, %v1145, 0
      %v1407 = vsel %vm1381, %v1150, 0
      %v1410 = vsel %vm1381, %v1155, 0
      %v1413 = vsel %vm1381, %v1160, 0
      %v1416 = vsel %vm1381, %v1165, 0
      %v1419 = vsel %vm1381, %v1170, 0
      %v1422 = vsel %vm1381, %v1175, 0
      %v1425 = vsel %vm1381, %v1180, 0
      %v1428 = vsel %vm1381, %v1185, 0
      %v1431 = vsel %vm1381, %v1190, 0
      %v1434 = vsel %vm1381, %v1195, 0
      %v1437 = vsel %vm1381, %v1200, 0
      %v1440 = vsel %vm1381, %v1205, 0
      %v1443 = vsel %vm1381, %v1210, 0
      %v1446 = vsel %vm1381, %v1215, 0
      %v1449 = vsel %vm1381, %v1220, 0
      %v1452 = vsel %vm1381, %v1225, 0
      %v1455 = vsel %vm1381, %v1230, 0
      %v1458 = vsel %vm1381, %v1235, 0
      %v1461 = vsel %vm1381, %v1240, 0
      %v1464 = vsel %vm1381, %v1245, 0
      %v1467 = vsel %vm1381, %v1250, 0
      %v1470 = vsel %vm1381, %v1255, 0
      %v1473 = vsel %vm1381, %v1260, 0
      %v1476 = vsel %vm1381, %v1265, 0
      %1478 = vmatprep.subr.mxu0 0.0
      %1479 = vmatpush1.msra.mxu0 %v1377
      %1480 = vmatprep.subr.mxu0 0.0
      %1481 = vmatpush1.msra.mxu0 %v1378
      %1482 = vmatprep.subr.mxu0 0.0
      %1483 = vmatpush1.msra.mxu0 %v1379
      %1484 = vmatprep.subr.mxu0 0.0
      %1485 = vmatpush1.msra.mxu0 %v1380
      %1486 = vmatprep.subr.mxu0 0.0
      %1487 = vmatpush1.msra.mxu0 0.0
      %1488 = vmatprep.subr.mxu0 0.0
      %1489 = vmatpush1.msra.mxu0 0.0
      %1490 = vmatprep.subr.mxu0 0.0
      %1491 = vmatpush1.msra.mxu0 0.0
      %1492 = vmatprep.subr.mxu0 0.0
      %1493 = vmatpush1.msra.mxu0 0.0
      %1494 = vmatprep.subr.mxu0 0.0
      %1495 = vmatpush1.msra.mxu0 0.0
      %1496 = vmatprep.subr.mxu0 0.0
      %1497 = vmatpush1.msra.mxu0 0.0
      %1498 = vmatprep.subr.mxu0 0.0
      %1499 = vmatpush1.msra.mxu0 0.0
      %1500 = vmatprep.subr.mxu0 0.0
      %1501 = vmatpush1.msra.mxu0 0.0
      %1502 = vmatprep.subr.mxu0 0.0
      %1503 = vmatpush1.msra.mxu0 0.0
      %1504 = vmatprep.subr.mxu0 0.0
      %1505 = vmatpush1.msra.mxu0 0.0
      %1506 = vmatprep.subr.mxu0 0.0
      %1507 = vmatpush1.msra.mxu0 0.0
      %1508 = vmatprep.subr.mxu0 0.0
      %1509 = vmatpush1.msra.mxu0 0.0
      %1510 = vmatprep.subr.mxu0 0.0
      %1511 = vmatpush1.msra.mxu0 0.0
      %1512 = vmatprep.subr.mxu0 0.0
      %1513 = vmatpush1.msra.mxu0 0.0
      %1514 = vmatprep.subr.mxu0 0.0
      %1515 = vmatpush1.msra.mxu0 0.0
      %1516 = vmatprep.subr.mxu0 0.0
      %1517 = vmatpush1.msra.mxu0 0.0
      %1518 = vmatprep.subr.mxu0 0.0
      %1519 = vmatpush1.msra.mxu0 0.0
      %1520 = vmatprep.subr.mxu0 0.0
      %1521 = vmatpush1.msra.mxu0 0.0
      %1522 = vmatprep.subr.mxu0 0.0
      %1523 = vmatpush1.msra.mxu0 0.0
      %1524 = vmatprep.subr.mxu0 0.0
      %1525 = vmatpush1.msra.mxu0 0.0
      %1526 = vmatprep.subr.mxu0 0.0
      %1527 = vmatpush1.msra.mxu0 0.0
      %1528 = vmatprep.subr.mxu0 0.0
      %1529 = vmatpush1.msra.mxu0 0.0
      %1530 = vmatprep.subr.mxu0 0.0
      %1531 = vmatpush1.msra.mxu0 0.0
      %1532 = vmatprep.subr.mxu0 0.0
      %1533 = vmatpush1.msra.mxu0 0.0
      %1534 = vmatprep.subr.mxu0 0.0
      %1535 = vmatpush1.msra.mxu0 0.0
      %1536 = vmatprep.subr.mxu0 0.0
      %1537 = vmatpush1.msra.mxu0 0.0
      %1538 = vmatprep.subr.mxu0 0.0
      %1539 = vmatpush1.msra.mxu0 0.0
      %1540 = vmatprep.subr.mxu0 0.0
      %1541 = vmatpush1.msra.mxu0 0.0
      %1542 = vmatprep.mubr.f32.mxu0 0.0
      %1543 = vmatmul.mubr.f32.gmra.mrb[0].mxu0 %v1383
      %v1544 = vpop.f32.mrb[0].mxu0
      %v1545 = vadd.f32 0.0, %v1544
      %v1546 = vpop.f32.mrb[0].mxu0
      %1547 = vmatprep.mubr.f32.mxu0 0.0
      %1548 = vmatmul.mubr.f32.gmra.mrb[0].mxu0 %v1386
      %v1549 = vpop.f32.mrb[0].mxu0
      %v1550 = vadd.f32 0.0, %v1549
      %v1551 = vpop.f32.mrb[0].mxu0
      %1552 = vmatprep.mubr.f32.mxu0 0.0
      %1553 = vmatmul.mubr.f32.gmra.mrb[0].mxu0 %v1389
      %v1554 = vpop.f32.mrb[0].mxu0
      %v1555 = vadd.f32 0.0, %v1554
      %v1556 = vpop.f32.mrb[0].mxu0
      %1557 = vmatprep.mubr.f32.mxu0 0.0
      %1558 = vmatmul.mubr.f32.gmra.mrb[0].mxu0 %v1392
      %v1559 = vpop.f32.mrb[0].mxu0
      %v1560 = vadd.f32 0.0, %v1559
      %v1561 = vpop.f32.mrb[0].mxu0
      %1562 = vmatprep.mubr.f32.mxu0 0.0
      %1563 = vmatmul.mubr.f32.gmra.mrb[0].mxu0 %v1395
      %v1564 = vpop.f32.mrb[0].mxu0
      %v1565 = vadd.f32 0.0, %v1564
      %v1566 = vpop.f32.mrb[0].mxu0
      %1567 = vmatprep.mubr.f32.mxu0 0.0
      %1568 = vmatmul.mubr.f32.gmra.mrb[0].mxu0 %v1398
      %v1569 = vpop.f32.mrb[0].mxu0
      %v1570 = vadd.f32 0.0, %v1569
      %v1571 = vpop.f32.mrb[0].mxu0
      %1572 = vmatprep.mubr.f32.mxu0 0.0
      %1573 = vmatmul.mubr.f32.gmra.mrb[0].mxu0 %v1401
      %v1574 = vpop.f32.mrb[0].mxu0
      %v1575 = vadd.f32 0.0, %v1574
      %v1576 = vpop.f32.mrb[0].mxu0
      %1577 = vmatprep.mubr.f32.mxu0 0.0
      %1578 = vmatmul.mubr.f32.gmra.mrb[0].mxu0 %v1404
      %v1579 = vpop.f32.mrb[0].mxu0
      %v1580 = vadd.f32 0.0, %v1579
      %v1581 = vpop.f32.mrb[0].mxu0
      %1582 = vmatprep.mubr.f32.mxu0 0.0
      %1583 = vmatmul.mubr.f32.gmra.mrb[0].mxu0 %v1407
      %v1584 = vpop.f32.mrb[0].mxu0
      %v1585 = vadd.f32 0.0, %v1584
      %v1586 = vpop.f32.mrb[0].mxu0
      %1587 = vmatprep.mubr.f32.mxu0 0.0
      %1588 = vmatmul.mubr.f32.gmra.mrb[0].mxu0 %v1410
      %v1589 = vpop.f32.mrb[0].mxu0
      %v1590 = vadd.f32 0.0, %v1589
      %v1591 = vpop.f32.mrb[0].mxu0
      %1592 = vmatprep.mubr.f32.mxu0 0.0
      %1593 = vmatmul.mubr.f32.gmra.mrb[0].mxu0 %v1413
      %v1594 = vpop.f32.mrb[0].mxu0
      %v1595 = vadd.f32 0.0, %v1594
      %v1596 = vpop.f32.mrb[0].mxu0
      %1597 = vmatprep.mubr.f32.mxu0 0.0
      %1598 = vmatmul.mubr.f32.gmra.mrb[0].mxu0 %v1416
      %v1599 = vpop.f32.mrb[0].mxu0
      %v1600 = vadd.f32 0.0, %v1599
      %v1601 = vpop.f32.mrb[0].mxu0
      %1602 = vmatprep.mubr.f32.mxu0 0.0
      %1603 = vmatmul.mubr.f32.gmra.mrb[0].mxu0 %v1419
      %v1604 = vpop.f32.mrb[0].mxu0
      %v1605 = vadd.f32 0.0, %v1604
      %v1606 = vpop.f32.mrb[0].mxu0
      %1607 = vmatprep.mubr.f32.mxu0 0.0
      %1608 = vmatmul.mubr.f32.gmra.mrb[0].mxu0 %v1422
      %v1609 = vpop.f32.mrb[0].mxu0
      %v1610 = vadd.f32 0.0, %v1609
      %v1611 = vpop.f32.mrb[0].mxu0
      %1612 = vmatprep.mubr.f32.mxu0 0.0
      %1613 = vmatmul.mubr.f32.gmra.mrb[0].mxu0 %v1425
      %v1614 = vpop.f32.mrb[0].mxu0
      %v1615 = vadd.f32 0.0, %v1614
      %v1616 = vpop.f32.mrb[0].mxu0
      %1617 = vmatprep.mubr.f32.mxu0 0.0
      %1618 = vmatmul.mubr.f32.gmra.mrb[0].mxu0 %v1428
      %v1619 = vpop.f32.mrb[0].mxu0
      %v1620 = vadd.f32 0.0, %v1619
      %v1621 = vpop.f32.mrb[0].mxu0
      %1622 = vmatprep.mubr.f32.mxu0 0.0
      %1623 = vmatmul.mubr.f32.gmra.mrb[0].mxu0 %v1431
      %v1624 = vpop.f32.mrb[0].mxu0
      %v1625 = vadd.f32 0.0, %v1624
      %v1626 = vpop.f32.mrb[0].mxu0
      %1627 = vmatprep.mubr.f32.mxu0 0.0
      %1628 = vmatmul.mubr.f32.gmra.mrb[0].mxu0 %v1434
      %v1629 = vpop.f32.mrb[0].mxu0
      %v1630 = vadd.f32 0.0, %v1629
      %v1631 = vpop.f32.mrb[0].mxu0
      %1632 = vmatprep.mubr.f32.mxu0 0.0
      %1633 = vmatmul.mubr.f32.gmra.mrb[0].mxu0 %v1437
      %v1634 = vpop.f32.mrb[0].mxu0
      %v1635 = vadd.f32 0.0, %v1634
      %v1636 = vpop.f32.mrb[0].mxu0
      %1637 = vmatprep.mubr.f32.mxu0 0.0
      %1638 = vmatmul.mubr.f32.gmra.mrb[0].mxu0 %v1440
      %v1639 = vpop.f32.mrb[0].mxu0
      %v1640 = vadd.f32 0.0, %v1639
      %v1641 = vpop.f32.mrb[0].mxu0
      %1642 = vmatprep.mubr.f32.mxu0 0.0
      %1643 = vmatmul.mubr.f32.gmra.mrb[0].mxu0 %v1443
      %v1644 = vpop.f32.mrb[0].mxu0
      %v1645 = vadd.f32 0.0, %v1644
      %v1646 = vpop.f32.mrb[0].mxu0
      %1647 = vmatprep.mubr.f32.mxu0 0.0
      %1648 = vmatmul.mubr.f32.gmra.mrb[0].mxu0 %v1446
      %v1649 = vpop.f32.mrb[0].mxu0
      %v1650 = vadd.f32 0.0, %v1649
      %v1651 = vpop.f32.mrb[0].mxu0
      %1652 = vmatprep.mubr.f32.mxu0 0.0
      %1653 = vmatmul.mubr.f32.gmra.mrb[0].mxu0 %v1449
      %v1654 = vpop.f32.mrb[0].mxu0
      %v1655 = vadd.f32 0.0, %v1654
      %v1656 = vpop.f32.mrb[0].mxu0
      %1657 = vmatprep.mubr.f32.mxu0 0.0
      %1658 = vmatmul.mubr.f32.gmra.mrb[0].mxu0 %v1452
      %v1659 = vpop.f32.mrb[0].mxu0
      %v1660 = vadd.f32 0.0, %v1659
      %v1661 = vpop.f32.mrb[0].mxu0
      %1662 = vmatprep.mubr.f32.mxu0 0.0
      %1663 = vmatmul.mubr.f32.gmra.mrb[0].mxu0 %v1455
      %v1664 = vpop.f32.mrb[0].mxu0
      %v1665 = vadd.f32 0.0, %v1664
      %v1666 = vpop.f32.mrb[0].mxu0
      %1667 = vmatprep.mubr.f32.mxu0 0.0
      %1668 = vmatmul.mubr.f32.gmra.mrb[0].mxu0 %v1458
      %v1669 = vpop.f32.mrb[0].mxu0
      %v1670 = vadd.f32 0.0, %v1669
      %v1671 = vpop.f32.mrb[0].mxu0
      %1672 = vmatprep.mubr.f32.mxu0 0.0
      %1673 = vmatmul.mubr.f32.gmra.mrb[0].mxu0 %v1461
      %v1674 = vpop.f32.mrb[0].mxu0
      %v1675 = vadd.f32 0.0, %v1674
      %v1676 = vpop.f32.mrb[0].mxu0
      %1677 = vmatprep.mubr.f32.mxu0 0.0
      %1678 = vmatmul.mubr.f32.gmra.mrb[0].mxu0 %v1464
      %v1679 = vpop.f32.mrb[0].mxu0
      %v1680 = vadd.f32 0.0, %v1679
      %v1681 = vpop.f32.mrb[0].mxu0
      %1682 = vmatprep.mubr.f32.mxu0 0.0
      %1683 = vmatmul.mubr.f32.gmra.mrb[0].mxu0 %v1467
      %v1684 = vpop.f32.mrb[0].mxu0
      %v1685 = vadd.f32 0.0, %v1684
      %v1686 = vpop.f32.mrb[0].mxu0
      %1687 = vmatprep.mubr.f32.mxu0 0.0
      %1688 = vmatmul.mubr.f32.gmra.mrb[0].mxu0 %v1470
      %v1689 = vpop.f32.mrb[0].mxu0
      %v1690 = vadd.f32 0.0, %v1689
      %v1691 = vpop.f32.mrb[0].mxu0
      %1692 = vmatprep.mubr.f32.mxu0 0.0
      %1693 = vmatmul.mubr.f32.gmra.mrb[0].mxu0 %v1473
      %v1694 = vpop.f32.mrb[0].mxu0
      %v1695 = vadd.f32 0.0, %v1694
      %v1696 = vpop.f32.mrb[0].mxu0
      %1697 = vmatprep.mubr.f32.mxu0 0.0
      %1698 = vmatmul.mubr.f32.gmra.mrb[0].mxu0 %v1476
      %v1699 = vpop.f32.mrb[0].mxu0
      %v1700 = vadd.f32 0.0, %v1699
      %v1701 = vpop.f32.mrb[0].mxu0
      %1702 = vdwg.mxu0
      %v1703 = vld [vmem:[%s9] sm:$0xff]
      %v1704 = vld [vmem:[%s9 + $0x8] sm:$0xff]
      %v1705 = vld [vmem:[%s9 + $0x10] sm:$0xff]
      %v1706 = vld [vmem:[%s9 + $0x18] sm:$0xff]
      %v1707 = vld [vmem:[%s857] sm:$0xff]
      %v1708 = vld [vmem:[%s857 + $0x8] sm:$0xff]
      %v1709 = vld [vmem:[%s857 + $0x10] sm:$0xff]
      %v1710 = vld [vmem:[%s857 + $0x18] sm:$0xff]
      %v1711 = vld [vmem:[%s863] sm:$0xf]
      %v1713 = vsel %vm942, %v1707, 0
      %v1716 = vsel %vm942, %v1708, 0
      %v1719 = vsel %vm942, %v1709, 0
      %v1722 = vsel %vm942, %v1710, 0
      %v1725 = vsel %vm1039, %v1711, 0
      %1727 = vmatprep.subr.mxu0 0.0
      %1728 = vmatpush1.msra.mxu0 %v1725
      %1729 = vmatprep.subr.mxu0 0.0
      %1730 = vmatpush1.msra.mxu0 0.0
      %1731 = vmatprep.subr.mxu0 0.0
      %1732 = vmatpush1.msra.mxu0 0.0
      %1733 = vmatprep.subr.mxu0 0.0
      %1734 = vmatpush1.msra.mxu0 0.0
      %1735 = vmatprep.subr.mxu0 0.0
      %1736 = vmatpush1.msra.mxu0 0.0
      %1737 = vmatprep.subr.mxu0 0.0
      %1738 = vmatpush1.msra.mxu0 0.0
      %1739 = vmatprep.subr.mxu0 0.0
      %1740 = vmatpush1.msra.mxu0 0.0
      %1741 = vmatprep.subr.mxu0 0.0
      %1742 = vmatpush1.msra.mxu0 0.0
      %1743 = vmatprep.subr.mxu0 0.0
      %1744 = vmatpush1.msra.mxu0 0.0
      %1745 = vmatprep.subr.mxu0 0.0
      %1746 = vmatpush1.msra.mxu0 0.0
      %1747 = vmatprep.subr.mxu0 0.0
      %1748 = vmatpush1.msra.mxu0 0.0
      %1749 = vmatprep.subr.mxu0 0.0
      %1750 = vmatpush1.msra.mxu0 0.0
      %1751 = vmatprep.subr.mxu0 0.0
      %1752 = vmatpush1.msra.mxu0 0.0
      %1753 = vmatprep.subr.mxu0 0.0
      %1754 = vmatpush1.msra.mxu0 0.0
      %1755 = vmatprep.subr.mxu0 0.0
      %1756 = vmatpush1.msra.mxu0 0.0
      %1757 = vmatprep.subr.mxu0 0.0
      %1758 = vmatpush1.msra.mxu0 0.0
      %1759 = vmatprep.subr.mxu0 0.0
      %1760 = vmatpush1.msra.mxu0 0.0
      %1761 = vmatprep.subr.mxu0 0.0
      %1762 = vmatpush1.msra.mxu0 0.0
      %1763 = vmatprep.subr.mxu0 0.0
      %1764 = vmatpush1.msra.mxu0 0.0
      %1765 = vmatprep.subr.mxu0 0.0
      %1766 = vmatpush1.msra.mxu0 0.0
      %1767 = vmatprep.subr.mxu0 0.0
      %1768 = vmatpush1.msra.mxu0 0.0
      %1769 = vmatprep.subr.mxu0 0.0
      %1770 = vmatpush1.msra.mxu0 0.0
      %1771 = vmatprep.subr.mxu0 0.0
      %1772 = vmatpush1.msra.mxu0 0.0
      %1773 = vmatprep.subr.mxu0 0.0
      %1774 = vmatpush1.msra.mxu0 0.0
      %1775 = vmatprep.subr.mxu0 0.0
      %1776 = vmatpush1.msra.mxu0 0.0
      %1777 = vmatprep.subr.mxu0 0.0
      %1778 = vmatpush1.msra.mxu0 0.0
      %1779 = vmatprep.subr.mxu0 0.0
      %1780 = vmatpush1.msra.mxu0 0.0
      %1781 = vmatprep.subr.mxu0 0.0
      %1782 = vmatpush1.msra.mxu0 0.0
      %1783 = vmatprep.subr.mxu0 0.0
      %1784 = vmatpush1.msra.mxu0 0.0
      %1785 = vmatprep.subr.mxu0 0.0
      %1786 = vmatpush1.msra.mxu0 0.0
      %1787 = vmatprep.subr.mxu0 0.0
      %1788 = vmatpush1.msra.mxu0 0.0
      %1789 = vmatprep.subr.mxu0 0.0
      %1790 = vmatpush1.msra.mxu0 0.0
      %1791 = vmatprep.mubr.f32.mxu0 0.0
      %1792 = vmatmul.mubr.f32.gmra.mrb[0].mxu0 %v1713
      %v1793 = vpop.f32.mrb[0].mxu0
      %v1794 = vadd.f32 0.0, %v1793
      %v1795 = vpop.f32.mrb[0].mxu0
      %1796 = vmatprep.mubr.f32.mxu0 0.0
      %1797 = vmatmul.mubr.f32.gmra.mrb[0].mxu0 %v1716
      %v1798 = vpop.f32.mrb[0].mxu0
      %v1799 = vadd.f32 0.0, %v1798
      %v1800 = vpop.f32.mrb[0].mxu0
      %1801 = vmatprep.mubr.f32.mxu0 0.0
      %1802 = vmatmul.mubr.f32.gmra.mrb[0].mxu0 %v1719
      %v1803 = vpop.f32.mrb[0].mxu0
      %v1804 = vadd.f32 0.0, %v1803
      %v1805 = vpop.f32.mrb[0].mxu0
      %1806 = vmatprep.mubr.f32.mxu0 0.0
      %1807 = vmatmul.mubr.f32.gmra.mrb[0].mxu0 %v1722
      %v1808 = vpop.f32.mrb[0].mxu0
      %v1809 = vadd.f32 0.0, %v1808
      %v1810 = vpop.f32.mrb[0].mxu0
      %1811 = vdwg.mxu0
      %v1812 = vadd.f32 %v1703, %v1794
      %v1813 = vadd.f32 %v1704, %v1799
      %v1814 = vadd.f32 %v1705, %v1804
      %v1815 = vadd.f32 %v1706, %v1809
      %v1817 = vsel %vm1381, %v933, 0
      %1819 = vmatprep.subr.mxu0 0.0
      %1820 = vmatpush1.msra.mxu0 %v1812
      %1821 = vmatprep.subr.mxu0 0.0
      %1822 = vmatpush1.msra.mxu0 %v1813
      %1823 = vmatprep.subr.mxu0 0.0
      %1824 = vmatpush1.msra.mxu0 %v1814
      %1825 = vmatprep.subr.mxu0 0.0
      %1826 = vmatpush1.msra.mxu0 %v1815
      %1827 = vmatprep.subr.mxu0 0.0
      %1828 = vmatpush1.msra.mxu0 0.0
      %1829 = vmatprep.subr.mxu0 0.0
      %1830 = vmatpush1.msra.mxu0 0.0
      %1831 = vmatprep.subr.mxu0 0.0
      %1832 = vmatpush1.msra.mxu0 0.0
      %1833 = vmatprep.subr.mxu0 0.0
      %1834 = vmatpush1.msra.mxu0 0.0
      %1835 = vmatprep.subr.mxu0 0.0
      %1836 = vmatpush1.msra.mxu0 0.0
      %1837 = vmatprep.subr.mxu0 0.0
      %1838 = vmatpush1.msra.mxu0 0.0
      %1839 = vmatprep.subr.mxu0 0.0
      %1840 = vmatpush1.msra.mxu0 0.0
      %1841 = vmatprep.subr.mxu0 0.0
      %1842 = vmatpush1.msra.mxu0 0.0
      %1843 = vmatprep.subr.mxu0 0.0
      %1844 = vmatpush1.msra.mxu0 0.0
      %1845 = vmatprep.subr.mxu0 0.0
      %1846 = vmatpush1.msra.mxu0 0.0
      %1847 = vmatprep.subr.mxu0 0.0
      %1848 = vmatpush1.msra.mxu0 0.0
      %1849 = vmatprep.subr.mxu0 0.0
      %1850 = vmatpush1.msra.mxu0 0.0
      %1851 = vmatprep.subr.mxu0 0.0
      %1852 = vmatpush1.msra.mxu0 0.0
      %1853 = vmatprep.subr.mxu0 0.0
      %1854 = vmatpush1.msra.mxu0 0.0
      %1855 = vmatprep.subr.mxu0 0.0
      %1856 = vmatpush1.msra.mxu0 0.0
      %1857 = vmatprep.subr.mxu0 0.0
      %1858 = vmatpush1.msra.mxu0 0.0
      %1859 = vmatprep.subr.mxu0 0.0
      %1860 = vmatpush1.msra.mxu0 0.0
      %1861 = vmatprep.subr.mxu0 0.0
      %1862 = vmatpush1.msra.mxu0 0.0
      %1863 = vmatprep.subr.mxu0 0.0
      %1864 = vmatpush1.msra.mxu0 0.0
      %1865 = vmatprep.subr.mxu0 0.0
      %1866 = vmatpush1.msra.mxu0 0.0
      %1867 = vmatprep.subr.mxu0 0.0
      %1868 = vmatpush1.msra.mxu0 0.0
      %1869 = vmatprep.subr.mxu0 0.0
      %1870 = vmatpush1.msra.mxu0 0.0
      %1871 = vmatprep.subr.mxu0 0.0
      %1872 = vmatpush1.msra.mxu0 0.0
      %1873 = vmatprep.subr.mxu0 0.0
      %1874 = vmatpush1.msra.mxu0 0.0
      %1875 = vmatprep.subr.mxu0 0.0
      %1876 = vmatpush1.msra.mxu0 0.0
      %1877 = vmatprep.subr.mxu0 0.0
      %1878 = vmatpush1.msra.mxu0 0.0
      %1879 = vmatprep.subr.mxu0 0.0
      %1880 = vmatpush1.msra.mxu0 0.0
      %1881 = vmatprep.subr.mxu0 0.0
      %1882 = vmatpush1.msra.mxu0 0.0
      %1883 = vmatprep.mubr.f32.mxu0 0.0
      %1884 = vmatmul.mubr.f32.gmra.mrb[0].mxu0 %v1817
      %v1885 = vpop.f32.mrb[0].mxu0
      %v1886 = vadd.f32 0.0, %v1885
      %v1887 = vpop.f32.mrb[0].mxu0
      %1888 = vdwg.mxu0
      %v1889 = vld [vmem:[%s12] sm:$0xff]
      %v1890 = vld [vmem:[%s12 + $0x8] sm:$0xff]
      %v1891 = vld [vmem:[%s12 + $0x10] sm:$0xff]
      %v1892 = vld [vmem:[%s12 + $0x18] sm:$0xff]
      %v1893 = vld [vmem:[%s870] sm:$0xff]
      %v1894 = vld [vmem:[%s870 + $0x8] sm:$0xff]
      %v1895 = vld [vmem:[%s870 + $0x10] sm:$0xff]
      %v1896 = vld [vmem:[%s870 + $0x18] sm:$0xff]
      %v1897 = vld [vmem:[%s876] sm:$0xf]
      %v1899 = vsel %vm942, %v1893, 0
      %v1902 = vsel %vm942, %v1894, 0
      %v1905 = vsel %vm942, %v1895, 0
      %v1908 = vsel %vm942, %v1896, 0
      %v1911 = vsel %vm1039, %v1897, 0
      %1913 = vmatprep.subr.mxu0 0.0
      %1914 = vmatpush1.msra.mxu0 %v1911
      %1915 = vmatprep.subr.mxu0 0.0
      %1916 = vmatpush1.msra.mxu0 0.0
      %1917 = vmatprep.subr.mxu0 0.0
      %1918 = vmatpush1.msra.mxu0 0.0
      %1919 = vmatprep.subr.mxu0 0.0
      %1920 = vmatpush1.msra.mxu0 0.0
      %1921 = vmatprep.subr.mxu0 0.0
      %1922 = vmatpush1.msra.mxu0 0.0
      %1923 = vmatprep.subr.mxu0 0.0
      %1924 = vmatpush1.msra.mxu0 0.0
      %1925 = vmatprep.subr.mxu0 0.0
      %1926 = vmatpush1.msra.mxu0 0.0
      %1927 = vmatprep.subr.mxu0 0.0
      %1928 = vmatpush1.msra.mxu0 0.0
      %1929 = vmatprep.subr.mxu0 0.0
      %1930 = vmatpush1.msra.mxu0 0.0
      %1931 = vmatprep.subr.mxu0 0.0
      %1932 = vmatpush1.msra.mxu0 0.0
      %1933 = vmatprep.subr.mxu0 0.0
      %1934 = vmatpush1.msra.mxu0 0.0
      %1935 = vmatprep.subr.mxu0 0.0
      %1936 = vmatpush1.msra.mxu0 0.0
      %1937 = vmatprep.subr.mxu0 0.0
      %1938 = vmatpush1.msra.mxu0 0.0
      %1939 = vmatprep.subr.mxu0 0.0
      %1940 = vmatpush1.msra.mxu0 0.0
      %1941 = vmatprep.subr.mxu0 0.0
      %1942 = vmatpush1.msra.mxu0 0.0
      %1943 = vmatprep.subr.mxu0 0.0
      %1944 = vmatpush1.msra.mxu0 0.0
      %1945 = vmatprep.subr.mxu0 0.0
      %1946 = vmatpush1.msra.mxu0 0.0
      %1947 = vmatprep.subr.mxu0 0.0
      %1948 = vmatpush1.msra.mxu0 0.0
      %1949 = vmatprep.subr.mxu0 0.0
      %1950 = vmatpush1.msra.mxu0 0.0
      %1951 = vmatprep.subr.mxu0 0.0
      %1952 = vmatpush1.msra.mxu0 0.0
      %1953 = vmatprep.subr.mxu0 0.0
      %1954 = vmatpush1.msra.mxu0 0.0
      %1955 = vmatprep.subr.mxu0 0.0
      %1956 = vmatpush1.msra.mxu0 0.0
      %1957 = vmatprep.subr.mxu0 0.0
      %1958 = vmatpush1.msra.mxu0 0.0
      %1959 = vmatprep.subr.mxu0 0.0
      %1960 = vmatpush1.msra.mxu0 0.0
      %1961 = vmatprep.subr.mxu0 0.0
      %1962 = vmatpush1.msra.mxu0 0.0
      %1963 = vmatprep.subr.mxu0 0.0
      %1964 = vmatpush1.msra.mxu0 0.0
      %1965 = vmatprep.subr.mxu0 0.0
      %1966 = vmatpush1.msra.mxu0 0.0
      %1967 = vmatprep.subr.mxu0 0.0
      %1968 = vmatpush1.msra.mxu0 0.0
      %1969 = vmatprep.subr.mxu0 0.0
      %1970 = vmatpush1.msra.mxu0 0.0
      %1971 = vmatprep.subr.mxu0 0.0
      %1972 = vmatpush1.msra.mxu0 0.0
      %1973 = vmatprep.subr.mxu0 0.0
      %1974 = vmatpush1.msra.mxu0 0.0
      %1975 = vmatprep.subr.mxu0 0.0
      %1976 = vmatpush1.msra.mxu0 0.0
      %1977 = vmatprep.mubr.f32.mxu0 0.0
      %1978 = vmatmul.mubr.f32.gmra.mrb[0].mxu0 %v1899
      %v1979 = vpop.f32.mrb[0].mxu0
      %v1980 = vadd.f32 0.0, %v1979
      %v1981 = vpop.f32.mrb[0].mxu0
      %1982 = vmatprep.mubr.f32.mxu0 0.0
      %1983 = vmatmul.mubr.f32.gmra.mrb[0].mxu0 %v1902
      %v1984 = vpop.f32.mrb[0].mxu0
      %v1985 = vadd.f32 0.0, %v1984
      %v1986 = vpop.f32.mrb[0].mxu0
      %1987 = vmatprep.mubr.f32.mxu0 0.0
      %1988 = vmatmul.mubr.f32.gmra.mrb[0].mxu0 %v1905
      %v1989 = vpop.f32.mrb[0].mxu0
      %v1990 = vadd.f32 0.0, %v1989
      %v1991 = vpop.f32.mrb[0].mxu0
      %1992 = vmatprep.mubr.f32.mxu0 0.0
      %1993 = vmatmul.mubr.f32.gmra.mrb[0].mxu0 %v1908
      %v1994 = vpop.f32.mrb[0].mxu0
      %v1995 = vadd.f32 0.0, %v1994
      %v1996 = vpop.f32.mrb[0].mxu0
      %1997 = vdwg.mxu0
      %v1998 = vadd.f32 %v1889, %v1980
      %v1999 = vadd.f32 %v1890, %v1985
      %v2000 = vadd.f32 %v1891, %v1990
      %v2001 = vadd.f32 %v1892, %v1995
      %2002 = vmatprep.subr.mxu0 0.0
      %2003 = vmatpush1.msra.mxu0 %v1998
      %2004 = vmatprep.subr.mxu0 0.0
      %2005 = vmatpush1.msra.mxu0 %v1999
      %2006 = vmatprep.subr.mxu0 0.0
      %2007 = vmatpush1.msra.mxu0 %v2000
      %2008 = vmatprep.subr.mxu0 0.0
      %2009 = vmatpush1.msra.mxu0 %v2001
      %2010 = vmatprep.subr.mxu0 0.0
      %2011 = vmatpush1.msra.mxu0 0.0
      %2012 = vmatprep.subr.mxu0 0.0
      %2013 = vmatpush1.msra.mxu0 0.0
      %2014 = vmatprep.subr.mxu0 0.0
      %2015 = vmatpush1.msra.mxu0 0.0
      %2016 = vmatprep.subr.mxu0 0.0
      %2017 = vmatpush1.msra.mxu0 0.0
      %2018 = vmatprep.subr.mxu0 0.0
      %2019 = vmatpush1.msra.mxu0 0.0
      %2020 = vmatprep.subr.mxu0 0.0
      %2021 = vmatpush1.msra.mxu0 0.0
      %2022 = vmatprep.subr.mxu0 0.0
      %2023 = vmatpush1.msra.mxu0 0.0
      %2024 = vmatprep.subr.mxu0 0.0
      %2025 = vmatpush1.msra.mxu0 0.0
      %2026 = vmatprep.subr.mxu0 0.0
      %2027 = vmatpush1.msra.mxu0 0.0
      %2028 = vmatprep.subr.mxu0 0.0
      %2029 = vmatpush1.msra.mxu0 0.0
      %2030 = vmatprep.subr.mxu0 0.0
      %2031 = vmatpush1.msra.mxu0 0.0
      %2032 = vmatprep.subr.mxu0 0.0
      %2033 = vmatpush1.msra.mxu0 0.0
      %2034 = vmatprep.subr.mxu0 0.0
      %2035 = vmatpush1.msra.mxu0 0.0
      %2036 = vmatprep.subr.mxu0 0.0
      %2037 = vmatpush1.msra.mxu0 0.0
      %2038 = vmatprep.subr.mxu0 0.0
      %2039 = vmatpush1.msra.mxu0 0.0
      %2040 = vmatprep.subr.mxu0 0.0
      %2041 = vmatpush1.msra.mxu0 0.0
      %2042 = vmatprep.subr.mxu0 0.0
      %2043 = vmatpush1.msra.mxu0 0.0
      %2044 = vmatprep.subr.mxu0 0.0
      %2045 = vmatpush1.msra.mxu0 0.0
      %2046 = vmatprep.subr.mxu0 0.0
      %2047 = vmatpush1.msra.mxu0 0.0
      %2048 = vmatprep.subr.mxu0 0.0
      %2049 = vmatpush1.msra.mxu0 0.0
      %2050 = vmatprep.subr.mxu0 0.0
      %2051 = vmatpush1.msra.mxu0 0.0
      %2052 = vmatprep.subr.mxu0 0.0
      %2053 = vmatpush1.msra.mxu0 0.0
      %2054 = vmatprep.subr.mxu0 0.0
      %2055 = vmatpush1.msra.mxu0 0.0
      %2056 = vmatprep.subr.mxu0 0.0
      %2057 = vmatpush1.msra.mxu0 0.0
      %2058 = vmatprep.subr.mxu0 0.0
      %2059 = vmatpush1.msra.mxu0 0.0
      %2060 = vmatprep.subr.mxu0 0.0
      %2061 = vmatpush1.msra.mxu0 0.0
      %2062 = vmatprep.subr.mxu0 0.0
      %2063 = vmatpush1.msra.mxu0 0.0
      %2064 = vmatprep.subr.mxu0 0.0
      %2065 = vmatpush1.msra.mxu0 0.0
      %2066 = vmatprep.mubr.f32.mxu0 0.0
      %2067 = vmatmul.mubr.f32.gmra.mrb[0].mxu0 %v1817
      %v2068 = vpop.f32.mrb[0].mxu0
      %v2069 = vadd.f32 0.0, %v2068
      %v2070 = vpop.f32.mrb[0].mxu0
      %2071 = vdwg.mxu0
      %v2073 = vsel %vm1381, %v1545, 0
      %v2076 = vsel %vm1381, %v1550, 0
      %v2079 = vsel %vm1381, %v1555, 0
      %v2082 = vsel %vm1381, %v1560, 0
      %v2085 = vsel %vm1381, %v1565, 0
      %v2088 = vsel %vm1381, %v1570, 0
      %v2091 = vsel %vm1381, %v1575, 0
      %v2094 = vsel %vm1381, %v1580, 0
      %v2097 = vsel %vm1381, %v1585, 0
      %v2100 = vsel %vm1381, %v1590, 0
      %v2103 = vsel %vm1381, %v1595, 0
      %v2106 = vsel %vm1381, %v1600, 0
      %v2109 = vsel %vm1381, %v1605, 0
      %v2112 = vsel %vm1381, %v1610, 0
      %v2115 = vsel %vm1381, %v1615, 0
      %v2118 = vsel %vm1381, %v1620, 0
      %v2121 = vsel %vm1381, %v1625, 0
      %v2124 = vsel %vm1381, %v1630, 0
      %v2127 = vsel %vm1381, %v1635, 0
      %v2130 = vsel %vm1381, %v1640, 0
      %v2133 = vsel %vm1381, %v1645, 0
      %v2136 = vsel %vm1381, %v1650, 0
      %v2139 = vsel %vm1381, %v1655, 0
      %v2142 = vsel %vm1381, %v1660, 0
      %v2145 = vsel %vm1381, %v1665, 0
      %v2148 = vsel %vm1381, %v1670, 0
      %v2151 = vsel %vm1381, %v1675, 0
      %v2154 = vsel %vm1381, %v1680, 0
      %v2157 = vsel %vm1381, %v1685, 0
      %v2160 = vsel %vm1381, %v1690, 0
      %v2163 = vsel %vm1381, %v1695, 0
      %v2166 = vsel %vm1381, %v1700, 0
      %v2169 = vsel %vm1381, %v1886, 0
      %2171 = vmatprep.subr.mxu0 0.0
      %2172 = vmatpush1.xpose.msra.mxu0 %v2169
      %2173 = vmatprep.subr.mxu0 0.0
      %2174 = vmatpush1.xpose.msra.mxu0 0.0
      %2175 = vmatprep.subr.mxu0 0.0
      %2176 = vmatpush1.xpose.msra.mxu0 0.0
      %2177 = vmatprep.subr.mxu0 0.0
      %2178 = vmatpush1.xpose.msra.mxu0 0.0
      %2179 = vmatprep.subr.mxu0 0.0
      %2180 = vmatpush1.xpose.msra.mxu0 0.0
      %2181 = vmatprep.subr.mxu0 0.0
      %2182 = vmatpush1.xpose.msra.mxu0 0.0
      %2183 = vmatprep.subr.mxu0 0.0
      %2184 = vmatpush1.xpose.msra.mxu0 0.0
      %2185 = vmatprep.subr.mxu0 0.0
      %2186 = vmatpush1.xpose.msra.mxu0 0.0
      %2187 = vmatprep.subr.mxu0 0.0
      %2188 = vmatpush1.xpose.msra.mxu0 0.0
      %2189 = vmatprep.subr.mxu0 0.0
      %2190 = vmatpush1.xpose.msra.mxu0 0.0
      %2191 = vmatprep.subr.mxu0 0.0
      %2192 = vmatpush1.xpose.msra.mxu0 0.0
      %2193 = vmatprep.subr.mxu0 0.0
      %2194 = vmatpush1.xpose.msra.mxu0 0.0
      %2195 = vmatprep.subr.mxu0 0.0
      %2196 = vmatpush1.xpose.msra.mxu0 0.0
      %2197 = vmatprep.subr.mxu0 0.0
      %2198 = vmatpush1.xpose.msra.mxu0 0.0
      %2199 = vmatprep.subr.mxu0 0.0
      %2200 = vmatpush1.xpose.msra.mxu0 0.0
      %2201 = vmatprep.subr.mxu0 0.0
      %2202 = vmatpush1.xpose.msra.mxu0 0.0
      %2203 = vmatprep.subr.mxu0 0.0
      %2204 = vmatpush1.xpose.msra.mxu0 0.0
      %2205 = vmatprep.subr.mxu0 0.0
      %2206 = vmatpush1.xpose.msra.mxu0 0.0
      %2207 = vmatprep.subr.mxu0 0.0
      %2208 = vmatpush1.xpose.msra.mxu0 0.0
      %2209 = vmatprep.subr.mxu0 0.0
      %2210 = vmatpush1.xpose.msra.mxu0 0.0
      %2211 = vmatprep.subr.mxu0 0.0
      %2212 = vmatpush1.xpose.msra.mxu0 0.0
      %2213 = vmatprep.subr.mxu0 0.0
      %2214 = vmatpush1.xpose.msra.mxu0 0.0
      %2215 = vmatprep.subr.mxu0 0.0
      %2216 = vmatpush1.xpose.msra.mxu0 0.0
      %2217 = vmatprep.subr.mxu0 0.0
      %2218 = vmatpush1.xpose.msra.mxu0 0.0
      %2219 = vmatprep.subr.mxu0 0.0
      %2220 = vmatpush1.xpose.msra.mxu0 0.0
      %2221 = vmatprep.subr.mxu0 0.0
      %2222 = vmatpush1.xpose.msra.mxu0 0.0
      %2223 = vmatprep.subr.mxu0 0.0
      %2224 = vmatpush1.xpose.msra.mxu0 0.0
      %2225 = vmatprep.subr.mxu0 0.0
      %2226 = vmatpush1.xpose.msra.mxu0 0.0
      %2227 = vmatprep.subr.mxu0 0.0
      %2228 = vmatpush1.xpose.msra.mxu0 0.0
      %2229 = vmatprep.subr.mxu0 0.0
      %2230 = vmatpush1.xpose.msra.mxu0 0.0
      %2231 = vmatprep.subr.mxu0 0.0
      %2232 = vmatpush1.xpose.msra.mxu0 0.0
      %2233 = vmatprep.subr.mxu0 0.0
      %2234 = vmatpush1.xpose.msra.mxu0 0.0
      %2235 = vmatprep.mubr.f32.mxu0 0.0
      %2236 = vmatmul.mubr.f32.gmra.mrb[0].mxu0 %v2073
      %v2237 = vpop.f32.mrb[0].mxu0
      %v2238 = vadd.f32 0.0, %v2237
      %v2239 = vpop.f32.mrb[0].mxu0
      %2240 = vmatprep.mubr.f32.mxu0 0.0
      %2241 = vmatmul.mubr.f32.gmra.mrb[0].mxu0 %v2076
      %v2242 = vpop.f32.mrb[0].mxu0
      %v2243 = vadd.f32 0.0, %v2242
      %v2244 = vpop.f32.mrb[0].mxu0
      %2245 = vmatprep.mubr.f32.mxu0 0.0
      %2246 = vmatmul.mubr.f32.gmra.mrb[0].mxu0 %v2079
      %v2247 = vpop.f32.mrb[0].mxu0
      %v2248 = vadd.f32 0.0, %v2247
      %v2249 = vpop.f32.mrb[0].mxu0
      %2250 = vmatprep.mubr.f32.mxu0 0.0
      %2251 = vmatmul.mubr.f32.gmra.mrb[0].mxu0 %v2082
      %v2252 = vpop.f32.mrb[0].mxu0
      %v2253 = vadd.f32 0.0, %v2252
      %v2254 = vpop.f32.mrb[0].mxu0
      %2255 = vmatprep.mubr.f32.mxu0 0.0
      %2256 = vmatmul.mubr.f32.gmra.mrb[0].mxu0 %v2085
      %v2257 = vpop.f32.mrb[0].mxu0
      %v2258 = vadd.f32 0.0, %v2257
      %v2259 = vpop.f32.mrb[0].mxu0
      %2260 = vmatprep.mubr.f32.mxu0 0.0
      %2261 = vmatmul.mubr.f32.gmra.mrb[0].mxu0 %v2088
      %v2262 = vpop.f32.mrb[0].mxu0
      %v2263 = vadd.f32 0.0, %v2262
      %v2264 = vpop.f32.mrb[0].mxu0
      %2265 = vmatprep.mubr.f32.mxu0 0.0
      %2266 = vmatmul.mubr.f32.gmra.mrb[0].mxu0 %v2091
      %v2267 = vpop.f32.mrb[0].mxu0
      %v2268 = vadd.f32 0.0, %v2267
      %v2269 = vpop.f32.mrb[0].mxu0
      %2270 = vmatprep.mubr.f32.mxu0 0.0
      %2271 = vmatmul.mubr.f32.gmra.mrb[0].mxu0 %v2094
      %v2272 = vpop.f32.mrb[0].mxu0
      %v2273 = vadd.f32 0.0, %v2272
      %v2274 = vpop.f32.mrb[0].mxu0
      %2275 = vmatprep.mubr.f32.mxu0 0.0
      %2276 = vmatmul.mubr.f32.gmra.mrb[0].mxu0 %v2097
      %v2277 = vpop.f32.mrb[0].mxu0
      %v2278 = vadd.f32 0.0, %v2277
      %v2279 = vpop.f32.mrb[0].mxu0
      %2280 = vmatprep.mubr.f32.mxu0 0.0
      %2281 = vmatmul.mubr.f32.gmra.mrb[0].mxu0 %v2100
      %v2282 = vpop.f32.mrb[0].mxu0
      %v2283 = vadd.f32 0.0, %v2282
      %v2284 = vpop.f32.mrb[0].mxu0
      %2285 = vmatprep.mubr.f32.mxu0 0.0
      %2286 = vmatmul.mubr.f32.gmra.mrb[0].mxu0 %v2103
      %v2287 = vpop.f32.mrb[0].mxu0
      %v2288 = vadd.f32 0.0, %v2287
      %v2289 = vpop.f32.mrb[0].mxu0
      %2290 = vmatprep.mubr.f32.mxu0 0.0
      %2291 = vmatmul.mubr.f32.gmra.mrb[0].mxu0 %v2106
      %v2292 = vpop.f32.mrb[0].mxu0
      %v2293 = vadd.f32 0.0, %v2292
      %v2294 = vpop.f32.mrb[0].mxu0
      %2295 = vmatprep.mubr.f32.mxu0 0.0
      %2296 = vmatmul.mubr.f32.gmra.mrb[0].mxu0 %v2109
      %v2297 = vpop.f32.mrb[0].mxu0
      %v2298 = vadd.f32 0.0, %v2297
      %v2299 = vpop.f32.mrb[0].mxu0
      %2300 = vmatprep.mubr.f32.mxu0 0.0
      %2301 = vmatmul.mubr.f32.gmra.mrb[0].mxu0 %v2112
      %v2302 = vpop.f32.mrb[0].mxu0
      %v2303 = vadd.f32 0.0, %v2302
      %v2304 = vpop.f32.mrb[0].mxu0
      %2305 = vmatprep.mubr.f32.mxu0 0.0
      %2306 = vmatmul.mubr.f32.gmra.mrb[0].mxu0 %v2115
      %v2307 = vpop.f32.mrb[0].mxu0
      %v2308 = vadd.f32 0.0, %v2307
      %v2309 = vpop.f32.mrb[0].mxu0
      %2310 = vmatprep.mubr.f32.mxu0 0.0
      %2311 = vmatmul.mubr.f32.gmra.mrb[0].mxu0 %v2118
      %v2312 = vpop.f32.mrb[0].mxu0
      %v2313 = vadd.f32 0.0, %v2312
      %v2314 = vpop.f32.mrb[0].mxu0
      %2315 = vmatprep.mubr.f32.mxu0 0.0
      %2316 = vmatmul.mubr.f32.gmra.mrb[0].mxu0 %v2121
      %v2317 = vpop.f32.mrb[0].mxu0
      %v2318 = vadd.f32 0.0, %v2317
      %v2319 = vpop.f32.mrb[0].mxu0
      %2320 = vmatprep.mubr.f32.mxu0 0.0
      %2321 = vmatmul.mubr.f32.gmra.mrb[0].mxu0 %v2124
      %v2322 = vpop.f32.mrb[0].mxu0
      %v2323 = vadd.f32 0.0, %v2322
      %v2324 = vpop.f32.mrb[0].mxu0
      %2325 = vmatprep.mubr.f32.mxu0 0.0
      %2326 = vmatmul.mubr.f32.gmra.mrb[0].mxu0 %v2127
      %v2327 = vpop.f32.mrb[0].mxu0
      %v2328 = vadd.f32 0.0, %v2327
      %v2329 = vpop.f32.mrb[0].mxu0
      %2330 = vmatprep.mubr.f32.mxu0 0.0
      %2331 = vmatmul.mubr.f32.gmra.mrb[0].mxu0 %v2130
      %v2332 = vpop.f32.mrb[0].mxu0
      %v2333 = vadd.f32 0.0, %v2332
      %v2334 = vpop.f32.mrb[0].mxu0
      %2335 = vmatprep.mubr.f32.mxu0 0.0
      %2336 = vmatmul.mubr.f32.gmra.mrb[0].mxu0 %v2133
      %v2337 = vpop.f32.mrb[0].mxu0
      %v2338 = vadd.f32 0.0, %v2337
      %v2339 = vpop.f32.mrb[0].mxu0
      %2340 = vmatprep.mubr.f32.mxu0 0.0
      %2341 = vmatmul.mubr.f32.gmra.mrb[0].mxu0 %v2136
      %v2342 = vpop.f32.mrb[0].mxu0
      %v2343 = vadd.f32 0.0, %v2342
      %v2344 = vpop.f32.mrb[0].mxu0
      %2345 = vmatprep.mubr.f32.mxu0 0.0
      %2346 = vmatmul.mubr.f32.gmra.mrb[0].mxu0 %v2139
      %v2347 = vpop.f32.mrb[0].mxu0
      %v2348 = vadd.f32 0.0, %v2347
      %v2349 = vpop.f32.mrb[0].mxu0
      %2350 = vmatprep.mubr.f32.mxu0 0.0
      %2351 = vmatmul.mubr.f32.gmra.mrb[0].mxu0 %v2142
      %v2352 = vpop.f32.mrb[0].mxu0
      %v2353 = vadd.f32 0.0, %v2352
      %v2354 = vpop.f32.mrb[0].mxu0
      %2355 = vmatprep.mubr.f32.mxu0 0.0
      %2356 = vmatmul.mubr.f32.gmra.mrb[0].mxu0 %v2145
      %v2357 = vpop.f32.mrb[0].mxu0
      %v2358 = vadd.f32 0.0, %v2357
      %v2359 = vpop.f32.mrb[0].mxu0
      %2360 = vmatprep.mubr.f32.mxu0 0.0
      %2361 = vmatmul.mubr.f32.gmra.mrb[0].mxu0 %v2148
      %v2362 = vpop.f32.mrb[0].mxu0
      %v2363 = vadd.f32 0.0, %v2362
      %v2364 = vpop.f32.mrb[0].mxu0
      %2365 = vmatprep.mubr.f32.mxu0 0.0
      %2366 = vmatmul.mubr.f32.gmra.mrb[0].mxu0 %v2151
      %v2367 = vpop.f32.mrb[0].mxu0
      %v2368 = vadd.f32 0.0, %v2367
      %v2369 = vpop.f32.mrb[0].mxu0
      %2370 = vmatprep.mubr.f32.mxu0 0.0
      %2371 = vmatmul.mubr.f32.gmra.mrb[0].mxu0 %v2154
      %v2372 = vpop.f32.mrb[0].mxu0
      %v2373 = vadd.f32 0.0, %v2372
      %v2374 = vpop.f32.mrb[0].mxu0
      %2375 = vmatprep.mubr.f32.mxu0 0.0
      %2376 = vmatmul.mubr.f32.gmra.mrb[0].mxu0 %v2157
      %v2377 = vpop.f32.mrb[0].mxu0
      %v2378 = vadd.f32 0.0, %v2377
      %v2379 = vpop.f32.mrb[0].mxu0
      %2380 = vmatprep.mubr.f32.mxu0 0.0
      %2381 = vmatmul.mubr.f32.gmra.mrb[0].mxu0 %v2160
      %v2382 = vpop.f32.mrb[0].mxu0
      %v2383 = vadd.f32 0.0, %v2382
      %v2384 = vpop.f32.mrb[0].mxu0
      %2385 = vmatprep.mubr.f32.mxu0 0.0
      %2386 = vmatmul.mubr.f32.gmra.mrb[0].mxu0 %v2163
      %v2387 = vpop.f32.mrb[0].mxu0
      %v2388 = vadd.f32 0.0, %v2387
      %v2389 = vpop.f32.mrb[0].mxu0
      %2390 = vmatprep.mubr.f32.mxu0 0.0
      %2391 = vmatmul.mubr.f32.gmra.mrb[0].mxu0 %v2166
      %v2392 = vpop.f32.mrb[0].mxu0
      %v2393 = vadd.f32 0.0, %v2392
      %v2394 = vpop.f32.mrb[0].mxu0
      %2395 = vdwg.mxu0
      %v2396 = vmul.f32 %v2238, 0.17677669
      %v2397 = vmul.f32 %v2243, 0.17677669
      %v2398 = vmul.f32 %v2248, 0.17677669
      %v2399 = vmul.f32 %v2253, 0.17677669
      %v2400 = vmul.f32 %v2258, 0.17677669
      %v2401 = vmul.f32 %v2263, 0.17677669
      %v2402 = vmul.f32 %v2268, 0.17677669
      %v2403 = vmul.f32 %v2273, 0.17677669
      %v2404 = vmul.f32 %v2278, 0.17677669
      %v2405 = vmul.f32 %v2283, 0.17677669
      %v2406 = vmul.f32 %v2288, 0.17677669
      %v2407 = vmul.f32 %v2293, 0.17677669
      %v2408 = vmul.f32 %v2298, 0.17677669
      %v2409 = vmul.f32 %v2303, 0.17677669
      %v2410 = vmul.f32 %v2308, 0.17677669
      %v2411 = vmul.f32 %v2313, 0.17677669
      %v2412 = vmul.f32 %v2318, 0.17677669
      %v2413 = vmul.f32 %v2323, 0.17677669
      %v2414 = vmul.f32 %v2328, 0.17677669
      %v2415 = vmul.f32 %v2333, 0.17677669
      %v2416 = vmul.f32 %v2338, 0.17677669
      %v2417 = vmul.f32 %v2343, 0.17677669
      %v2418 = vmul.f32 %v2348, 0.17677669
      %v2419 = vmul.f32 %v2353, 0.17677669
      %v2420 = vmul.f32 %v2358, 0.17677669
      %v2421 = vmul.f32 %v2363, 0.17677669
      %v2422 = vmul.f32 %v2368, 0.17677669
      %v2423 = vmul.f32 %v2373, 0.17677669
      %v2424 = vmul.f32 %v2378, 0.17677669
      %v2425 = vmul.f32 %v2383, 0.17677669
      %v2426 = vmul.f32 %v2388, 0.17677669
      %v2427 = vmul.f32 %v2393, 0.17677669
      %vm2428 = vcmask 64512
      %v2429 = vsel %vm2428, %v2396, -inf
      %2430 = vmax.xlane.f32.xlu0 %v2429
      %v2431 = vpop.xlane.xlu0 %2430
      %v2432 = vsel %vm2428, %v2397, -inf
      %2433 = vmax.xlane.f32.xlu0 %v2432
      %v2434 = vpop.xlane.xlu0 %2433
      %v2435 = vsel %vm2428, %v2398, -inf
      %2436 = vmax.xlane.f32.xlu0 %v2435
      %v2437 = vpop.xlane.xlu0 %2436
      %v2438 = vsel %vm2428, %v2399, -inf
      %2439 = vmax.xlane.f32.xlu0 %v2438
      %v2440 = vpop.xlane.xlu0 %2439
      %v2441 = vsel %vm2428, %v2400, -inf
      %2442 = vmax.xlane.f32.xlu0 %v2441
      %v2443 = vpop.xlane.xlu0 %2442
      %v2444 = vsel %vm2428, %v2401, -inf
      %2445 = vmax.xlane.f32.xlu0 %v2444
      %v2446 = vpop.xlane.xlu0 %2445
      %v2447 = vsel %vm2428, %v2402, -inf
      %2448 = vmax.xlane.f32.xlu0 %v2447
      %v2449 = vpop.xlane.xlu0 %2448
      %v2450 = vsel %vm2428, %v2403, -inf
      %2451 = vmax.xlane.f32.xlu0 %v2450
      %v2452 = vpop.xlane.xlu0 %2451
      %v2453 = vsel %vm2428, %v2404, -inf
      %2454 = vmax.xlane.f32.xlu0 %v2453
      %v2455 = vpop.xlane.xlu0 %2454
      %v2456 = vsel %vm2428, %v2405, -inf
      %2457 = vmax.xlane.f32.xlu0 %v2456
      %v2458 = vpop.xlane.xlu0 %2457
      %v2459 = vsel %vm2428, %v2406, -inf
      %2460 = vmax.xlane.f32.xlu0 %v2459
      %v2461 = vpop.xlane.xlu0 %2460
      %v2462 = vsel %vm2428, %v2407, -inf
      %2463 = vmax.xlane.f32.xlu0 %v2462
      %v2464 = vpop.xlane.xlu0 %2463
      %v2465 = vsel %vm2428, %v2408, -inf
      %2466 = vmax.xlane.f32.xlu0 %v2465
      %v2467 = vpop.xlane.xlu0 %2466
      %v2468 = vsel %vm2428, %v2409, -inf
      %2469 = vmax.xlane.f32.xlu0 %v2468
      %v2470 = vpop.xlane.xlu0 %2469
      %v2471 = vsel %vm2428, %v2410, -inf
      %2472 = vmax.xlane.f32.xlu0 %v2471
      %v2473 = vpop.xlane.xlu0 %2472
      %v2474 = vsel %vm2428, %v2411, -inf
      %2475 = vmax.xlane.f32.xlu0 %v2474
      %v2476 = vpop.xlane.xlu0 %2475
      %v2477 = vsel %vm2428, %v2412, -inf
      %2478 = vmax.xlane.f32.xlu0 %v2477
      %v2479 = vpop.xlane.xlu0 %2478
      %v2480 = vsel %vm2428, %v2413, -inf
      %2481 = vmax.xlane.f32.xlu0 %v2480
      %v2482 = vpop.xlane.xlu0 %2481
      %v2483 = vsel %vm2428, %v2414, -inf
      %2484 = vmax.xlane.f32.xlu0 %v2483
      %v2485 = vpop.xlane.xlu0 %2484
      %v2486 = vsel %vm2428, %v2415, -inf
      %2487 = vmax.xlane.f32.xlu0 %v2486
      %v2488 = vpop.xlane.xlu0 %2487
      %v2489 = vsel %vm2428, %v2416, -inf
      %2490 = vmax.xlane.f32.xlu0 %v2489
      %v2491 = vpop.xlane.xlu0 %2490
      %v2492 = vsel %vm2428, %v2417, -inf
      %2493 = vmax.xlane.f32.xlu0 %v2492
      %v2494 = vpop.xlane.xlu0 %2493
      %v2495 = vsel %vm2428, %v2418, -inf
      %2496 = vmax.xlane.f32.xlu0 %v2495
      %v2497 = vpop.xlane.xlu0 %2496
      %v2498 = vsel %vm2428, %v2419, -inf
      %2499 = vmax.xlane.f32.xlu0 %v2498
      %v2500 = vpop.xlane.xlu0 %2499
      %v2501 = vsel %vm2428, %v2420, -inf
      %2502 = vmax.xlane.f32.xlu0 %v2501
      %v2503 = vpop.xlane.xlu0 %2502
      %v2504 = vsel %vm2428, %v2421, -inf
      %2505 = vmax.xlane.f32.xlu0 %v2504
      %v2506 = vpop.xlane.xlu0 %2505
      %v2507 = vsel %vm2428, %v2422, -inf
      %2508 = vmax.xlane.f32.xlu0 %v2507
      %v2509 = vpop.xlane.xlu0 %2508
      %v2510 = vsel %vm2428, %v2423, -inf
      %2511 = vmax.xlane.f32.xlu0 %v2510
      %v2512 = vpop.xlane.xlu0 %2511
      %v2513 = vsel %vm2428, %v2424, -inf
      %2514 = vmax.xlane.f32.xlu0 %v2513
      %v2515 = vpop.xlane.xlu0 %2514
      %v2516 = vsel %vm2428, %v2425, -inf
      %2517 = vmax.xlane.f32.xlu0 %v2516
      %v2518 = vpop.xlane.xlu0 %2517
      %v2519 = vsel %vm2428, %v2426, -inf
      %2520 = vmax.xlane.f32.xlu0 %v2519
      %v2521 = vpop.xlane.xlu0 %2520
      %v2522 = vsel %vm2428, %v2427, -inf
      %2523 = vmax.xlane.f32.xlu0 %v2522
      %v2524 = vpop.xlane.xlu0 %2523
      %v2525 = vsub.f32 %v2396, %v2431
      %v2526 = vsub.f32 %v2397, %v2434
      %v2527 = vsub.f32 %v2398, %v2437
      %v2528 = vsub.f32 %v2399, %v2440
      %v2529 = vsub.f32 %v2400, %v2443
      %v2530 = vsub.f32 %v2401, %v2446
      %v2531 = vsub.f32 %v2402, %v2449
      %v2532 = vsub.f32 %v2403, %v2452
      %v2533 = vsub.f32 %v2404, %v2455
      %v2534 = vsub.f32 %v2405, %v2458
      %v2535 = vsub.f32 %v2406, %v2461
      %v2536 = vsub.f32 %v2407, %v2464
      %v2537 = vsub.f32 %v2408, %v2467
      %v2538 = vsub.f32 %v2409, %v2470
      %v2539 = vsub.f32 %v2410, %v2473
      %v2540 = vsub.f32 %v2411, %v2476
      %v2541 = vsub.f32 %v2412, %v2479
      %v2542 = vsub.f32 %v2413, %v2482
      %v2543 = vsub.f32 %v2414, %v2485
      %v2544 = vsub.f32 %v2415, %v2488
      %v2545 = vsub.f32 %v2416, %v2491
      %v2546 = vsub.f32 %v2417, %v2494
      %v2547 = vsub.f32 %v2418, %v2497
      %v2548 = vsub.f32 %v2419, %v2500
      %v2549 = vsub.f32 %v2420, %v2503
      %v2550 = vsub.f32 %v2421, %v2506
      %v2551 = vsub.f32 %v2422, %v2509
      %v2552 = vsub.f32 %v2423, %v2512
      %v2553 = vsub.f32 %v2424, %v2515
      %v2554 = vsub.f32 %v2425, %v2518
      %v2555 = vsub.f32 %v2426, %v2521
      %v2556 = vsub.f32 %v2427, %v2524
      %v2557 = vmul.f32 %v2525, 1.442695
      %v2558 = vpow.pop %v2557
      %v2559 = vmul.f32 %v2526, 1.442695
      %v2560 = vpow.pop %v2559
      %v2561 = vmul.f32 %v2527, 1.442695
      %v2562 = vpow.pop %v2561
      %v2563 = vmul.f32 %v2528, 1.442695
      %v2564 = vpow.pop %v2563
      %v2565 = vmul.f32 %v2529, 1.442695
      %v2566 = vpow.pop %v2565
      %v2567 = vmul.f32 %v2530, 1.442695
      %v2568 = vpow.pop %v2567
      %v2569 = vmul.f32 %v2531, 1.442695
      %v2570 = vpow.pop %v2569
      %v2571 = vmul.f32 %v2532, 1.442695
      %v2572 = vpow.pop %v2571
      %v2573 = vmul.f32 %v2533, 1.442695
      %v2574 = vpow.pop %v2573
      %v2575 = vmul.f32 %v2534, 1.442695
      %v2576 = vpow.pop %v2575
      %v2577 = vmul.f32 %v2535, 1.442695
      %v2578 = vpow.pop %v2577
      %v2579 = vmul.f32 %v2536, 1.442695
      %v2580 = vpow.pop %v2579
      %v2581 = vmul.f32 %v2537, 1.442695
      %v2582 = vpow.pop %v2581
      %v2583 = vmul.f32 %v2538, 1.442695
      %v2584 = vpow.pop %v2583
      %v2585 = vmul.f32 %v2539, 1.442695
      %v2586 = vpow.pop %v2585
      %v2587 = vmul.f32 %v2540, 1.442695
      %v2588 = vpow.pop %v2587
      %v2589 = vmul.f32 %v2541, 1.442695
      %v2590 = vpow.pop %v2589
      %v2591 = vmul.f32 %v2542, 1.442695
      %v2592 = vpow.pop %v2591
      %v2593 = vmul.f32 %v2543, 1.442695
      %v2594 = vpow.pop %v2593
      %v2595 = vmul.f32 %v2544, 1.442695
      %v2596 = vpow.pop %v2595
      %v2597 = vmul.f32 %v2545, 1.442695
      %v2598 = vpow.pop %v2597
      %v2599 = vmul.f32 %v2546, 1.442695
      %v2600 = vpow.pop %v2599
      %v2601 = vmul.f32 %v2547, 1.442695
      %v2602 = vpow.pop %v2601
      %v2603 = vmul.f32 %v2548, 1.442695
      %v2604 = vpow.pop %v2603
      %v2605 = vmul.f32 %v2549, 1.442695
      %v2606 = vpow.pop %v2605
      %v2607 = vmul.f32 %v2550, 1.442695
      %v2608 = vpow.pop %v2607
      %v2609 = vmul.f32 %v2551, 1.442695
      %v2610 = vpow.pop %v2609
      %v2611 = vmul.f32 %v2552, 1.442695
      %v2612 = vpow.pop %v2611
      %v2613 = vmul.f32 %v2553, 1.442695
      %v2614 = vpow.pop %v2613
      %v2615 = vmul.f32 %v2554, 1.442695
      %v2616 = vpow.pop %v2615
      %v2617 = vmul.f32 %v2555, 1.442695
      %v2618 = vpow.pop %v2617
      %v2619 = vmul.f32 %v2556, 1.442695
      %v2620 = vpow.pop %v2619
      %v2621 = vsel %vm2428, %v2558, 0.0
      %2622 = vadd.xlane.f32.xlu0 %v2621
      %v2623 = vpop.xlane.xlu0 %2622
      %v2624 = vsel %vm2428, %v2560, 0.0
      %2625 = vadd.xlane.f32.xlu0 %v2624
      %v2626 = vpop.xlane.xlu0 %2625
      %v2627 = vsel %vm2428, %v2562, 0.0
      %2628 = vadd.xlane.f32.xlu0 %v2627
      %v2629 = vpop.xlane.xlu0 %2628
      %v2630 = vsel %vm2428, %v2564, 0.0
      %2631 = vadd.xlane.f32.xlu0 %v2630
      %v2632 = vpop.xlane.xlu0 %2631
      %v2633 = vsel %vm2428, %v2566, 0.0
      %2634 = vadd.xlane.f32.xlu0 %v2633
      %v2635 = vpop.xlane.xlu0 %2634
      %v2636 = vsel %vm2428, %v2568, 0.0
      %2637 = vadd.xlane.f32.xlu0 %v2636
      %v2638 = vpop.xlane.xlu0 %2637
      %v2639 = vsel %vm2428, %v2570, 0.0
      %2640 = vadd.xlane.f32.xlu0 %v2639
      %v2641 = vpop.xlane.xlu0 %2640
      %v2642 = vsel %vm2428, %v2572, 0.0
      %2643 = vadd.xlane.f32.xlu0 %v2642
      %v2644 = vpop.xlane.xlu0 %2643
      %v2645 = vsel %vm2428, %v2574, 0.0
      %2646 = vadd.xlane.f32.xlu0 %v2645
      %v2647 = vpop.xlane.xlu0 %2646
      %v2648 = vsel %vm2428, %v2576, 0.0
      %2649 = vadd.xlane.f32.xlu0 %v2648
      %v2650 = vpop.xlane.xlu0 %2649
      %v2651 = vsel %vm2428, %v2578, 0.0
      %2652 = vadd.xlane.f32.xlu0 %v2651
      %v2653 = vpop.xlane.xlu0 %2652
      %v2654 = vsel %vm2428, %v2580, 0.0
      %2655 = vadd.xlane.f32.xlu0 %v2654
      %v2656 = vpop.xlane.xlu0 %2655
      %v2657 = vsel %vm2428, %v2582, 0.0
      %2658 = vadd.xlane.f32.xlu0 %v2657
      %v2659 = vpop.xlane.xlu0 %2658
      %v2660 = vsel %vm2428, %v2584, 0.0
      %2661 = vadd.xlane.f32.xlu0 %v2660
      %v2662 = vpop.xlane.xlu0 %2661
      %v2663 = vsel %vm2428, %v2586, 0.0
      %2664 = vadd.xlane.f32.xlu0 %v2663
      %v2665 = vpop.xlane.xlu0 %2664
      %v2666 = vsel %vm2428, %v2588, 0.0
      %2667 = vadd.xlane.f32.xlu0 %v2666
      %v2668 = vpop.xlane.xlu0 %2667
      %v2669 = vsel %vm2428, %v2590, 0.0
      %2670 = vadd.xlane.f32.xlu0 %v2669
      %v2671 = vpop.xlane.xlu0 %2670
      %v2672 = vsel %vm2428, %v2592, 0.0
      %2673 = vadd.xlane.f32.xlu0 %v2672
      %v2674 = vpop.xlane.xlu0 %2673
      %v2675 = vsel %vm2428, %v2594, 0.0
      %2676 = vadd.xlane.f32.xlu0 %v2675
      %v2677 = vpop.xlane.xlu0 %2676
      %v2678 = vsel %vm2428, %v2596, 0.0
      %2679 = vadd.xlane.f32.xlu0 %v2678
      %v2680 = vpop.xlane.xlu0 %2679
      %v2681 = vsel %vm2428, %v2598, 0.0
      %2682 = vadd.xlane.f32.xlu0 %v2681
      %v2683 = vpop.xlane.xlu0 %2682
      %v2684 = vsel %vm2428, %v2600, 0.0
      %2685 = vadd.xlane.f32.xlu0 %v2684
      %v2686 = vpop.xlane.xlu0 %2685
      %v2687 = vsel %vm2428, %v2602, 0.0
      %2688 = vadd.xlane.f32.xlu0 %v2687
      %v2689 = vpop.xlane.xlu0 %2688
      %v2690 = vsel %vm2428, %v2604, 0.0
      %2691 = vadd.xlane.f32.xlu0 %v2690
      %v2692 = vpop.xlane.xlu0 %2691
      %v2693 = vsel %vm2428, %v2606, 0.0
      %2694 = vadd.xlane.f32.xlu0 %v2693
      %v2695 = vpop.xlane.xlu0 %2694
      %v2696 = vsel %vm2428, %v2608, 0.0
      %2697 = vadd.xlane.f32.xlu0 %v2696
      %v2698 = vpop.xlane.xlu0 %2697
      %v2699 = vsel %vm2428, %v2610, 0.0
      %2700 = vadd.xlane.f32.xlu0 %v2699
      %v2701 = vpop.xlane.xlu0 %2700
      %v2702 = vsel %vm2428, %v2612, 0.0
      %2703 = vadd.xlane.f32.xlu0 %v2702
      %v2704 = vpop.xlane.xlu0 %2703
      %v2705 = vsel %vm2428, %v2614, 0.0
      %2706 = vadd.xlane.f32.xlu0 %v2705
      %v2707 = vpop.xlane.xlu0 %2706
      %v2708 = vsel %vm2428, %v2616, 0.0
      %2709 = vadd.xlane.f32.xlu0 %v2708
      %v2710 = vpop.xlane.xlu0 %2709
      %v2711 = vsel %vm2428, %v2618, 0.0
      %2712 = vadd.xlane.f32.xlu0 %v2711
      %v2713 = vpop.xlane.xlu0 %2712
      %v2714 = vsel %vm2428, %v2620, 0.0
      %2715 = vadd.xlane.f32.xlu0 %v2714
      %v2716 = vpop.xlane.xlu0 %2715
      %v2717 = vrcp.pop %v2623
      %v2718 = vrcp.pop %v2626
      %v2719 = vrcp.pop %v2629
      %v2720 = vrcp.pop %v2632
      %v2721 = vrcp.pop %v2635
      %v2722 = vrcp.pop %v2638
      %v2723 = vrcp.pop %v2641
      %v2724 = vrcp.pop %v2644
      %v2725 = vrcp.pop %v2647
      %v2726 = vrcp.pop %v2650
      %v2727 = vrcp.pop %v2653
      %v2728 = vrcp.pop %v2656
      %v2729 = vrcp.pop %v2659
      %v2730 = vrcp.pop %v2662
      %v2731 = vrcp.pop %v2665
      %v2732 = vrcp.pop %v2668
      %v2733 = vrcp.pop %v2671
      %v2734 = vrcp.pop %v2674
      %v2735 = vrcp.pop %v2677
      %v2736 = vrcp.pop %v2680
      %v2737 = vrcp.pop %v2683
      %v2738 = vrcp.pop %v2686
      %v2739 = vrcp.pop %v2689
      %v2740 = vrcp.pop %v2692
      %v2741 = vrcp.pop %v2695
      %v2742 = vrcp.pop %v2698
      %v2743 = vrcp.pop %v2701
      %v2744 = vrcp.pop %v2704
      %v2745 = vrcp.pop %v2707
      %v2746 = vrcp.pop %v2710
      %v2747 = vrcp.pop %v2713
      %v2748 = vrcp.pop %v2716
      %v2749 = vmul.f32 %v2558, %v2717
      %v2750 = vmul.f32 %v2560, %v2718
      %v2751 = vmul.f32 %v2562, %v2719
      %v2752 = vmul.f32 %v2564, %v2720
      %v2753 = vmul.f32 %v2566, %v2721
      %v2754 = vmul.f32 %v2568, %v2722
      %v2755 = vmul.f32 %v2570, %v2723
      %v2756 = vmul.f32 %v2572, %v2724
      %v2757 = vmul.f32 %v2574, %v2725
      %v2758 = vmul.f32 %v2576, %v2726
      %v2759 = vmul.f32 %v2578, %v2727
      %v2760 = vmul.f32 %v2580, %v2728
      %v2761 = vmul.f32 %v2582, %v2729
      %v2762 = vmul.f32 %v2584, %v2730
      %v2763 = vmul.f32 %v2586, %v2731
      %v2764 = vmul.f32 %v2588, %v2732
      %v2765 = vmul.f32 %v2590, %v2733
      %v2766 = vmul.f32 %v2592, %v2734
      %v2767 = vmul.f32 %v2594, %v2735
      %v2768 = vmul.f32 %v2596, %v2736
      %v2769 = vmul.f32 %v2598, %v2737
      %v2770 = vmul.f32 %v2600, %v2738
      %v2771 = vmul.f32 %v2602, %v2739
      %v2772 = vmul.f32 %v2604, %v2740
      %v2773 = vmul.f32 %v2606, %v2741
      %v2774 = vmul.f32 %v2608, %v2742
      %v2775 = vmul.f32 %v2610, %v2743
      %v2776 = vmul.f32 %v2612, %v2744
      %v2777 = vmul.f32 %v2614, %v2745
      %v2778 = vmul.f32 %v2616, %v2746
      %v2779 = vmul.f32 %v2618, %v2747
      %v2780 = vmul.f32 %v2620, %v2748
      %v2782 = vsel %vm2428, %v2749, 0
      %v2785 = vsel %vm2428, %v2750, 0
      %v2788 = vsel %vm2428, %v2751, 0
      %v2791 = vsel %vm2428, %v2752, 0
      %v2794 = vsel %vm2428, %v2753, 0
      %v2797 = vsel %vm2428, %v2754, 0
      %v2800 = vsel %vm2428, %v2755, 0
      %v2803 = vsel %vm2428, %v2756, 0
      %v2806 = vsel %vm2428, %v2757, 0
      %v2809 = vsel %vm2428, %v2758, 0
      %v2812 = vsel %vm2428, %v2759, 0
      %v2815 = vsel %vm2428, %v2760, 0
      %v2818 = vsel %vm2428, %v2761, 0
      %v2821 = vsel %vm2428, %v2762, 0
      %v2824 = vsel %vm2428, %v2763, 0
      %v2827 = vsel %vm2428, %v2764, 0
      %v2830 = vsel %vm2428, %v2765, 0
      %v2833 = vsel %vm2428, %v2766, 0
      %v2836 = vsel %vm2428, %v2767, 0
      %v2839 = vsel %vm2428, %v2768, 0
      %v2842 = vsel %vm2428, %v2769, 0
      %v2845 = vsel %vm2428, %v2770, 0
      %v2848 = vsel %vm2428, %v2771, 0
      %v2851 = vsel %vm2428, %v2772, 0
      %v2854 = vsel %vm2428, %v2773, 0
      %v2857 = vsel %vm2428, %v2774, 0
      %v2860 = vsel %vm2428, %v2775, 0
      %v2863 = vsel %vm2428, %v2776, 0
      %v2866 = vsel %vm2428, %v2777, 0
      %v2869 = vsel %vm2428, %v2778, 0
      %v2872 = vsel %vm2428, %v2779, 0
      %v2875 = vsel %vm2428, %v2780, 0
      %2877 = vmatprep.subr.mxu0 0.0
      %2878 = vmatpush1.msra.mxu0 %v2069
      %2879 = vmatprep.subr.mxu0 0.0
      %2880 = vmatpush1.msra.mxu0 0.0
      %2881 = vmatprep.subr.mxu0 0.0
      %2882 = vmatpush1.msra.mxu0 0.0
      %2883 = vmatprep.subr.mxu0 0.0
      %2884 = vmatpush1.msra.mxu0 0.0
      %2885 = vmatprep.subr.mxu0 0.0
      %2886 = vmatpush1.msra.mxu0 0.0
      %2887 = vmatprep.subr.mxu0 0.0
      %2888 = vmatpush1.msra.mxu0 0.0
      %2889 = vmatprep.subr.mxu0 0.0
      %2890 = vmatpush1.msra.mxu0 0.0
      %2891 = vmatprep.subr.mxu0 0.0
      %2892 = vmatpush1.msra.mxu0 0.0
      %2893 = vmatprep.subr.mxu0 0.0
      %2894 = vmatpush1.msra.mxu0 0.0
      %2895 = vmatprep.subr.mxu0 0.0
      %2896 = vmatpush1.msra.mxu0 0.0
      %2897 = vmatprep.subr.mxu0 0.0
      %2898 = vmatpush1.msra.mxu0 0.0
      %2899 = vmatprep.subr.mxu0 0.0
      %2900 = vmatpush1.msra.mxu0 0.0
      %2901 = vmatprep.subr.mxu0 0.0
      %2902 = vmatpush1.msra.mxu0 0.0
      %2903 = vmatprep.subr.mxu0 0.0
      %2904 = vmatpush1.msra.mxu0 0.0
      %2905 = vmatprep.subr.mxu0 0.0
      %2906 = vmatpush1.msra.mxu0 0.0
      %2907 = vmatprep.subr.mxu0 0.0
      %2908 = vmatpush1.msra.mxu0 0.0
      %2909 = vmatprep.subr.mxu0 0.0
      %2910 = vmatpush1.msra.mxu0 0.0
      %2911 = vmatprep.subr.mxu0 0.0
      %2912 = vmatpush1.msra.mxu0 0.0
      %2913 = vmatprep.subr.mxu0 0.0
      %2914 = vmatpush1.msra.mxu0 0.0
      %2915 = vmatprep.subr.mxu0 0.0
      %2916 = vmatpush1.msra.mxu0 0.0
      %2917 = vmatprep.subr.mxu0 0.0
      %2918 = vmatpush1.msra.mxu0 0.0
      %2919 = vmatprep.subr.mxu0 0.0
      %2920 = vmatpush1.msra.mxu0 0.0
      %2921 = vmatprep.subr.mxu0 0.0
      %2922 = vmatpush1.msra.mxu0 0.0
      %2923 = vmatprep.subr.mxu0 0.0
      %2924 = vmatpush1.msra.mxu0 0.0
      %2925 = vmatprep.subr.mxu0 0.0
      %2926 = vmatpush1.msra.mxu0 0.0
      %2927 = vmatprep.subr.mxu0 0.0
      %2928 = vmatpush1.msra.mxu0 0.0
      %2929 = vmatprep.subr.mxu0 0.0
      %2930 = vmatpush1.msra.mxu0 0.0
      %2931 = vmatprep.subr.mxu0 0.0
      %2932 = vmatpush1.msra.mxu0 0.0
      %2933 = vmatprep.subr.mxu0 0.0
      %2934 = vmatpush1.msra.mxu0 0.0
      %2935 = vmatprep.subr.mxu0 0.0
      %2936 = vmatpush1.msra.mxu0 0.0
      %2937 = vmatprep.subr.mxu0 0.0
      %2938 = vmatpush1.msra.mxu0 0.0
      %2939 = vmatprep.subr.mxu0 0.0
      %2940 = vmatpush1.msra.mxu0 0.0
      %2941 = vmatprep.mubr.f32.mxu0 0.0
      %2942 = vmatmul.mubr.f32.gmra.mrb[0].mxu0 %v2782
      %v2943 = vpop.f32.mrb[0].mxu0
      %v2944 = vadd.f32 0.0, %v2943
      %v2945 = vpop.f32.mrb[0].mxu0
      %2946 = vmatprep.mubr.f32.mxu0 0.0
      %2947 = vmatmul.mubr.f32.gmra.mrb[0].mxu0 %v2785
      %v2948 = vpop.f32.mrb[0].mxu0
      %v2949 = vadd.f32 0.0, %v2948
      %v2950 = vpop.f32.mrb[0].mxu0
      %2951 = vmatprep.mubr.f32.mxu0 0.0
      %2952 = vmatmul.mubr.f32.gmra.mrb[0].mxu0 %v2788
      %v2953 = vpop.f32.mrb[0].mxu0
      %v2954 = vadd.f32 0.0, %v2953
      %v2955 = vpop.f32.mrb[0].mxu0
      %2956 = vmatprep.mubr.f32.mxu0 0.0
      %2957 = vmatmul.mubr.f32.gmra.mrb[0].mxu0 %v2791
      %v2958 = vpop.f32.mrb[0].mxu0
      %v2959 = vadd.f32 0.0, %v2958
      %v2960 = vpop.f32.mrb[0].mxu0
      %2961 = vmatprep.mubr.f32.mxu0 0.0
      %2962 = vmatmul.mubr.f32.gmra.mrb[0].mxu0 %v2794
      %v2963 = vpop.f32.mrb[0].mxu0
      %v2964 = vadd.f32 0.0, %v2963
      %v2965 = vpop.f32.mrb[0].mxu0
      %2966 = vmatprep.mubr.f32.mxu0 0.0
      %2967 = vmatmul.mubr.f32.gmra.mrb[0].mxu0 %v2797
      %v2968 = vpop.f32.mrb[0].mxu0
      %v2969 = vadd.f32 0.0, %v2968
      %v2970 = vpop.f32.mrb[0].mxu0
      %2971 = vmatprep.mubr.f32.mxu0 0.0
      %2972 = vmatmul.mubr.f32.gmra.mrb[0].mxu0 %v2800
      %v2973 = vpop.f32.mrb[0].mxu0
      %v2974 = vadd.f32 0.0, %v2973
      %v2975 = vpop.f32.mrb[0].mxu0
      %2976 = vmatprep.mubr.f32.mxu0 0.0
      %2977 = vmatmul.mubr.f32.gmra.mrb[0].mxu0 %v2803
      %v2978 = vpop.f32.mrb[0].mxu0
      %v2979 = vadd.f32 0.0, %v2978
      %v2980 = vpop.f32.mrb[0].mxu0
      %2981 = vmatprep.mubr.f32.mxu0 0.0
      %2982 = vmatmul.mubr.f32.gmra.mrb[0].mxu0 %v2806
      %v2983 = vpop.f32.mrb[0].mxu0
      %v2984 = vadd.f32 0.0, %v2983
      %v2985 = vpop.f32.mrb[0].mxu0
      %2986 = vmatprep.mubr.f32.mxu0 0.0
      %2987 = vmatmul.mubr.f32.gmra.mrb[0].mxu0 %v2809
      %v2988 = vpop.f32.mrb[0].mxu0
      %v2989 = vadd.f32 0.0, %v2988
      %v2990 = vpop.f32.mrb[0].mxu0
      %2991 = vmatprep.mubr.f32.mxu0 0.0
      %2992 = vmatmul.mubr.f32.gmra.mrb[0].mxu0 %v2812
      %v2993 = vpop.f32.mrb[0].mxu0
      %v2994 = vadd.f32 0.0, %v2993
      %v2995 = vpop.f32.mrb[0].mxu0
      %2996 = vmatprep.mubr.f32.mxu0 0.0
      %2997 = vmatmul.mubr.f32.gmra.mrb[0].mxu0 %v2815
      %v2998 = vpop.f32.mrb[0].mxu0
      %v2999 = vadd.f32 0.0, %v2998
      %v3000 = vpop.f32.mrb[0].mxu0
      %3001 = vmatprep.mubr.f32.mxu0 0.0
      %3002 = vmatmul.mubr.f32.gmra.mrb[0].mxu0 %v2818
      %v3003 = vpop.f32.mrb[0].mxu0
      %v3004 = vadd.f32 0.0, %v3003
      %v3005 = vpop.f32.mrb[0].mxu0
      %3006 = vmatprep.mubr.f32.mxu0 0.0
      %3007 = vmatmul.mubr.f32.gmra.mrb[0].mxu0 %v2821
      %v3008 = vpop.f32.mrb[0].mxu0
      %v3009 = vadd.f32 0.0, %v3008
      %v3010 = vpop.f32.mrb[0].mxu0
      %3011 = vmatprep.mubr.f32.mxu0 0.0
      %3012 = vmatmul.mubr.f32.gmra.mrb[0].mxu0 %v2824
      %v3013 = vpop.f32.mrb[0].mxu0
      %v3014 = vadd.f32 0.0, %v3013
      %v3015 = vpop.f32.mrb[0].mxu0
      %3016 = vmatprep.mubr.f32.mxu0 0.0
      %3017 = vmatmul.mubr.f32.gmra.mrb[0].mxu0 %v2827
      %v3018 = vpop.f32.mrb[0].mxu0
      %v3019 = vadd.f32 0.0, %v3018
      %v3020 = vpop.f32.mrb[0].mxu0
      %3021 = vmatprep.mubr.f32.mxu0 0.0
      %3022 = vmatmul.mubr.f32.gmra.mrb[0].mxu0 %v2830
      %v3023 = vpop.f32.mrb[0].mxu0
      %v3024 = vadd.f32 0.0, %v3023
      %v3025 = vpop.f32.mrb[0].mxu0
      %3026 = vmatprep.mubr.f32.mxu0 0.0
      %3027 = vmatmul.mubr.f32.gmra.mrb[0].mxu0 %v2833
      %v3028 = vpop.f32.mrb[0].mxu0
      %v3029 = vadd.f32 0.0, %v3028
      %v3030 = vpop.f32.mrb[0].mxu0
      %3031 = vmatprep.mubr.f32.mxu0 0.0
      %3032 = vmatmul.mubr.f32.gmra.mrb[0].mxu0 %v2836
      %v3033 = vpop.f32.mrb[0].mxu0
      %v3034 = vadd.f32 0.0, %v3033
      %v3035 = vpop.f32.mrb[0].mxu0
      %3036 = vmatprep.mubr.f32.mxu0 0.0
      %3037 = vmatmul.mubr.f32.gmra.mrb[0].mxu0 %v2839
      %v3038 = vpop.f32.mrb[0].mxu0
      %v3039 = vadd.f32 0.0, %v3038
      %v3040 = vpop.f32.mrb[0].mxu0
      %3041 = vmatprep.mubr.f32.mxu0 0.0
      %3042 = vmatmul.mubr.f32.gmra.mrb[0].mxu0 %v2842
      %v3043 = vpop.f32.mrb[0].mxu0
      %v3044 = vadd.f32 0.0, %v3043
      %v3045 = vpop.f32.mrb[0].mxu0
      %3046 = vmatprep.mubr.f32.mxu0 0.0
      %3047 = vmatmul.mubr.f32.gmra.mrb[0].mxu0 %v2845
      %v3048 = vpop.f32.mrb[0].mxu0
      %v3049 = vadd.f32 0.0, %v3048
      %v3050 = vpop.f32.mrb[0].mxu0
      %3051 = vmatprep.mubr.f32.mxu0 0.0
      %3052 = vmatmul.mubr.f32.gmra.mrb[0].mxu0 %v2848
      %v3053 = vpop.f32.mrb[0].mxu0
      %v3054 = vadd.f32 0.0, %v3053
      %v3055 = vpop.f32.mrb[0].mxu0
      %3056 = vmatprep.mubr.f32.mxu0 0.0
      %3057 = vmatmul.mubr.f32.gmra.mrb[0].mxu0 %v2851
      %v3058 = vpop.f32.mrb[0].mxu0
      %v3059 = vadd.f32 0.0, %v3058
      %v3060 = vpop.f32.mrb[0].mxu0
      %3061 = vmatprep.mubr.f32.mxu0 0.0
      %3062 = vmatmul.mubr.f32.gmra.mrb[0].mxu0 %v2854
      %v3063 = vpop.f32.mrb[0].mxu0
      %v3064 = vadd.f32 0.0, %v3063
      %v3065 = vpop.f32.mrb[0].mxu0
      %3066 = vmatprep.mubr.f32.mxu0 0.0
      %3067 = vmatmul.mubr.f32.gmra.mrb[0].mxu0 %v2857
      %v3068 = vpop.f32.mrb[0].mxu0
      %v3069 = vadd.f32 0.0, %v3068
      %v3070 = vpop.f32.mrb[0].mxu0
      %3071 = vmatprep.mubr.f32.mxu0 0.0
      %3072 = vmatmul.mubr.f32.gmra.mrb[0].mxu0 %v2860
      %v3073 = vpop.f32.mrb[0].mxu0
      %v3074 = vadd.f32 0.0, %v3073
      %v3075 = vpop.f32.mrb[0].mxu0
      %3076 = vmatprep.mubr.f32.mxu0 0.0
      %3077 = vmatmul.mubr.f32.gmra.mrb[0].mxu0 %v2863
      %v3078 = vpop.f32.mrb[0].mxu0
      %v3079 = vadd.f32 0.0, %v3078
      %v3080 = vpop.f32.mrb[0].mxu0
      %3081 = vmatprep.mubr.f32.mxu0 0.0
      %3082 = vmatmul.mubr.f32.gmra.mrb[0].mxu0 %v2866
      %v3083 = vpop.f32.mrb[0].mxu0
      %v3084 = vadd.f32 0.0, %v3083
      %v3085 = vpop.f32.mrb[0].mxu0
      %3086 = vmatprep.mubr.f32.mxu0 0.0
      %3087 = vmatmul.mubr.f32.gmra.mrb[0].mxu0 %v2869
      %v3088 = vpop.f32.mrb[0].mxu0
      %v3089 = vadd.f32 0.0, %v3088
      %v3090 = vpop.f32.mrb[0].mxu0
      %3091 = vmatprep.mubr.f32.mxu0 0.0
      %3092 = vmatmul.mubr.f32.gmra.mrb[0].mxu0 %v2872
      %v3093 = vpop.f32.mrb[0].mxu0
      %v3094 = vadd.f32 0.0, %v3093
      %v3095 = vpop.f32.mrb[0].mxu0
      %3096 = vmatprep.mubr.f32.mxu0 0.0
      %3097 = vmatmul.mubr.f32.gmra.mrb[0].mxu0 %v2875
      %v3098 = vpop.f32.mrb[0].mxu0
      %v3099 = vadd.f32 0.0, %v3098
      %v3100 = vpop.f32.mrb[0].mxu0
      %3101 = vdwg.mxu0
      %v3102 = vld [vmem:[%s15] sm:$0xff]
      %v3103 = vld [vmem:[%s15 + $0x8] sm:$0xff]
      %v3104 = vld [vmem:[%s15 + $0x10] sm:$0xff]
      %v3105 = vld [vmem:[%s15 + $0x18] sm:$0xff]
      %v3106 = vld [vmem:[%s883] sm:$0xff]
      %v3107 = vld [vmem:[%s883 + $0x8] sm:$0xff]
      %v3108 = vld [vmem:[%s883 + $0x10] sm:$0xff]
      %v3109 = vld [vmem:[%s883 + $0x18] sm:$0xff]
      %v3110 = vld [vmem:[%s889] sm:$0xf]
      %v3112 = vsel %vm942, %v3106, 0
      %v3115 = vsel %vm942, %v3107, 0
      %v3118 = vsel %vm942, %v3108, 0
      %v3121 = vsel %vm942, %v3109, 0
      %v3124 = vsel %vm1039, %v3110, 0
      %3126 = vmatprep.subr.mxu0 0.0
      %3127 = vmatpush1.msra.mxu0 %v3124
      %3128 = vmatprep.subr.mxu0 0.0
      %3129 = vmatpush1.msra.mxu0 0.0
      %3130 = vmatprep.subr.mxu0 0.0
      %3131 = vmatpush1.msra.mxu0 0.0
      %3132 = vmatprep.subr.mxu0 0.0
      %3133 = vmatpush1.msra.mxu0 0.0
      %3134 = vmatprep.subr.mxu0 0.0
      %3135 = vmatpush1.msra.mxu0 0.0
      %3136 = vmatprep.subr.mxu0 0.0
      %3137 = vmatpush1.msra.mxu0 0.0
      %3138 = vmatprep.subr.mxu0 0.0
      %3139 = vmatpush1.msra.mxu0 0.0
      %3140 = vmatprep.subr.mxu0 0.0
      %3141 = vmatpush1.msra.mxu0 0.0
      %3142 = vmatprep.subr.mxu0 0.0
      %3143 = vmatpush1.msra.mxu0 0.0
      %3144 = vmatprep.subr.mxu0 0.0
      %3145 = vmatpush1.msra.mxu0 0.0
      %3146 = vmatprep.subr.mxu0 0.0
      %3147 = vmatpush1.msra.mxu0 0.0
      %3148 = vmatprep.subr.mxu0 0.0
      %3149 = vmatpush1.msra.mxu0 0.0
      %3150 = vmatprep.subr.mxu0 0.0
      %3151 = vmatpush1.msra.mxu0 0.0
      %3152 = vmatprep.subr.mxu0 0.0
      %3153 = vmatpush1.msra.mxu0 0.0
      %3154 = vmatprep.subr.mxu0 0.0
      %3155 = vmatpush1.msra.mxu0 0.0
      %3156 = vmatprep.subr.mxu0 0.0
      %3157 = vmatpush1.msra.mxu0 0.0
      %3158 = vmatprep.subr.mxu0 0.0
      %3159 = vmatpush1.msra.mxu0 0.0
      %3160 = vmatprep.subr.mxu0 0.0
      %3161 = vmatpush1.msra.mxu0 0.0
      %3162 = vmatprep.subr.mxu0 0.0
      %3163 = vmatpush1.msra.mxu0 0.0
      %3164 = vmatprep.subr.mxu0 0.0
      %3165 = vmatpush1.msra.mxu0 0.0
      %3166 = vmatprep.subr.mxu0 0.0
      %3167 = vmatpush1.msra.mxu0 0.0
      %3168 = vmatprep.subr.mxu0 0.0
      %3169 = vmatpush1.msra.mxu0 0.0
      %3170 = vmatprep.subr.mxu0 0.0
      %3171 = vmatpush1.msra.mxu0 0.0
      %3172 = vmatprep.subr.mxu0 0.0
      %3173 = vmatpush1.msra.mxu0 0.0
      %3174 = vmatprep.subr.mxu0 0.0
      %3175 = vmatpush1.msra.mxu0 0.0
      %3176 = vmatprep.subr.mxu0 0.0
      %3177 = vmatpush1.msra.mxu0 0.0
      %3178 = vmatprep.subr.mxu0 0.0
      %3179 = vmatpush1.msra.mxu0 0.0
      %3180 = vmatprep.subr.mxu0 0.0
      %3181 = vmatpush1.msra.mxu0 0.0
      %3182 = vmatprep.subr.mxu0 0.0
      %3183 = vmatpush1.msra.mxu0 0.0
      %3184 = vmatprep.subr.mxu0 0.0
      %3185 = vmatpush1.msra.mxu0 0.0
      %3186 = vmatprep.subr.mxu0 0.0
      %3187 = vmatpush1.msra.mxu0 0.0
      %3188 = vmatprep.subr.mxu0 0.0
      %3189 = vmatpush1.msra.mxu0 0.0
      %3190 = vmatprep.mubr.f32.mxu0 0.0
      %3191 = vmatmul.mubr.f32.gmra.mrb[0].mxu0 %v3112
      %v3192 = vpop.f32.mrb[0].mxu0
      %v3193 = vadd.f32 0.0, %v3192
      %v3194 = vpop.f32.mrb[0].mxu0
      %3195 = vmatprep.mubr.f32.mxu0 0.0
      %3196 = vmatmul.mubr.f32.gmra.mrb[0].mxu0 %v3115
      %v3197 = vpop.f32.mrb[0].mxu0
      %v3198 = vadd.f32 0.0, %v3197
      %v3199 = vpop.f32.mrb[0].mxu0
      %3200 = vmatprep.mubr.f32.mxu0 0.0
      %3201 = vmatmul.mubr.f32.gmra.mrb[0].mxu0 %v3118
      %v3202 = vpop.f32.mrb[0].mxu0
      %v3203 = vadd.f32 0.0, %v3202
      %v3204 = vpop.f32.mrb[0].mxu0
      %3205 = vmatprep.mubr.f32.mxu0 0.0
      %3206 = vmatmul.mubr.f32.gmra.mrb[0].mxu0 %v3121
      %v3207 = vpop.f32.mrb[0].mxu0
      %v3208 = vadd.f32 0.0, %v3207
      %v3209 = vpop.f32.mrb[0].mxu0
      %3210 = vdwg.mxu0
      %v3211 = vadd.f32 %v3102, %v3193
      %v3212 = vadd.f32 %v3103, %v3198
      %v3213 = vadd.f32 %v3104, %v3203
      %v3214 = vadd.f32 %v3105, %v3208
      %v3216 = vsel %vm1381, %v2944, 0
      %v3219 = vsel %vm1381, %v2949, 0
      %v3222 = vsel %vm1381, %v2954, 0
      %v3225 = vsel %vm1381, %v2959, 0
      %v3228 = vsel %vm1381, %v2964, 0
      %v3231 = vsel %vm1381, %v2969, 0
      %v3234 = vsel %vm1381, %v2974, 0
      %v3237 = vsel %vm1381, %v2979, 0
      %v3240 = vsel %vm1381, %v2984, 0
      %v3243 = vsel %vm1381, %v2989, 0
      %v3246 = vsel %vm1381, %v2994, 0
      %v3249 = vsel %vm1381, %v2999, 0
      %v3252 = vsel %vm1381, %v3004, 0
      %v3255 = vsel %vm1381, %v3009, 0
      %v3258 = vsel %vm1381, %v3014, 0
      %v3261 = vsel %vm1381, %v3019, 0
      %v3264 = vsel %vm1381, %v3024, 0
      %v3267 = vsel %vm1381, %v3029, 0
      %v3270 = vsel %vm1381, %v3034, 0
      %v3273 = vsel %vm1381, %v3039, 0
      %v3276 = vsel %vm1381, %v3044, 0
      %v3279 = vsel %vm1381, %v3049, 0
      %v3282 = vsel %vm1381, %v3054, 0
      %v3285 = vsel %vm1381, %v3059, 0
      %v3288 = vsel %vm1381, %v3064, 0
      %v3291 = vsel %vm1381, %v3069, 0
      %v3294 = vsel %vm1381, %v3074, 0
      %v3297 = vsel %vm1381, %v3079, 0
      %v3300 = vsel %vm1381, %v3084, 0
      %v3303 = vsel %vm1381, %v3089, 0
      %v3306 = vsel %vm1381, %v3094, 0
      %v3309 = vsel %vm1381, %v3099, 0
      %3311 = vmatprep.subr.mxu0 0.0
      %3312 = vmatpush1.msra.mxu0 %v3211
      %3313 = vmatprep.subr.mxu0 0.0
      %3314 = vmatpush1.msra.mxu0 %v3212
      %3315 = vmatprep.subr.mxu0 0.0
      %3316 = vmatpush1.msra.mxu0 %v3213
      %3317 = vmatprep.subr.mxu0 0.0
      %3318 = vmatpush1.msra.mxu0 %v3214
      %3319 = vmatprep.subr.mxu0 0.0
      %3320 = vmatpush1.msra.mxu0 0.0
      %3321 = vmatprep.subr.mxu0 0.0
      %3322 = vmatpush1.msra.mxu0 0.0
      %3323 = vmatprep.subr.mxu0 0.0
      %3324 = vmatpush1.msra.mxu0 0.0
      %3325 = vmatprep.subr.mxu0 0.0
      %3326 = vmatpush1.msra.mxu0 0.0
      %3327 = vmatprep.subr.mxu0 0.0
      %3328 = vmatpush1.msra.mxu0 0.0
      %3329 = vmatprep.subr.mxu0 0.0
      %3330 = vmatpush1.msra.mxu0 0.0
      %3331 = vmatprep.subr.mxu0 0.0
      %3332 = vmatpush1.msra.mxu0 0.0
      %3333 = vmatprep.subr.mxu0 0.0
      %3334 = vmatpush1.msra.mxu0 0.0
      %3335 = vmatprep.subr.mxu0 0.0
      %3336 = vmatpush1.msra.mxu0 0.0
      %3337 = vmatprep.subr.mxu0 0.0
      %3338 = vmatpush1.msra.mxu0 0.0
      %3339 = vmatprep.subr.mxu0 0.0
      %3340 = vmatpush1.msra.mxu0 0.0
      %3341 = vmatprep.subr.mxu0 0.0
      %3342 = vmatpush1.msra.mxu0 0.0
      %3343 = vmatprep.subr.mxu0 0.0
      %3344 = vmatpush1.msra.mxu0 0.0
      %3345 = vmatprep.subr.mxu0 0.0
      %3346 = vmatpush1.msra.mxu0 0.0
      %3347 = vmatprep.subr.mxu0 0.0
      %3348 = vmatpush1.msra.mxu0 0.0
      %3349 = vmatprep.subr.mxu0 0.0
      %3350 = vmatpush1.msra.mxu0 0.0
      %3351 = vmatprep.subr.mxu0 0.0
      %3352 = vmatpush1.msra.mxu0 0.0
      %3353 = vmatprep.subr.mxu0 0.0
      %3354 = vmatpush1.msra.mxu0 0.0
      %3355 = vmatprep.subr.mxu0 0.0
      %3356 = vmatpush1.msra.mxu0 0.0
      %3357 = vmatprep.subr.mxu0 0.0
      %3358 = vmatpush1.msra.mxu0 0.0
      %3359 = vmatprep.subr.mxu0 0.0
      %3360 = vmatpush1.msra.mxu0 0.0
      %3361 = vmatprep.subr.mxu0 0.0
      %3362 = vmatpush1.msra.mxu0 0.0
      %3363 = vmatprep.subr.mxu0 0.0
      %3364 = vmatpush1.msra.mxu0 0.0
      %3365 = vmatprep.subr.mxu0 0.0
      %3366 = vmatpush1.msra.mxu0 0.0
      %3367 = vmatprep.subr.mxu0 0.0
      %3368 = vmatpush1.msra.mxu0 0.0
      %3369 = vmatprep.subr.mxu0 0.0
      %3370 = vmatpush1.msra.mxu0 0.0
      %3371 = vmatprep.subr.mxu0 0.0
      %3372 = vmatpush1.msra.mxu0 0.0
      %3373 = vmatprep.subr.mxu0 0.0
      %3374 = vmatpush1.msra.mxu0 0.0
      %3375 = vmatprep.mubr.f32.mxu0 0.0
      %3376 = vmatmul.mubr.f32.gmra.mrb[0].mxu0 %v3216
      %v3377 = vpop.f32.mrb[0].mxu0
      %v3378 = vadd.f32 0.0, %v3377
      %v3379 = vpop.f32.mrb[0].mxu0
      %3380 = vmatprep.mubr.f32.mxu0 0.0
      %3381 = vmatmul.mubr.f32.gmra.mrb[0].mxu0 %v3219
      %v3382 = vpop.f32.mrb[0].mxu0
      %v3383 = vadd.f32 0.0, %v3382
      %v3384 = vpop.f32.mrb[0].mxu0
      %3385 = vmatprep.mubr.f32.mxu0 0.0
      %3386 = vmatmul.mubr.f32.gmra.mrb[0].mxu0 %v3222
      %v3387 = vpop.f32.mrb[0].mxu0
      %v3388 = vadd.f32 0.0, %v3387
      %v3389 = vpop.f32.mrb[0].mxu0
      %3390 = vmatprep.mubr.f32.mxu0 0.0
      %3391 = vmatmul.mubr.f32.gmra.mrb[0].mxu0 %v3225
      %v3392 = vpop.f32.mrb[0].mxu0
      %v3393 = vadd.f32 0.0, %v3392
      %v3394 = vpop.f32.mrb[0].mxu0
      %3395 = vmatprep.mubr.f32.mxu0 0.0
      %3396 = vmatmul.mubr.f32.gmra.mrb[0].mxu0 %v3228
      %v3397 = vpop.f32.mrb[0].mxu0
      %v3398 = vadd.f32 0.0, %v3397
      %v3399 = vpop.f32.mrb[0].mxu0
      %3400 = vmatprep.mubr.f32.mxu0 0.0
      %3401 = vmatmul.mubr.f32.gmra.mrb[0].mxu0 %v3231
      %v3402 = vpop.f32.mrb[0].mxu0
      %v3403 = vadd.f32 0.0, %v3402
      %v3404 = vpop.f32.mrb[0].mxu0
      %3405 = vmatprep.mubr.f32.mxu0 0.0
      %3406 = vmatmul.mubr.f32.gmra.mrb[0].mxu0 %v3234
      %v3407 = vpop.f32.mrb[0].mxu0
      %v3408 = vadd.f32 0.0, %v3407
      %v3409 = vpop.f32.mrb[0].mxu0
      %3410 = vmatprep.mubr.f32.mxu0 0.0
      %3411 = vmatmul.mubr.f32.gmra.mrb[0].mxu0 %v3237
      %v3412 = vpop.f32.mrb[0].mxu0
      %v3413 = vadd.f32 0.0, %v3412
      %v3414 = vpop.f32.mrb[0].mxu0
      %3415 = vmatprep.mubr.f32.mxu0 0.0
      %3416 = vmatmul.mubr.f32.gmra.mrb[0].mxu0 %v3240
      %v3417 = vpop.f32.mrb[0].mxu0
      %v3418 = vadd.f32 0.0, %v3417
      %v3419 = vpop.f32.mrb[0].mxu0
      %3420 = vmatprep.mubr.f32.mxu0 0.0
      %3421 = vmatmul.mubr.f32.gmra.mrb[0].mxu0 %v3243
      %v3422 = vpop.f32.mrb[0].mxu0
      %v3423 = vadd.f32 0.0, %v3422
      %v3424 = vpop.f32.mrb[0].mxu0
      %3425 = vmatprep.mubr.f32.mxu0 0.0
      %3426 = vmatmul.mubr.f32.gmra.mrb[0].mxu0 %v3246
      %v3427 = vpop.f32.mrb[0].mxu0
      %v3428 = vadd.f32 0.0, %v3427
      %v3429 = vpop.f32.mrb[0].mxu0
      %3430 = vmatprep.mubr.f32.mxu0 0.0
      %3431 = vmatmul.mubr.f32.gmra.mrb[0].mxu0 %v3249
      %v3432 = vpop.f32.mrb[0].mxu0
      %v3433 = vadd.f32 0.0, %v3432
      %v3434 = vpop.f32.mrb[0].mxu0
      %3435 = vmatprep.mubr.f32.mxu0 0.0
      %3436 = vmatmul.mubr.f32.gmra.mrb[0].mxu0 %v3252
      %v3437 = vpop.f32.mrb[0].mxu0
      %v3438 = vadd.f32 0.0, %v3437
      %v3439 = vpop.f32.mrb[0].mxu0
      %3440 = vmatprep.mubr.f32.mxu0 0.0
      %3441 = vmatmul.mubr.f32.gmra.mrb[0].mxu0 %v3255
      %v3442 = vpop.f32.mrb[0].mxu0
      %v3443 = vadd.f32 0.0, %v3442
      %v3444 = vpop.f32.mrb[0].mxu0
      %3445 = vmatprep.mubr.f32.mxu0 0.0
      %3446 = vmatmul.mubr.f32.gmra.mrb[0].mxu0 %v3258
      %v3447 = vpop.f32.mrb[0].mxu0
      %v3448 = vadd.f32 0.0, %v3447
      %v3449 = vpop.f32.mrb[0].mxu0
      %3450 = vmatprep.mubr.f32.mxu0 0.0
      %3451 = vmatmul.mubr.f32.gmra.mrb[0].mxu0 %v3261
      %v3452 = vpop.f32.mrb[0].mxu0
      %v3453 = vadd.f32 0.0, %v3452
      %v3454 = vpop.f32.mrb[0].mxu0
      %3455 = vmatprep.mubr.f32.mxu0 0.0
      %3456 = vmatmul.mubr.f32.gmra.mrb[0].mxu0 %v3264
      %v3457 = vpop.f32.mrb[0].mxu0
      %v3458 = vadd.f32 0.0, %v3457
      %v3459 = vpop.f32.mrb[0].mxu0
      %3460 = vmatprep.mubr.f32.mxu0 0.0
      %3461 = vmatmul.mubr.f32.gmra.mrb[0].mxu0 %v3267
      %v3462 = vpop.f32.mrb[0].mxu0
      %v3463 = vadd.f32 0.0, %v3462
      %v3464 = vpop.f32.mrb[0].mxu0
      %3465 = vmatprep.mubr.f32.mxu0 0.0
      %3466 = vmatmul.mubr.f32.gmra.mrb[0].mxu0 %v3270
      %v3467 = vpop.f32.mrb[0].mxu0
      %v3468 = vadd.f32 0.0, %v3467
      %v3469 = vpop.f32.mrb[0].mxu0
      %3470 = vmatprep.mubr.f32.mxu0 0.0
      %3471 = vmatmul.mubr.f32.gmra.mrb[0].mxu0 %v3273
      %v3472 = vpop.f32.mrb[0].mxu0
      %v3473 = vadd.f32 0.0, %v3472
      %v3474 = vpop.f32.mrb[0].mxu0
      %3475 = vmatprep.mubr.f32.mxu0 0.0
      %3476 = vmatmul.mubr.f32.gmra.mrb[0].mxu0 %v3276
      %v3477 = vpop.f32.mrb[0].mxu0
      %v3478 = vadd.f32 0.0, %v3477
      %v3479 = vpop.f32.mrb[0].mxu0
      %3480 = vmatprep.mubr.f32.mxu0 0.0
      %3481 = vmatmul.mubr.f32.gmra.mrb[0].mxu0 %v3279
      %v3482 = vpop.f32.mrb[0].mxu0
      %v3483 = vadd.f32 0.0, %v3482
      %v3484 = vpop.f32.mrb[0].mxu0
      %3485 = vmatprep.mubr.f32.mxu0 0.0
      %3486 = vmatmul.mubr.f32.gmra.mrb[0].mxu0 %v3282
      %v3487 = vpop.f32.mrb[0].mxu0
      %v3488 = vadd.f32 0.0, %v3487
      %v3489 = vpop.f32.mrb[0].mxu0
      %3490 = vmatprep.mubr.f32.mxu0 0.0
      %3491 = vmatmul.mubr.f32.gmra.mrb[0].mxu0 %v3285
      %v3492 = vpop.f32.mrb[0].mxu0
      %v3493 = vadd.f32 0.0, %v3492
      %v3494 = vpop.f32.mrb[0].mxu0
      %3495 = vmatprep.mubr.f32.mxu0 0.0
      %3496 = vmatmul.mubr.f32.gmra.mrb[0].mxu0 %v3288
      %v3497 = vpop.f32.mrb[0].mxu0
      %v3498 = vadd.f32 0.0, %v3497
      %v3499 = vpop.f32.mrb[0].mxu0
      %3500 = vmatprep.mubr.f32.mxu0 0.0
      %3501 = vmatmul.mubr.f32.gmra.mrb[0].mxu0 %v3291
      %v3502 = vpop.f32.mrb[0].mxu0
      %v3503 = vadd.f32 0.0, %v3502
      %v3504 = vpop.f32.mrb[0].mxu0
      %3505 = vmatprep.mubr.f32.mxu0 0.0
      %3506 = vmatmul.mubr.f32.gmra.mrb[0].mxu0 %v3294
      %v3507 = vpop.f32.mrb[0].mxu0
      %v3508 = vadd.f32 0.0, %v3507
      %v3509 = vpop.f32.mrb[0].mxu0
      %3510 = vmatprep.mubr.f32.mxu0 0.0
      %3511 = vmatmul.mubr.f32.gmra.mrb[0].mxu0 %v3297
      %v3512 = vpop.f32.mrb[0].mxu0
      %v3513 = vadd.f32 0.0, %v3512
      %v3514 = vpop.f32.mrb[0].mxu0
      %3515 = vmatprep.mubr.f32.mxu0 0.0
      %3516 = vmatmul.mubr.f32.gmra.mrb[0].mxu0 %v3300
      %v3517 = vpop.f32.mrb[0].mxu0
      %v3518 = vadd.f32 0.0, %v3517
      %v3519 = vpop.f32.mrb[0].mxu0
      %3520 = vmatprep.mubr.f32.mxu0 0.0
      %3521 = vmatmul.mubr.f32.gmra.mrb[0].mxu0 %v3303
      %v3522 = vpop.f32.mrb[0].mxu0
      %v3523 = vadd.f32 0.0, %v3522
      %v3524 = vpop.f32.mrb[0].mxu0
      %3525 = vmatprep.mubr.f32.mxu0 0.0
      %3526 = vmatmul.mubr.f32.gmra.mrb[0].mxu0 %v3306
      %v3527 = vpop.f32.mrb[0].mxu0
      %v3528 = vadd.f32 0.0, %v3527
      %v3529 = vpop.f32.mrb[0].mxu0
      %3530 = vmatprep.mubr.f32.mxu0 0.0
      %3531 = vmatmul.mubr.f32.gmra.mrb[0].mxu0 %v3309
      %v3532 = vpop.f32.mrb[0].mxu0
      %v3533 = vadd.f32 0.0, %v3532
      %v3534 = vpop.f32.mrb[0].mxu0
      %3535 = vdwg.mxu0
      %v3536 = vld [vmem:[%s18] sm:$0xf]
      %v3537 = vld [vmem:[%s19] sm:$0xf]
      %3539 = vset.pattern.permute.xlu0 0
      %3540 = vperm.xlu0 %3539, %v3537
      %v3541 = vpop.permute.xlu0 %3540
      %v3544 = vsel %vm1381, %v3536, 0
      %v3547 = vsel %vm1381, %v3378, 0
      %v3550 = vsel %vm1381, %v3383, 0
      %v3553 = vsel %vm1381, %v3388, 0
      %v3556 = vsel %vm1381, %v3393, 0
      %v3559 = vsel %vm1381, %v3398, 0
      %v3562 = vsel %vm1381, %v3403, 0
      %v3565 = vsel %vm1381, %v3408, 0
      %v3568 = vsel %vm1381, %v3413, 0
      %v3571 = vsel %vm1381, %v3418, 0
      %v3574 = vsel %vm1381, %v3423, 0
      %v3577 = vsel %vm1381, %v3428, 0
      %v3580 = vsel %vm1381, %v3433, 0
      %v3583 = vsel %vm1381, %v3438, 0
      %v3586 = vsel %vm1381, %v3443, 0
      %v3589 = vsel %vm1381, %v3448, 0
      %v3592 = vsel %vm1381, %v3453, 0
      %v3595 = vsel %vm1381, %v3458, 0
      %v3598 = vsel %vm1381, %v3463, 0
      %v3601 = vsel %vm1381, %v3468, 0
      %v3604 = vsel %vm1381, %v3473, 0
      %v3607 = vsel %vm1381, %v3478, 0
      %v3610 = vsel %vm1381, %v3483, 0
      %v3613 = vsel %vm1381, %v3488, 0
      %v3616 = vsel %vm1381, %v3493, 0
      %v3619 = vsel %vm1381, %v3498, 0
      %v3622 = vsel %vm1381, %v3503, 0
      %v3625 = vsel %vm1381, %v3508, 0
      %v3628 = vsel %vm1381, %v3513, 0
      %v3631 = vsel %vm1381, %v3518, 0
      %v3634 = vsel %vm1381, %v3523, 0
      %v3637 = vsel %vm1381, %v3528, 0
      %v3640 = vsel %vm1381, %v3533, 0
      %3642 = vmatprep.subr.mxu0 0.0
      %3643 = vmatpush1.xpose.msra.mxu0 %v3547
      %3644 = vmatprep.subr.mxu0 0.0
      %3645 = vmatpush1.xpose.msra.mxu0 %v3550
      %3646 = vmatprep.subr.mxu0 0.0
      %3647 = vmatpush1.xpose.msra.mxu0 %v3553
      %3648 = vmatprep.subr.mxu0 0.0
      %3649 = vmatpush1.xpose.msra.mxu0 %v3556
      %3650 = vmatprep.subr.mxu0 0.0
      %3651 = vmatpush1.xpose.msra.mxu0 %v3559
      %3652 = vmatprep.subr.mxu0 0.0
      %3653 = vmatpush1.xpose.msra.mxu0 %v3562
      %3654 = vmatprep.subr.mxu0 0.0
      %3655 = vmatpush1.xpose.msra.mxu0 %v3565
      %3656 = vmatprep.subr.mxu0 0.0
      %3657 = vmatpush1.xpose.msra.mxu0 %v3568
      %3658 = vmatprep.subr.mxu0 0.0
      %3659 = vmatpush1.xpose.msra.mxu0 %v3571
      %3660 = vmatprep.subr.mxu0 0.0
      %3661 = vmatpush1.xpose.msra.mxu0 %v3574
      %3662 = vmatprep.subr.mxu0 0.0
      %3663 = vmatpush1.xpose.msra.mxu0 %v3577
      %3664 = vmatprep.subr.mxu0 0.0
      %3665 = vmatpush1.xpose.msra.mxu0 %v3580
      %3666 = vmatprep.subr.mxu0 0.0
      %3667 = vmatpush1.xpose.msra.mxu0 %v3583
      %3668 = vmatprep.subr.mxu0 0.0
      %3669 = vmatpush1.xpose.msra.mxu0 %v3586
      %3670 = vmatprep.subr.mxu0 0.0
      %3671 = vmatpush1.xpose.msra.mxu0 %v3589
      %3672 = vmatprep.subr.mxu0 0.0
      %3673 = vmatpush1.xpose.msra.mxu0 %v3592
      %3674 = vmatprep.subr.mxu0 0.0
      %3675 = vmatpush1.xpose.msra.mxu0 %v3595
      %3676 = vmatprep.subr.mxu0 0.0
      %3677 = vmatpush1.xpose.msra.mxu0 %v3598
      %3678 = vmatprep.subr.mxu0 0.0
      %3679 = vmatpush1.xpose.msra.mxu0 %v3601
      %3680 = vmatprep.subr.mxu0 0.0
      %3681 = vmatpush1.xpose.msra.mxu0 %v3604
      %3682 = vmatprep.subr.mxu0 0.0
      %3683 = vmatpush1.xpose.msra.mxu0 %v3607
      %3684 = vmatprep.subr.mxu0 0.0
      %3685 = vmatpush1.xpose.msra.mxu0 %v3610
      %3686 = vmatprep.subr.mxu0 0.0
      %3687 = vmatpush1.xpose.msra.mxu0 %v3613
      %3688 = vmatprep.subr.mxu0 0.0
      %3689 = vmatpush1.xpose.msra.mxu0 %v3616
      %3690 = vmatprep.subr.mxu0 0.0
      %3691 = vmatpush1.xpose.msra.mxu0 %v3619
      %3692 = vmatprep.subr.mxu0 0.0
      %3693 = vmatpush1.xpose.msra.mxu0 %v3622
      %3694 = vmatprep.subr.mxu0 0.0
      %3695 = vmatpush1.xpose.msra.mxu0 %v3625
      %3696 = vmatprep.subr.mxu0 0.0
      %3697 = vmatpush1.xpose.msra.mxu0 %v3628
      %3698 = vmatprep.subr.mxu0 0.0
      %3699 = vmatpush1.xpose.msra.mxu0 %v3631
      %3700 = vmatprep.subr.mxu0 0.0
      %3701 = vmatpush1.xpose.msra.mxu0 %v3634
      %3702 = vmatprep.subr.mxu0 0.0
      %3703 = vmatpush1.xpose.msra.mxu0 %v3637
      %3704 = vmatprep.subr.mxu0 0.0
      %3705 = vmatpush1.xpose.msra.mxu0 %v3640
      %3706 = vmatprep.mubr.f32.mxu0 0.0
      %3707 = vmatmul.mubr.f32.gmra.mrb[0].mxu0 %v3544
      %v3708 = vpop.f32.mrb[0].mxu0
      %v3709 = vadd.f32 %v3541, %v3708
      %v3710 = vpop.f32.mrb[0].mxu0
      %v3711 = vadd.f32 %v3541, %v3710
      %3712 = vdwg.mxu0
      %v3713 = vld [vmem:[%s833] sm:$0xff]
      %v3715 = vcombine.high %v3713, %v3713
      %v3717 = vadd.f32 %v3709, %v3713
      %v3718 = vadd.f32 %v3711, %v3715
      %v3721 = vcombine.low %v3717, %v3718
      %3723 = vst [vmem:[%s899] sm:$0xff] %v3721
      %s3724 = smul.u32 2, %s37
      %p3725 = scmp.lt.s32.totalorder %s36, 1
      %s3726 = scalar_select %p3725, %s36, 1
      %p3727 = scmp.lt.s32.totalorder %s3724, 1
      %s3728 = scalar_select %p3727, %s3724, 1
      %s3729 = smul.addr %s3726, 2
      %s3730 = sadd.s32 %s3728, %s3729
      %s3731 = smul.addr %s3730, 4
      %s3732 = scalar_lea.vmem %s20, %s3731
      // Predicated region
      $region97: #{unet_lora_mode_forward.1} parent=95 // pred_check
        %p3733 = pneg %p538
      $region98: #{unet_lora_mode_forward.1} parent=95 // pred_check_branch
        %3735 = sbr.rel (%p3733) target = $region100
      $region99: #{unet_lora_mode_forward.1} parent=95 // pred_region
        %s3736 = smul.u32 2, %s37
      $region100: #{unet_lora_mode_forward.1} parent=95 // pred_fallthru
        _
    $region96: #{unet_lora_mode_forward.1} parent=5 // pred_fallthru
      _
    %p3737 = scmp.le.s32.totalorder 2, %s27
    // Predicated region
    $region101: #{unet_lora_mode_forward.1} parent=5 // pred_check
      %p3738 = pneg %p3737
    $region102: #{unet_lora_mode_forward.1} parent=5 // pred_check_branch
      %3740 = sbr.rel (%p3738) target = $region104
    $region103: #{unet_lora_mode_forward.1} parent=5 // pred_region
      %s3741 = ssub.s32 %s27, 2
      // Predicated region
      $region105: #{unet_lora_mode_forward.1} parent=103 // pred_check
        %p3742 = pneg %p544
      $region106: #{unet_lora_mode_forward.1} parent=103 // pred_check_branch
        %3744 = sbr.rel (%p3742) target = $region108
      $region107: #{unet_lora_mode_forward.1} parent=103 // pred_region
        %s3745 = smul.u32 2, %s39
        %p3746 = scmp.lt.s32.totalorder %s38, 1
        %s3747 = scalar_select %p3746, %s38, 1
        %p3748 = scmp.lt.s32.totalorder %s3745, 1
        %s3749 = scalar_select %p3748, %s3745, 1
        %s3750 = smul.addr %s3747, 2
        %s3751 = sadd.s32 %s3749, %s3750
        %s3752 = smul.addr %s3751, 4
        %s3753 = scalar_lea.vmem %s20, %s3752
      $region108: #{unet_lora_mode_forward.1} parent=103 // pred_fallthru
        _
    $region104: #{unet_lora_mode_forward.1} parent=5 // pred_fallthru
      _
  $region6: #{unet_lora_mode_forward.1} parent=0 // loop_footer
    %s31 = sadd.s32 1, %s27
  $region7: #{unet_lora_mode_forward.1} parent=0 // loop_footer_branch
    %26 = sbr.rel target = $region3
  $region8: #{unet_lora_mode_forward.1} parent=0 // loop_exit
    _

</llo_original>
